<compile_context>
chip_gen: v7x
topology: tpu7x:2x2x1
jax: 0.10.0
libtpu: 0.0.40
codegen_flags: <defaults>
</compile_context>

<pallas_src>
import functools

import jax
import jax.numpy as jnp
from jax.experimental import pallas as pl
from jax.experimental.pallas import tpu as pltpu


IN_DIM = 784
IN_DIM_PAD = 896            # 784 padded up to a multiple of 128 (lane-aligned)
H1, H2, H3, OUT_DIM = 1024, 512, 256, 1
NEG_SLOPE = 0.01            # PyTorch F.leaky_relu default
DROP_P = 0.5                # PyTorch F.dropout default (and training=True default)
MAX_TILE_B = 128            # batch tile: good MXU row occupancy on v5e/v6e/v7x


def _round_up(n, m):
    return ((n + m - 1) // m) * m


def _lrelu(h):
    return jnp.where(h > 0, h, NEG_SLOPE * h)


def _make_dropout_masks(key, b_pad, p=DROP_P):
    """Pre-scaled keep masks (0 or 1/keep), bf16 (values exact), one per hidden layer."""
    keep = 1.0 - p
    k1, k2, k3 = jax.random.split(key, 3)
    scale = jnp.asarray(1.0 / keep, jnp.bfloat16)
    m1 = jax.random.bernoulli(k1, keep, (b_pad, H1)).astype(jnp.bfloat16) * scale
    m2 = jax.random.bernoulli(k2, keep, (b_pad, H2)).astype(jnp.bfloat16) * scale
    m3 = jax.random.bernoulli(k3, keep, (b_pad, H3)).astype(jnp.bfloat16) * scale
    return m1, m2, m3


def _make_kernel(training: bool):
    """Fused 4-layer MLP: 3x (MXU matmul + bias + leaky_relu [+ dropout]) + VPU head + sigmoid."""

    def kernel(x_ref,                               # (TILE_B, 896) bf16
               w1_ref, b1_ref,                      # (896, 1024) bf16, (1, 1024) f32
               w2_ref, b2_ref,                      # (1024, 512) bf16, (1, 512)  f32
               w3_ref, b3_ref,                      # (512, 256)  bf16, (1, 256)  f32
               w4_ref, b4_ref,                      # (1, 256)    bf16, (1, 1)    f32
               *rest):                              # [m1, m2, m3,] out
        if training:
            m1_ref, m2_ref, m3_ref, out_ref = rest
        else:
            (out_ref,) = rest

        # layer 1
        h = jnp.dot(x_ref[...], w1_ref[...],
                    preferred_element_type=jnp.float32) + b1_ref[...]
        h = _lrelu(h)
        if training:
            h = h * m1_ref[...].astype(jnp.float32)

        # layer 2
        h = jnp.dot(h.astype(jnp.bfloat16), w2_ref[...],
                    preferred_element_type=jnp.float32) + b2_ref[...]
        h = _lrelu(h)
        if training:
            h = h * m2_ref[...].astype(jnp.float32)

        # layer 3
        h = jnp.dot(h.astype(jnp.bfloat16), w3_ref[...],
                    preferred_element_type=jnp.float32) + b3_ref[...]
        h = _lrelu(h)
        if training:
            h = h * m3_ref[...].astype(jnp.float32)

        # layer 4: out_features == 1, so skip the degenerate N=1 MXU matmul and do a
        # VPU multiply + lane reduction over the 256 features instead.
        w4_row = w4_ref[...].astype(jnp.float32)                 # (1, 256)
        z = jnp.sum(h * w4_row, axis=-1, keepdims=True) + b4_ref[...]
        out_ref[...] = (1.0 / (1.0 + jnp.exp(-z))).astype(out_ref.dtype)

    return kernel


@functools.partial(jax.jit, static_argnames=("training",))
def discriminator_forward(x, params, key, training=True):
    """x: any shape reshapeable to (-1, 784). Returns (B, 1) sigmoid outputs."""
    x2 = x.reshape(-1, IN_DIM).astype(jnp.float32)
    B = x2.shape[0]

    tile_b = min(MAX_TILE_B, _round_up(B, 8))
    b_pad = _round_up(B, tile_b)
    grid_b = b_pad // tile_b

    # pad batch to tile multiple and features 784 -> 896; feed the MXU bf16 inputs.
    x_pad = jnp.pad(x2, ((0, b_pad - B), (0, IN_DIM_PAD - IN_DIM)))
    x_bf = x_pad.astype(jnp.bfloat16)

    w1, b1, w2, b2, w3, b3, w4, b4 = params
    w1b = jnp.pad(w1, ((0, IN_DIM_PAD - IN_DIM), (0, 0))).astype(jnp.bfloat16)
    w2b = w2.astype(jnp.bfloat16)
    w3b = w3.astype(jnp.bfloat16)
    w4b = w4.reshape(1, H3).astype(jnp.bfloat16)     # (256, 1) -> (1, 256) row
    b4s = b4.reshape(1, 1).astype(jnp.float32)

    operands = [x_bf, w1b, b1, w2b, b2, w3b, b3, w4b, b4s]

    tile_map = lambda i: (i, 0)    # batch-tiled operands
    const_map = lambda i: (0, 0)   # weights/biases stay resident across grid steps

    in_specs = [
        pl.BlockSpec((tile_b, IN_DIM_PAD), tile_map),
        pl.BlockSpec((IN_DIM_PAD, H1), const_map),
        pl.BlockSpec((1, H1), const_map),
        pl.BlockSpec((H1, H2), const_map),
        pl.BlockSpec((1, H2), const_map),
        pl.BlockSpec((H2, H3), const_map),
        pl.BlockSpec((1, H3), const_map),
        pl.BlockSpec((1, H3), const_map),
        pl.BlockSpec((1, 1), const_map),
    ]

    if training:
        # TODO(synk): in-kernel pltpu.prng_seed/prng_random_bits would avoid this mask
        # DMA on real TPUs, but it is not lowerable in interpret mode; masks are
        # generated host-side instead (same F.dropout semantics, deterministic in key).
        m1, m2, m3 = _make_dropout_masks(key, b_pad)
        operands += [m1, m2, m3]
        in_specs += [
            pl.BlockSpec((tile_b, H1), tile_map),
            pl.BlockSpec((tile_b, H2), tile_map),
            pl.BlockSpec((tile_b, H3), tile_map),
        ]

    out = pl.pallas_call(
        _make_kernel(training),
        out_shape=jax.ShapeDtypeStruct((b_pad, OUT_DIM), jnp.float32),
        grid=(grid_b,),
        in_specs=in_specs,
        out_specs=pl.BlockSpec((tile_b, OUT_DIM), tile_map),
        compiler_params=pltpu.CompilerParams(
            dimension_semantics=("parallel",),
        ),
    )(*operands)

    return out[:B]


def init_params(key):
    """Deterministic PyTorch-style Linear init: U(-1/sqrt(fan_in), 1/sqrt(fan_in))."""
    dims = [(IN_DIM, H1), (H1, H2), (H2, H3), (H3, OUT_DIM)]
    params = []
    for fan_in, fan_out in dims:
        key, kw, kb = jax.random.split(key, 3)
        bound = 1.0 / (fan_in ** 0.5)
        w = jax.random.uniform(kw, (fan_in, fan_out), jnp.float32, -bound, bound)
        b = jax.random.uniform(kb, (1, fan_out), jnp.float32, -bound, bound)
        params += [w, b]
    return tuple(params)


def _reference(x, params, key=None, training=False):
    """Pure-JAX reference mirroring the kernel's bf16 weight/activation casting."""
    w1, b1, w2, b2, w3, b3, w4, b4 = params
    h = x.reshape(-1, IN_DIM).astype(jnp.float32)
    B = h.shape[0]

    w1b, w2b, w3b = (w.astype(jnp.bfloat16) for w in (w1, w2, w3))
    w4r = w4.reshape(1, H3).astype(jnp.bfloat16).astype(jnp.float32)

    if training:
        tile_b = min(MAX_TILE_B, _round_up(B, 8))
        b_pad = _round_up(B, tile_b)
        m1, m2, m3 = _make_dropout_masks(key, b_pad)
        masks = [m[:B].astype(jnp.float32) for m in (m1, m2, m3)]
    else:
        masks = [None, None, None]

    def layer(h, w, b, m):
        h = jnp.dot(h.astype(jnp.bfloat16), w,
                    preferred_element_type=jnp.float32) + b
        h = _lrelu(h)
        if m is not None:
            h = h * m
        return h

    h = layer(h, w1b, b1, masks[0])
    h = layer(h, w2b, b2, masks[1])
    h = layer(h, w3b, b3, masks[2])
    z = jnp.sum(h * w4r, axis=-1, keepdims=True) + b4.reshape(1, 1)
    return 1.0 / (1.0 + jnp.exp(-z))


if __name__ == "__main__":
    key = jax.random.PRNGKey(0)
    kx, kp, kd = jax.random.split(key, 3)

    # MNIST-like input: (B, 1, 28, 28) -> view(-1, 784)
    x = jax.random.normal(kx, (8, 1, 28, 28), dtype=jnp.float32)
    params = init_params(kp)

    # Eval-style check (no dropout) against pure-JAX reference.
    out_eval = jax.block_until_ready(
        discriminator_forward(x, params, kd, training=False))
    ref_eval = _reference(x, params, training=False)
    assert out_eval.shape == (8, 1)
    assert jnp.allclose(out_eval, ref_eval, atol=2e-3, rtol=2e-3)

    # Training-mode forward (matches F.dropout defaults p=0.5, training=True).
    # Masks are generated host-side from `kd`, so the reference reproduces them exactly.
    out_train = jax.block_until_ready(
        discriminator_forward(x, params, kd, training=True))
    ref_train = _reference(x, params, key=kd, training=True)
    assert out_train.shape == (8, 1)
    assert jnp.allclose(out_train, ref_train, atol=2e-3, rtol=2e-3)
    assert bool(jnp.all((out_train >= 0.0) & (out_train <= 1.0)))

    print("KERNEL_OK")
</pallas_src>

<mosaic_0001>
module attributes {stable_mosaic.version = 11 : i64} {
  func.func @kernel(%arg0: i32, %arg1: memref<8x896xbf16, #tpu.memory_space<vmem>>, %arg2: memref<896x1024xbf16, #tpu.memory_space<vmem>>, %arg3: memref<1x1024xf32, #tpu.memory_space<vmem>>, %arg4: memref<1024x512xbf16, #tpu.memory_space<vmem>>, %arg5: memref<1x512xf32, #tpu.memory_space<vmem>>, %arg6: memref<512x256xbf16, #tpu.memory_space<vmem>>, %arg7: memref<1x256xf32, #tpu.memory_space<vmem>>, %arg8: memref<1x256xbf16, #tpu.memory_space<vmem>>, %arg9: memref<1x1xf32, #tpu.memory_space<vmem>>, %arg10: memref<8x1xf32, #tpu.memory_space<vmem>>) attributes {dimension_semantics = [#tpu.dimension_semantics<parallel>], iteration_bounds = array<i64: 1>, scalar_prefetch = 0 : i64, scratch_operands = 0 : i64, tpu.core_type = #tpu.core_type<tc>, window_params = [{transform_indices = @transform_0, window_bounds = array<i64: 8, 896>}, {pipeline_mode = #tpu.pipeline_mode<synchronous>, transform_indices = @transform_1, window_bounds = array<i64: 896, 1024>}, {pipeline_mode = #tpu.pipeline_mode<synchronous>, transform_indices = @transform_2, window_bounds = array<i64: 1, 1024>}, {pipeline_mode = #tpu.pipeline_mode<synchronous>, transform_indices = @transform_3, window_bounds = array<i64: 1024, 512>}, {pipeline_mode = #tpu.pipeline_mode<synchronous>, transform_indices = @transform_4, window_bounds = array<i64: 1, 512>}, {pipeline_mode = #tpu.pipeline_mode<synchronous>, transform_indices = @transform_5, window_bounds = array<i64: 512, 256>}, {pipeline_mode = #tpu.pipeline_mode<synchronous>, transform_indices = @transform_6, window_bounds = array<i64: 1, 256>}, {pipeline_mode = #tpu.pipeline_mode<synchronous>, transform_indices = @transform_7, window_bounds = array<i64: 1, 256>}, {pipeline_mode = #tpu.pipeline_mode<synchronous>, transform_indices = @transform_8, window_bounds = array<i64: 1, 1>}, {transform_indices = @transform_9, window_bounds = array<i64: 8, 1>}]} {
    %c0 = arith.constant 0 : index
    %c0_0 = arith.constant 0 : index
    %0 = vector.load %arg1[%c0, %c0_0] : memref<8x896xbf16, #tpu.memory_space<vmem>>, vector<8x896xbf16>
    %c0_1 = arith.constant 0 : index
    %c0_2 = arith.constant 0 : index
    %1 = vector.load %arg2[%c0_1, %c0_2] : memref<896x1024xbf16, #tpu.memory_space<vmem>>, vector<896x1024xbf16>
    %cst = arith.constant dense<0.000000e+00> : vector<8x1024xf32>
    %2 = tpu.matmul %0, %1, %cst {dimension_numbers = #tpu.dot_dimension_numbers<[1], [0], [0], [1], [0, 0, 1, 1], [], []>} : vector<8x896xbf16>, vector<896x1024xbf16>, vector<8x1024xf32> -> vector<8x1024xf32>
    %c0_3 = arith.constant 0 : index
    %c0_4 = arith.constant 0 : index
    %3 = vector.load %arg3[%c0_3, %c0_4] : memref<1x1024xf32, #tpu.memory_space<vmem>>, vector<1x1024xf32>
    %4 = vector.broadcast %3 : vector<1x1024xf32> to vector<8x1024xf32>
    %5 = arith.addf %2, %4 : vector<8x1024xf32>
    %cst_5 = arith.constant 0.000000e+00 : f32
    %6 = vector.broadcast %cst_5 : f32 to vector<8x1024xf32>
    %7 = arith.cmpf ogt, %5, %6 : vector<8x1024xf32>
    %cst_6 = arith.constant 0.00999999977 : f32
    %8 = vector.broadcast %cst_6 : f32 to vector<8x1024xf32>
    %9 = arith.mulf %8, %5 : vector<8x1024xf32>
    %10 = arith.select %7, %5, %9 : vector<8x1024xi1>, vector<8x1024xf32>
    %11 = arith.truncf %10 : vector<8x1024xf32> to vector<8x1024xbf16>
    %c0_7 = arith.constant 0 : index
    %c0_8 = arith.constant 0 : index
    %12 = vector.load %arg4[%c0_7, %c0_8] : memref<1024x512xbf16, #tpu.memory_space<vmem>>, vector<1024x512xbf16>
    %cst_9 = arith.constant dense<0.000000e+00> : vector<8x512xf32>
    %13 = tpu.matmul %11, %12, %cst_9 {dimension_numbers = #tpu.dot_dimension_numbers<[1], [0], [0], [1], [0, 0, 1, 1], [], []>} : vector<8x1024xbf16>, vector<1024x512xbf16>, vector<8x512xf32> -> vector<8x512xf32>
    %c0_10 = arith.constant 0 : index
    %c0_11 = arith.constant 0 : index
    %14 = vector.load %arg5[%c0_10, %c0_11] : memref<1x512xf32, #tpu.memory_space<vmem>>, vector<1x512xf32>
    %15 = vector.broadcast %14 : vector<1x512xf32> to vector<8x512xf32>
    %16 = arith.addf %13, %15 : vector<8x512xf32>
    %cst_12 = arith.constant 0.000000e+00 : f32
    %17 = vector.broadcast %cst_12 : f32 to vector<8x512xf32>
    %18 = arith.cmpf ogt, %16, %17 : vector<8x512xf32>
    %cst_13 = arith.constant 0.00999999977 : f32
    %19 = vector.broadcast %cst_13 : f32 to vector<8x512xf32>
    %20 = arith.mulf %19, %16 : vector<8x512xf32>
    %21 = arith.select %18, %16, %20 : vector<8x512xi1>, vector<8x512xf32>
    %22 = arith.truncf %21 : vector<8x512xf32> to vector<8x512xbf16>
    %c0_14 = arith.constant 0 : index
    %c0_15 = arith.constant 0 : index
    %23 = vector.load %arg6[%c0_14, %c0_15] : memref<512x256xbf16, #tpu.memory_space<vmem>>, vector<512x256xbf16>
    %cst_16 = arith.constant dense<0.000000e+00> : vector<8x256xf32>
    %24 = tpu.matmul %22, %23, %cst_16 {dimension_numbers = #tpu.dot_dimension_numbers<[1], [0], [0], [1], [0, 0, 1, 1], [], []>} : vector<8x512xbf16>, vector<512x256xbf16>, vector<8x256xf32> -> vector<8x256xf32>
    %c0_17 = arith.constant 0 : index
    %c0_18 = arith.constant 0 : index
    %25 = vector.load %arg7[%c0_17, %c0_18] : memref<1x256xf32, #tpu.memory_space<vmem>>, vector<1x256xf32>
    %26 = vector.broadcast %25 : vector<1x256xf32> to vector<8x256xf32>
    %27 = arith.addf %24, %26 : vector<8x256xf32>
    %cst_19 = arith.constant 0.000000e+00 : f32
    %28 = vector.broadcast %cst_19 : f32 to vector<8x256xf32>
    %29 = arith.cmpf ogt, %27, %28 : vector<8x256xf32>
    %cst_20 = arith.constant 0.00999999977 : f32
    %30 = vector.broadcast %cst_20 : f32 to vector<8x256xf32>
    %31 = arith.mulf %30, %27 : vector<8x256xf32>
    %32 = arith.select %29, %27, %31 : vector<8x256xi1>, vector<8x256xf32>
    %c0_21 = arith.constant 0 : index
    %c0_22 = arith.constant 0 : index
    %33 = vector.load %arg8[%c0_21, %c0_22] : memref<1x256xbf16, #tpu.memory_space<vmem>>, vector<1x256xbf16>
    %34 = arith.extf %33 : vector<1x256xbf16> to vector<1x256xf32>
    %35 = vector.broadcast %34 : vector<1x256xf32> to vector<8x256xf32>
    %36 = arith.mulf %32, %35 : vector<8x256xf32>
    %cst_23 = arith.constant dense<0.000000e+00> : vector<8xf32>
    %37 = vector.multi_reduction <add>, %36, %cst_23 [1] : vector<8x256xf32> to vector<8xf32>
    %38 = vector.shape_cast %37 : vector<8xf32> to vector<8x1xf32>
    %c0_24 = arith.constant 0 : index
    %c0_25 = arith.constant 0 : index
    %39 = vector.load %arg9[%c0_24, %c0_25] : memref<1x1xf32, #tpu.memory_space<vmem>>, vector<1x1xf32>
    %40 = vector.broadcast %39 : vector<1x1xf32> to vector<8x1xf32>
    %41 = arith.addf %38, %40 : vector<8x1xf32>
    %cst_26 = arith.constant 0.000000e+00 : f32
    %42 = vector.broadcast %cst_26 : f32 to vector<8x1xf32>
    %43 = arith.subf %42, %41 : vector<8x1xf32>
    %44 = math.exp %43 : vector<8x1xf32>
    %cst_27 = arith.constant 1.000000e+00 : f32
    %45 = vector.broadcast %cst_27 : f32 to vector<8x1xf32>
    %46 = arith.addf %45, %44 : vector<8x1xf32>
    %cst_28 = arith.constant 1.000000e+00 : f32
    %47 = vector.broadcast %cst_28 : f32 to vector<8x1xf32>
    %48 = arith.divf %47, %46 : vector<8x1xf32>
    %c0_29 = arith.constant 0 : index
    %c0_30 = arith.constant 0 : index
    %49 = vector.load %arg10[%c0_29, %c0_30] : memref<8x1xf32, #tpu.memory_space<vmem>>, vector<8x1xf32>
    tpu.vector_store %arg10[%c0_29, %c0_30], %48 {strides = array<i32>} : memref<8x1xf32, #tpu.memory_space<vmem>>, vector<8x1xf32>,
    return
  }
  func.func @transform_0(%arg0: i32) -> (i32, i32) {
    %c0_i32 = arith.constant 0 : i32
    %c0_i32_0 = arith.constant 0 : i32
    return %arg0, %c0_i32 : i32, i32
  }
  func.func @transform_1(%arg0: i32) -> (i32, i32) {
    %c0_i32 = arith.constant 0 : i32
    %c0_i32_0 = arith.constant 0 : i32
    %c0_i32_1 = arith.constant 0 : i32
    return %c0_i32, %c0_i32_0 : i32, i32
  }
  func.func @transform_2(%arg0: i32) -> (i32, i32) {
    %c0_i32 = arith.constant 0 : i32
    %c0_i32_0 = arith.constant 0 : i32
    %c0_i32_1 = arith.constant 0 : i32
    return %c0_i32, %c0_i32_0 : i32, i32
  }
  func.func @transform_3(%arg0: i32) -> (i32, i32) {
    %c0_i32 = arith.constant 0 : i32
    %c0_i32_0 = arith.constant 0 : i32
    %c0_i32_1 = arith.constant 0 : i32
    return %c0_i32, %c0_i32_0 : i32, i32
  }
  func.func @transform_4(%arg0: i32) -> (i32, i32) {
    %c0_i32 = arith.constant 0 : i32
    %c0_i32_0 = arith.constant 0 : i32
    %c0_i32_1 = arith.constant 0 : i32
    return %c0_i32, %c0_i32_0 : i32, i32
  }
  func.func @transform_5(%arg0: i32) -> (i32, i32) {
    %c0_i32 = arith.constant 0 : i32
    %c0_i32_0 = arith.constant 0 : i32
    %c0_i32_1 = arith.constant 0 : i32
    return %c0_i32, %c0_i32_0 : i32, i32
  }
  func.func @transform_6(%arg0: i32) -> (i32, i32) {
    %c0_i32 = arith.constant 0 : i32
    %c0_i32_0 = arith.constant 0 : i32
    %c0_i32_1 = arith.constant 0 : i32
    return %c0_i32, %c0_i32_0 : i32, i32
  }
  func.func @transform_7(%arg0: i32) -> (i32, i32) {
    %c0_i32 = arith.constant 0 : i32
    %c0_i32_0 = arith.constant 0 : i32
    %c0_i32_1 = arith.constant 0 : i32
    return %c0_i32, %c0_i32_0 : i32, i32
  }
  func.func @transform_8(%arg0: i32) -> (i32, i32) {
    %c0_i32 = arith.constant 0 : i32
    %c0_i32_0 = arith.constant 0 : i32
    %c0_i32_1 = arith.constant 0 : i32
    return %c0_i32, %c0_i32_0 : i32, i32
  }
  func.func @transform_9(%arg0: i32) -> (i32, i32) {
    %c0_i32 = arith.constant 0 : i32
    %c0_i32_0 = arith.constant 0 : i32
    return %arg0, %c0_i32 : i32, i32
  }
}

</mosaic_0001>

<llo_original>
// kernel: discriminator_forward.1
$region0: #{discriminator_forward.1}
  #allocation0 [shape = 'u32[]', space=smem, size = 0x4, offset = 0x4, fixed_abs, tag = 'smem constant byte address 0x4 - core index']
  #allocation1 [shape = 'u32[144,128]{1,0:T(1,128)}', space=vmem, size = 0x12000, scoped, tag = 'internal scratch']
  #allocation2 [shape = 'f32[1,1]{1,0:T(1,128)S(1)}', space=vmem, size = 0x200, scoped, tag = 'scoped memory for discriminator_forward.1']
  %s0 = inlined_call_operand.vmem [shape: bf16[8,896], index: 0, kind: input, shape index: {}]
  %s1 = inlined_call_operand.vmem [shape: bf16[896,1024], index: 1, kind: input, shape index: {}]
  %s2 = inlined_call_operand.vmem [shape: f32[1,1024], index: 2, kind: input, shape index: {}]
  %s3 = inlined_call_operand.vmem [shape: bf16[1024,512], index: 3, kind: input, shape index: {}]
  %s4 = inlined_call_operand.vmem [shape: f32[1,512], index: 4, kind: input, shape index: {}]
  %s5 = inlined_call_operand.vmem [shape: bf16[512,256], index: 5, kind: input, shape index: {}]
  %s6 = inlined_call_operand.vmem [shape: f32[1,256], index: 6, kind: input, shape index: {}]
  %s7 = inlined_call_operand.vmem [shape: bf16[1,256], index: 7, kind: input, shape index: {}]
  %s8 = inlined_call_operand.<no memory space> [shape: f32[1,1], index: 8, kind: input, shape index: {}]
  %s9 = inlined_call_operand.vmem [shape: f32[8,1], index: 9, kind: output, shape index: {}]
  %s10 = sld [smem:[#allocation0]]
  $region46: #{discriminator_forward.1} parent=0
    _
  %s12 = ssub.s32 1, %s10
  %s13 = scalar_select 0, %s12, %s10
  %v14 = vstv %s8
  %15 = vst [vmem:[#allocation2] sm:$0x1] %v14
  // Predicated region
  $region2: #{discriminator_forward.1} parent=0 // pred_check
    _
  $region3: #{discriminator_forward.1} parent=0 // pred_check_branch
    %17 = sbr.rel (0) target = $region5
  $region4: #{discriminator_forward.1} parent=0 // pred_region
    _
  $region5: #{discriminator_forward.1} parent=0 // pred_fallthru
    _
  // Predicated region
  $region6: #{discriminator_forward.1} parent=0 // pred_check
    _
  $region7: #{discriminator_forward.1} parent=0 // pred_check_branch
    %19 = sbr.rel (0) target = $region9
  $region8: #{discriminator_forward.1} parent=0 // pred_region
    _
  $region9: #{discriminator_forward.1} parent=0 // pred_fallthru
    _
  // Predicated region
  $region10: #{discriminator_forward.1} parent=0 // pred_check
    _
  $region11: #{discriminator_forward.1} parent=0 // pred_check_branch
    %21 = sbr.rel (0) target = $region13
  $region12: #{discriminator_forward.1} parent=0 // pred_region
    _
  $region13: #{discriminator_forward.1} parent=0 // pred_fallthru
    _
  // Predicated region
  $region14: #{discriminator_forward.1} parent=0 // pred_check
    _
  $region15: #{discriminator_forward.1} parent=0 // pred_check_branch
    %23 = sbr.rel (0) target = $region17
  $region16: #{discriminator_forward.1} parent=0 // pred_region
    _
  $region17: #{discriminator_forward.1} parent=0 // pred_fallthru
    _
  // Predicated region
  $region18: #{discriminator_forward.1} parent=0 // pred_check
    _
  $region19: #{discriminator_forward.1} parent=0 // pred_check_branch
    %25 = sbr.rel (0) target = $region21
  $region20: #{discriminator_forward.1} parent=0 // pred_region
    _
  $region21: #{discriminator_forward.1} parent=0 // pred_fallthru
    _
  // Predicated region
  $region22: #{discriminator_forward.1} parent=0 // pred_check
    _
  $region23: #{discriminator_forward.1} parent=0 // pred_check_branch
    %27 = sbr.rel (0) target = $region25
  $region24: #{discriminator_forward.1} parent=0 // pred_region
    _
  $region25: #{discriminator_forward.1} parent=0 // pred_fallthru
    _
  // Predicated region
  $region26: #{discriminator_forward.1} parent=0 // pred_check
    _
  $region27: #{discriminator_forward.1} parent=0 // pred_check_branch
    %29 = sbr.rel (0) target = $region29
  $region28: #{discriminator_forward.1} parent=0 // pred_region
    _
  $region29: #{discriminator_forward.1} parent=0 // pred_fallthru
    _
  // Predicated region
  $region30: #{discriminator_forward.1} parent=0 // pred_check
    _
  $region31: #{discriminator_forward.1} parent=0 // pred_check_branch
    %31 = sbr.rel (0) target = $region33
  $region32: #{discriminator_forward.1} parent=0 // pred_region
    _
  $region33: #{discriminator_forward.1} parent=0 // pred_fallthru
    _
  // Predicated region
  $region34: #{discriminator_forward.1} parent=0 // pred_check
    _
  $region35: #{discriminator_forward.1} parent=0 // pred_check_branch
    %33 = sbr.rel (0) target = $region37
  $region36: #{discriminator_forward.1} parent=0 // pred_region
    _
  $region37: #{discriminator_forward.1} parent=0 // pred_fallthru
    _
  %v35 = vld [vmem:[%s0] sm:$0xff]
  %v36 = vld [vmem:[%s0 + $0x8] sm:$0xff]
  %v37 = vld [vmem:[%s0 + $0x10] sm:$0xff]
  %v38 = vld [vmem:[%s0 + $0x18] sm:$0xf]
  %v39 = vld [vmem:[%s1] sm:$0xff]
  %v40 = vld [vmem:[%s1 + $0x8] sm:$0xff]
  %v41 = vld [vmem:[%s1 + $0x10] sm:$0xff]
  %v42 = vld [vmem:[%s1 + $0x18] sm:$0xff]
  %v43 = vld [vmem:[%s1 + $0x20] sm:$0xff]
  %v44 = vld [vmem:[%s1 + $0x28] sm:$0xff]
  %v45 = vld [vmem:[%s1 + $0x30] sm:$0xff]
  %v46 = vld [vmem:[%s1 + $0x38] sm:$0xff]
  %v47 = vld [vmem:[%s1 + $0x40] sm:$0xff]
  %v48 = vld [vmem:[%s1 + $0x48] sm:$0xff]
  %v49 = vld [vmem:[%s1 + $0x50] sm:$0xff]
  %v50 = vld [vmem:[%s1 + $0x58] sm:$0xff]
  %v51 = vld [vmem:[%s1 + $0x60] sm:$0xff]
  %v52 = vld [vmem:[%s1 + $0x68] sm:$0xff]
  %v53 = vld [vmem:[%s1 + $0x70] sm:$0xff]
  %v54 = vld [vmem:[%s1 + $0x78] sm:$0xff]
  %v55 = vld [vmem:[%s1 + $0x80] sm:$0xff]
  %v56 = vld [vmem:[%s1 + $0x88] sm:$0xff]
  %v57 = vld [vmem:[%s1 + $0x90] sm:$0xff]
  %v58 = vld [vmem:[%s1 + $0x98] sm:$0xff]
  %v59 = vld [vmem:[%s1 + $0xa0] sm:$0xff]
  %v60 = vld [vmem:[%s1 + $0xa8] sm:$0xff]
  %v61 = vld [vmem:[%s1 + $0xb0] sm:$0xff]
  %v62 = vld [vmem:[%s1 + $0xb8] sm:$0xff]
  %v63 = vld [vmem:[%s1 + $0xc0] sm:$0xff]
  %v64 = vld [vmem:[%s1 + $0xc8] sm:$0xff]
  %v65 = vld [vmem:[%s1 + $0xd0] sm:$0xff]
  %v66 = vld [vmem:[%s1 + $0xd8] sm:$0xff]
  %v67 = vld [vmem:[%s1 + $0xe0] sm:$0xff]
  %v68 = vld [vmem:[%s1 + $0xe8] sm:$0xff]
  %v69 = vld [vmem:[%s1 + $0xf0] sm:$0xff]
  %v70 = vld [vmem:[%s1 + $0xf8] sm:$0xff]
  %v71 = vld [vmem:[%s1 + $0x100] sm:$0xff]
  %v72 = vld [vmem:[%s1 + $0x108] sm:$0xff]
  %v73 = vld [vmem:[%s1 + $0x110] sm:$0xff]
  %v74 = vld [vmem:[%s1 + $0x118] sm:$0xff]
  %v75 = vld [vmem:[%s1 + $0x120] sm:$0xff]
  %v76 = vld [vmem:[%s1 + $0x128] sm:$0xff]
  %v77 = vld [vmem:[%s1 + $0x130] sm:$0xff]
  %v78 = vld [vmem:[%s1 + $0x138] sm:$0xff]
  %v79 = vld [vmem:[%s1 + $0x140] sm:$0xff]
  %v80 = vld [vmem:[%s1 + $0x148] sm:$0xff]
  %v81 = vld [vmem:[%s1 + $0x150] sm:$0xff]
  %v82 = vld [vmem:[%s1 + $0x158] sm:$0xff]
  %v83 = vld [vmem:[%s1 + $0x160] sm:$0xff]
  %v84 = vld [vmem:[%s1 + $0x168] sm:$0xff]
  %v85 = vld [vmem:[%s1 + $0x170] sm:$0xff]
  %v86 = vld [vmem:[%s1 + $0x178] sm:$0xff]
  %v87 = vld [vmem:[%s1 + $0x180] sm:$0xff]
  %v88 = vld [vmem:[%s1 + $0x188] sm:$0xff]
  %v89 = vld [vmem:[%s1 + $0x190] sm:$0xff]
  %v90 = vld [vmem:[%s1 + $0x198] sm:$0xff]
  %v91 = vld [vmem:[%s1 + $0x1a0] sm:$0xff]
  %v92 = vld [vmem:[%s1 + $0x1a8] sm:$0xff]
  %v93 = vld [vmem:[%s1 + $0x1b0] sm:$0xff]
  %v94 = vld [vmem:[%s1 + $0x1b8] sm:$0xff]
  %v95 = vld [vmem:[%s1 + $0x1c0] sm:$0xff]
  %v96 = vld [vmem:[%s1 + $0x1c8] sm:$0xff]
  %v97 = vld [vmem:[%s1 + $0x1d0] sm:$0xff]
  %v98 = vld [vmem:[%s1 + $0x1d8] sm:$0xff]
  %v99 = vld [vmem:[%s1 + $0x1e0] sm:$0xff]
  %v100 = vld [vmem:[%s1 + $0x1e8] sm:$0xff]
  %v101 = vld [vmem:[%s1 + $0x1f0] sm:$0xff]
  %v102 = vld [vmem:[%s1 + $0x1f8] sm:$0xff]
  %v103 = vld [vmem:[%s1 + $0x200] sm:$0xff]
  %v104 = vld [vmem:[%s1 + $0x208] sm:$0xff]
  %v105 = vld [vmem:[%s1 + $0x210] sm:$0xff]
  %v106 = vld [vmem:[%s1 + $0x218] sm:$0xff]
  %v107 = vld [vmem:[%s1 + $0x220] sm:$0xff]
  %v108 = vld [vmem:[%s1 + $0x228] sm:$0xff]
  %v109 = vld [vmem:[%s1 + $0x230] sm:$0xff]
  %v110 = vld [vmem:[%s1 + $0x238] sm:$0xff]
  %v111 = vld [vmem:[%s1 + $0x240] sm:$0xff]
  %v112 = vld [vmem:[%s1 + $0x248] sm:$0xff]
  %v113 = vld [vmem:[%s1 + $0x250] sm:$0xff]
  %v114 = vld [vmem:[%s1 + $0x258] sm:$0xff]
  %v115 = vld [vmem:[%s1 + $0x260] sm:$0xff]
  %v116 = vld [vmem:[%s1 + $0x268] sm:$0xff]
  %v117 = vld [vmem:[%s1 + $0x270] sm:$0xff]
  %v118 = vld [vmem:[%s1 + $0x278] sm:$0xff]
  %v119 = vld [vmem:[%s1 + $0x280] sm:$0xff]
  %v120 = vld [vmem:[%s1 + $0x288] sm:$0xff]
  %v121 = vld [vmem:[%s1 + $0x290] sm:$0xff]
  %v122 = vld [vmem:[%s1 + $0x298] sm:$0xff]
  %v123 = vld [vmem:[%s1 + $0x2a0] sm:$0xff]
  %v124 = vld [vmem:[%s1 + $0x2a8] sm:$0xff]
  %v125 = vld [vmem:[%s1 + $0x2b0] sm:$0xff]
  %v126 = vld [vmem:[%s1 + $0x2b8] sm:$0xff]
  %v127 = vld [vmem:[%s1 + $0x2c0] sm:$0xff]
  %v128 = vld [vmem:[%s1 + $0x2c8] sm:$0xff]
  %v129 = vld [vmem:[%s1 + $0x2d0] sm:$0xff]
  %v130 = vld [vmem:[%s1 + $0x2d8] sm:$0xff]
  %v131 = vld [vmem:[%s1 + $0x2e0] sm:$0xff]
  %v132 = vld [vmem:[%s1 + $0x2e8] sm:$0xff]
  %v133 = vld [vmem:[%s1 + $0x2f0] sm:$0xff]
  %v134 = vld [vmem:[%s1 + $0x2f8] sm:$0xff]
  %v135 = vld [vmem:[%s1 + $0x300] sm:$0xff]
  %v136 = vld [vmem:[%s1 + $0x308] sm:$0xff]
  %v137 = vld [vmem:[%s1 + $0x310] sm:$0xff]
  %v138 = vld [vmem:[%s1 + $0x318] sm:$0xff]
  %v139 = vld [vmem:[%s1 + $0x320] sm:$0xff]
  %v140 = vld [vmem:[%s1 + $0x328] sm:$0xff]
  %v141 = vld [vmem:[%s1 + $0x330] sm:$0xff]
  %v142 = vld [vmem:[%s1 + $0x338] sm:$0xff]
  %v143 = vld [vmem:[%s1 + $0x340] sm:$0xff]
  %v144 = vld [vmem:[%s1 + $0x348] sm:$0xff]
  %v145 = vld [vmem:[%s1 + $0x350] sm:$0xff]
  %v146 = vld [vmem:[%s1 + $0x358] sm:$0xff]
  %v147 = vld [vmem:[%s1 + $0x360] sm:$0xff]
  %v148 = vld [vmem:[%s1 + $0x368] sm:$0xff]
  %v149 = vld [vmem:[%s1 + $0x370] sm:$0xff]
  %v150 = vld [vmem:[%s1 + $0x378] sm:$0xff]
  %v151 = vld [vmem:[%s1 + $0x380] sm:$0xff]
  %v152 = vld [vmem:[%s1 + $0x388] sm:$0xff]
  %v153 = vld [vmem:[%s1 + $0x390] sm:$0xff]
  %v154 = vld [vmem:[%s1 + $0x398] sm:$0xff]
  %v155 = vld [vmem:[%s1 + $0x3a0] sm:$0xff]
  %v156 = vld [vmem:[%s1 + $0x3a8] sm:$0xff]
  %v157 = vld [vmem:[%s1 + $0x3b0] sm:$0xff]
  %v158 = vld [vmem:[%s1 + $0x3b8] sm:$0xff]
  %v159 = vld [vmem:[%s1 + $0x3c0] sm:$0xff]
  %v160 = vld [vmem:[%s1 + $0x3c8] sm:$0xff]
  %v161 = vld [vmem:[%s1 + $0x3d0] sm:$0xff]
  %v162 = vld [vmem:[%s1 + $0x3d8] sm:$0xff]
  %v163 = vld [vmem:[%s1 + $0x3e0] sm:$0xff]
  %v164 = vld [vmem:[%s1 + $0x3e8] sm:$0xff]
  %v165 = vld [vmem:[%s1 + $0x3f0] sm:$0xff]
  %v166 = vld [vmem:[%s1 + $0x3f8] sm:$0xff]
  %v167 = vld [vmem:[%s1 + $0x400] sm:$0xff]
  %v168 = vld [vmem:[%s1 + $0x408] sm:$0xff]
  %v169 = vld [vmem:[%s1 + $0x410] sm:$0xff]
  %v170 = vld [vmem:[%s1 + $0x418] sm:$0xff]
  %v171 = vld [vmem:[%s1 + $0x420] sm:$0xff]
  %v172 = vld [vmem:[%s1 + $0x428] sm:$0xff]
  %v173 = vld [vmem:[%s1 + $0x430] sm:$0xff]
  %v174 = vld [vmem:[%s1 + $0x438] sm:$0xff]
  %v175 = vld [vmem:[%s1 + $0x440] sm:$0xff]
  %v176 = vld [vmem:[%s1 + $0x448] sm:$0xff]
  %v177 = vld [vmem:[%s1 + $0x450] sm:$0xff]
  %v178 = vld [vmem:[%s1 + $0x458] sm:$0xff]
  %v179 = vld [vmem:[%s1 + $0x460] sm:$0xff]
  %v180 = vld [vmem:[%s1 + $0x468] sm:$0xff]
  %v181 = vld [vmem:[%s1 + $0x470] sm:$0xff]
  %v182 = vld [vmem:[%s1 + $0x478] sm:$0xff]
  %v183 = vld [vmem:[%s1 + $0x480] sm:$0xff]
  %v184 = vld [vmem:[%s1 + $0x488] sm:$0xff]
  %v185 = vld [vmem:[%s1 + $0x490] sm:$0xff]
  %v186 = vld [vmem:[%s1 + $0x498] sm:$0xff]
  %v187 = vld [vmem:[%s1 + $0x4a0] sm:$0xff]
  %v188 = vld [vmem:[%s1 + $0x4a8] sm:$0xff]
  %v189 = vld [vmem:[%s1 + $0x4b0] sm:$0xff]
  %v190 = vld [vmem:[%s1 + $0x4b8] sm:$0xff]
  %v191 = vld [vmem:[%s1 + $0x4c0] sm:$0xff]
  %v192 = vld [vmem:[%s1 + $0x4c8] sm:$0xff]
  %v193 = vld [vmem:[%s1 + $0x4d0] sm:$0xff]
  %v194 = vld [vmem:[%s1 + $0x4d8] sm:$0xff]
  %v195 = vld [vmem:[%s1 + $0x4e0] sm:$0xff]
  %v196 = vld [vmem:[%s1 + $0x4e8] sm:$0xff]
  %v197 = vld [vmem:[%s1 + $0x4f0] sm:$0xff]
  %v198 = vld [vmem:[%s1 + $0x4f8] sm:$0xff]
  %v199 = vld [vmem:[%s1 + $0x500] sm:$0xff]
  %v200 = vld [vmem:[%s1 + $0x508] sm:$0xff]
  %v201 = vld [vmem:[%s1 + $0x510] sm:$0xff]
  %v202 = vld [vmem:[%s1 + $0x518] sm:$0xff]
  %v203 = vld [vmem:[%s1 + $0x520] sm:$0xff]
  %v204 = vld [vmem:[%s1 + $0x528] sm:$0xff]
  %v205 = vld [vmem:[%s1 + $0x530] sm:$0xff]
  %v206 = vld [vmem:[%s1 + $0x538] sm:$0xff]
  %v207 = vld [vmem:[%s1 + $0x540] sm:$0xff]
  %v208 = vld [vmem:[%s1 + $0x548] sm:$0xff]
  %v209 = vld [vmem:[%s1 + $0x550] sm:$0xff]
  %v210 = vld [vmem:[%s1 + $0x558] sm:$0xff]
  %v211 = vld [vmem:[%s1 + $0x560] sm:$0xff]
  %v212 = vld [vmem:[%s1 + $0x568] sm:$0xff]
  %v213 = vld [vmem:[%s1 + $0x570] sm:$0xff]
  %v214 = vld [vmem:[%s1 + $0x578] sm:$0xff]
  %v215 = vld [vmem:[%s1 + $0x580] sm:$0xff]
  %v216 = vld [vmem:[%s1 + $0x588] sm:$0xff]
  %v217 = vld [vmem:[%s1 + $0x590] sm:$0xff]
  %v218 = vld [vmem:[%s1 + $0x598] sm:$0xff]
  %v219 = vld [vmem:[%s1 + $0x5a0] sm:$0xff]
  %v220 = vld [vmem:[%s1 + $0x5a8] sm:$0xff]
  %v221 = vld [vmem:[%s1 + $0x5b0] sm:$0xff]
  %v222 = vld [vmem:[%s1 + $0x5b8] sm:$0xff]
  %v223 = vld [vmem:[%s1 + $0x5c0] sm:$0xff]
  %v224 = vld [vmem:[%s1 + $0x5c8] sm:$0xff]
  %v225 = vld [vmem:[%s1 + $0x5d0] sm:$0xff]
  %v226 = vld [vmem:[%s1 + $0x5d8] sm:$0xff]
  %v227 = vld [vmem:[%s1 + $0x5e0] sm:$0xff]
  %v228 = vld [vmem:[%s1 + $0x5e8] sm:$0xff]
  %v229 = vld [vmem:[%s1 + $0x5f0] sm:$0xff]
  %v230 = vld [vmem:[%s1 + $0x5f8] sm:$0xff]
  %v231 = vld [vmem:[%s1 + $0x600] sm:$0xff]
  %v232 = vld [vmem:[%s1 + $0x608] sm:$0xff]
  %v233 = vld [vmem:[%s1 + $0x610] sm:$0xff]
  %v234 = vld [vmem:[%s1 + $0x618] sm:$0xff]
  %v235 = vld [vmem:[%s1 + $0x620] sm:$0xff]
  %v236 = vld [vmem:[%s1 + $0x628] sm:$0xff]
  %v237 = vld [vmem:[%s1 + $0x630] sm:$0xff]
  %v238 = vld [vmem:[%s1 + $0x638] sm:$0xff]
  %v239 = vld [vmem:[%s1 + $0x640] sm:$0xff]
  %v240 = vld [vmem:[%s1 + $0x648] sm:$0xff]
  %v241 = vld [vmem:[%s1 + $0x650] sm:$0xff]
  %v242 = vld [vmem:[%s1 + $0x658] sm:$0xff]
  %v243 = vld [vmem:[%s1 + $0x660] sm:$0xff]
  %v244 = vld [vmem:[%s1 + $0x668] sm:$0xff]
  %v245 = vld [vmem:[%s1 + $0x670] sm:$0xff]
  %v246 = vld [vmem:[%s1 + $0x678] sm:$0xff]
  %v247 = vld [vmem:[%s1 + $0x680] sm:$0xff]
  %v248 = vld [vmem:[%s1 + $0x688] sm:$0xff]
  %v249 = vld [vmem:[%s1 + $0x690] sm:$0xff]
  %v250 = vld [vmem:[%s1 + $0x698] sm:$0xff]
  %v251 = vld [vmem:[%s1 + $0x6a0] sm:$0xff]
  %v252 = vld [vmem:[%s1 + $0x6a8] sm:$0xff]
  %v253 = vld [vmem:[%s1 + $0x6b0] sm:$0xff]
  %v254 = vld [vmem:[%s1 + $0x6b8] sm:$0xff]
  %v255 = vld [vmem:[%s1 + $0x6c0] sm:$0xff]
  %v256 = vld [vmem:[%s1 + $0x6c8] sm:$0xff]
  %v257 = vld [vmem:[%s1 + $0x6d0] sm:$0xff]
  %v258 = vld [vmem:[%s1 + $0x6d8] sm:$0xff]
  %v259 = vld [vmem:[%s1 + $0x6e0] sm:$0xff]
  %v260 = vld [vmem:[%s1 + $0x6e8] sm:$0xff]
  %v261 = vld [vmem:[%s1 + $0x6f0] sm:$0xff]
  %v262 = vld [vmem:[%s1 + $0x6f8] sm:$0xff]
  %v263 = vld [vmem:[%s1 + $0x700] sm:$0xff]
  %v264 = vld [vmem:[%s1 + $0x708] sm:$0xff]
  %v265 = vld [vmem:[%s1 + $0x710] sm:$0xff]
  %v266 = vld [vmem:[%s1 + $0x718] sm:$0xff]
  %v267 = vld [vmem:[%s1 + $0x720] sm:$0xff]
  %v268 = vld [vmem:[%s1 + $0x728] sm:$0xff]
  %v269 = vld [vmem:[%s1 + $0x730] sm:$0xff]
  %v270 = vld [vmem:[%s1 + $0x738] sm:$0xff]
  %v271 = vld [vmem:[%s1 + $0x740] sm:$0xff]
  %v272 = vld [vmem:[%s1 + $0x748] sm:$0xff]
  %v273 = vld [vmem:[%s1 + $0x750] sm:$0xff]
  %v274 = vld [vmem:[%s1 + $0x758] sm:$0xff]
  %v275 = vld [vmem:[%s1 + $0x760] sm:$0xff]
  %v276 = vld [vmem:[%s1 + $0x768] sm:$0xff]
  %v277 = vld [vmem:[%s1 + $0x770] sm:$0xff]
  %v278 = vld [vmem:[%s1 + $0x778] sm:$0xff]
  %v279 = vld [vmem:[%s1 + $0x780] sm:$0xff]
  %v280 = vld [vmem:[%s1 + $0x788] sm:$0xff]
  %v281 = vld [vmem:[%s1 + $0x790] sm:$0xff]
  %v282 = vld [vmem:[%s1 + $0x798] sm:$0xff]
  %v283 = vld [vmem:[%s1 + $0x7a0] sm:$0xff]
  %v284 = vld [vmem:[%s1 + $0x7a8] sm:$0xff]
  %v285 = vld [vmem:[%s1 + $0x7b0] sm:$0xff]
  %v286 = vld [vmem:[%s1 + $0x7b8] sm:$0xff]
  %v287 = vld [vmem:[%s1 + $0x7c0] sm:$0xff]
  %v288 = vld [vmem:[%s1 + $0x7c8] sm:$0xff]
  %v289 = vld [vmem:[%s1 + $0x7d0] sm:$0xff]
  %v290 = vld [vmem:[%s1 + $0x7d8] sm:$0xff]
  %v291 = vld [vmem:[%s1 + $0x7e0] sm:$0xff]
  %v292 = vld [vmem:[%s1 + $0x7e8] sm:$0xff]
  %v293 = vld [vmem:[%s1 + $0x7f0] sm:$0xff]
  %v294 = vld [vmem:[%s1 + $0x7f8] sm:$0xff]
  %v295 = vld [vmem:[%s1 + $0x800] sm:$0xff]
  %v296 = vld [vmem:[%s1 + $0x808] sm:$0xff]
  %v297 = vld [vmem:[%s1 + $0x810] sm:$0xff]
  %v298 = vld [vmem:[%s1 + $0x818] sm:$0xff]
  %v299 = vld [vmem:[%s1 + $0x820] sm:$0xff]
  %v300 = vld [vmem:[%s1 + $0x828] sm:$0xff]
  %v301 = vld [vmem:[%s1 + $0x830] sm:$0xff]
  %v302 = vld [vmem:[%s1 + $0x838] sm:$0xff]
  %v303 = vld [vmem:[%s1 + $0x840] sm:$0xff]
  %v304 = vld [vmem:[%s1 + $0x848] sm:$0xff]
  %v305 = vld [vmem:[%s1 + $0x850] sm:$0xff]
  %v306 = vld [vmem:[%s1 + $0x858] sm:$0xff]
  %v307 = vld [vmem:[%s1 + $0x860] sm:$0xff]
  %v308 = vld [vmem:[%s1 + $0x868] sm:$0xff]
  %v309 = vld [vmem:[%s1 + $0x870] sm:$0xff]
  %v310 = vld [vmem:[%s1 + $0x878] sm:$0xff]
  %v311 = vld [vmem:[%s1 + $0x880] sm:$0xff]
  %v312 = vld [vmem:[%s1 + $0x888] sm:$0xff]
  %v313 = vld [vmem:[%s1 + $0x890] sm:$0xff]
  %v314 = vld [vmem:[%s1 + $0x898] sm:$0xff]
  %v315 = vld [vmem:[%s1 + $0x8a0] sm:$0xff]
  %v316 = vld [vmem:[%s1 + $0x8a8] sm:$0xff]
  %v317 = vld [vmem:[%s1 + $0x8b0] sm:$0xff]
  %v318 = vld [vmem:[%s1 + $0x8b8] sm:$0xff]
  %v319 = vld [vmem:[%s1 + $0x8c0] sm:$0xff]
  %v320 = vld [vmem:[%s1 + $0x8c8] sm:$0xff]
  %v321 = vld [vmem:[%s1 + $0x8d0] sm:$0xff]
  %v322 = vld [vmem:[%s1 + $0x8d8] sm:$0xff]
  %v323 = vld [vmem:[%s1 + $0x8e0] sm:$0xff]
  %v324 = vld [vmem:[%s1 + $0x8e8] sm:$0xff]
  %v325 = vld [vmem:[%s1 + $0x8f0] sm:$0xff]
  %v326 = vld [vmem:[%s1 + $0x8f8] sm:$0xff]
  %v327 = vld [vmem:[%s1 + $0x900] sm:$0xff]
  %v328 = vld [vmem:[%s1 + $0x908] sm:$0xff]
  %v329 = vld [vmem:[%s1 + $0x910] sm:$0xff]
  %v330 = vld [vmem:[%s1 + $0x918] sm:$0xff]
  %v331 = vld [vmem:[%s1 + $0x920] sm:$0xff]
  %v332 = vld [vmem:[%s1 + $0x928] sm:$0xff]
  %v333 = vld [vmem:[%s1 + $0x930] sm:$0xff]
  %v334 = vld [vmem:[%s1 + $0x938] sm:$0xff]
  %v335 = vld [vmem:[%s1 + $0x940] sm:$0xff]
  %v336 = vld [vmem:[%s1 + $0x948] sm:$0xff]
  %v337 = vld [vmem:[%s1 + $0x950] sm:$0xff]
  %v338 = vld [vmem:[%s1 + $0x958] sm:$0xff]
  %v339 = vld [vmem:[%s1 + $0x960] sm:$0xff]
  %v340 = vld [vmem:[%s1 + $0x968] sm:$0xff]
  %v341 = vld [vmem:[%s1 + $0x970] sm:$0xff]
  %v342 = vld [vmem:[%s1 + $0x978] sm:$0xff]
  %v343 = vld [vmem:[%s1 + $0x980] sm:$0xff]
  %v344 = vld [vmem:[%s1 + $0x988] sm:$0xff]
  %v345 = vld [vmem:[%s1 + $0x990] sm:$0xff]
  %v346 = vld [vmem:[%s1 + $0x998] sm:$0xff]
  %v347 = vld [vmem:[%s1 + $0x9a0] sm:$0xff]
  %v348 = vld [vmem:[%s1 + $0x9a8] sm:$0xff]
  %v349 = vld [vmem:[%s1 + $0x9b0] sm:$0xff]
  %v350 = vld [vmem:[%s1 + $0x9b8] sm:$0xff]
  %v351 = vld [vmem:[%s1 + $0x9c0] sm:$0xff]
  %v352 = vld [vmem:[%s1 + $0x9c8] sm:$0xff]
  %v353 = vld [vmem:[%s1 + $0x9d0] sm:$0xff]
  %v354 = vld [vmem:[%s1 + $0x9d8] sm:$0xff]
  %v355 = vld [vmem:[%s1 + $0x9e0] sm:$0xff]
  %v356 = vld [vmem:[%s1 + $0x9e8] sm:$0xff]
  %v357 = vld [vmem:[%s1 + $0x9f0] sm:$0xff]
  %v358 = vld [vmem:[%s1 + $0x9f8] sm:$0xff]
  %v359 = vld [vmem:[%s1 + $0xa00] sm:$0xff]
  %v360 = vld [vmem:[%s1 + $0xa08] sm:$0xff]
  %v361 = vld [vmem:[%s1 + $0xa10] sm:$0xff]
  %v362 = vld [vmem:[%s1 + $0xa18] sm:$0xff]
  %v363 = vld [vmem:[%s1 + $0xa20] sm:$0xff]
  %v364 = vld [vmem:[%s1 + $0xa28] sm:$0xff]
  %v365 = vld [vmem:[%s1 + $0xa30] sm:$0xff]
  %v366 = vld [vmem:[%s1 + $0xa38] sm:$0xff]
  %v367 = vld [vmem:[%s1 + $0xa40] sm:$0xff]
  %v368 = vld [vmem:[%s1 + $0xa48] sm:$0xff]
  %v369 = vld [vmem:[%s1 + $0xa50] sm:$0xff]
  %v370 = vld [vmem:[%s1 + $0xa58] sm:$0xff]
  %v371 = vld [vmem:[%s1 + $0xa60] sm:$0xff]
  %v372 = vld [vmem:[%s1 + $0xa68] sm:$0xff]
  %v373 = vld [vmem:[%s1 + $0xa70] sm:$0xff]
  %v374 = vld [vmem:[%s1 + $0xa78] sm:$0xff]
  %v375 = vld [vmem:[%s1 + $0xa80] sm:$0xff]
  %v376 = vld [vmem:[%s1 + $0xa88] sm:$0xff]
  %v377 = vld [vmem:[%s1 + $0xa90] sm:$0xff]
  %v378 = vld [vmem:[%s1 + $0xa98] sm:$0xff]
  %v379 = vld [vmem:[%s1 + $0xaa0] sm:$0xff]
  %v380 = vld [vmem:[%s1 + $0xaa8] sm:$0xff]
  %v381 = vld [vmem:[%s1 + $0xab0] sm:$0xff]
  %v382 = vld [vmem:[%s1 + $0xab8] sm:$0xff]
  %v383 = vld [vmem:[%s1 + $0xac0] sm:$0xff]
  %v384 = vld [vmem:[%s1 + $0xac8] sm:$0xff]
  %v385 = vld [vmem:[%s1 + $0xad0] sm:$0xff]
  %v386 = vld [vmem:[%s1 + $0xad8] sm:$0xff]
  %v387 = vld [vmem:[%s1 + $0xae0] sm:$0xff]
  %v388 = vld [vmem:[%s1 + $0xae8] sm:$0xff]
  %v389 = vld [vmem:[%s1 + $0xaf0] sm:$0xff]
  %v390 = vld [vmem:[%s1 + $0xaf8] sm:$0xff]
  %v391 = vld [vmem:[%s1 + $0xb00] sm:$0xff]
  %v392 = vld [vmem:[%s1 + $0xb08] sm:$0xff]
  %v393 = vld [vmem:[%s1 + $0xb10] sm:$0xff]
  %v394 = vld [vmem:[%s1 + $0xb18] sm:$0xff]
  %v395 = vld [vmem:[%s1 + $0xb20] sm:$0xff]
  %v396 = vld [vmem:[%s1 + $0xb28] sm:$0xff]
  %v397 = vld [vmem:[%s1 + $0xb30] sm:$0xff]
  %v398 = vld [vmem:[%s1 + $0xb38] sm:$0xff]
  %v399 = vld [vmem:[%s1 + $0xb40] sm:$0xff]
  %v400 = vld [vmem:[%s1 + $0xb48] sm:$0xff]
  %v401 = vld [vmem:[%s1 + $0xb50] sm:$0xff]
  %v402 = vld [vmem:[%s1 + $0xb58] sm:$0xff]
  %v403 = vld [vmem:[%s1 + $0xb60] sm:$0xff]
  %v404 = vld [vmem:[%s1 + $0xb68] sm:$0xff]
  %v405 = vld [vmem:[%s1 + $0xb70] sm:$0xff]
  %v406 = vld [vmem:[%s1 + $0xb78] sm:$0xff]
  %v407 = vld [vmem:[%s1 + $0xb80] sm:$0xff]
  %v408 = vld [vmem:[%s1 + $0xb88] sm:$0xff]
  %v409 = vld [vmem:[%s1 + $0xb90] sm:$0xff]
  %v410 = vld [vmem:[%s1 + $0xb98] sm:$0xff]
  %v411 = vld [vmem:[%s1 + $0xba0] sm:$0xff]
  %v412 = vld [vmem:[%s1 + $0xba8] sm:$0xff]
  %v413 = vld [vmem:[%s1 + $0xbb0] sm:$0xff]
  %v414 = vld [vmem:[%s1 + $0xbb8] sm:$0xff]
  %v415 = vld [vmem:[%s1 + $0xbc0] sm:$0xff]
  %v416 = vld [vmem:[%s1 + $0xbc8] sm:$0xff]
  %v417 = vld [vmem:[%s1 + $0xbd0] sm:$0xff]
  %v418 = vld [vmem:[%s1 + $0xbd8] sm:$0xff]
  %v419 = vld [vmem:[%s1 + $0xbe0] sm:$0xff]
  %v420 = vld [vmem:[%s1 + $0xbe8] sm:$0xff]
  %v421 = vld [vmem:[%s1 + $0xbf0] sm:$0xff]
  %v422 = vld [vmem:[%s1 + $0xbf8] sm:$0xff]
  %v423 = vld [vmem:[%s1 + $0xc00] sm:$0xff]
  %v424 = vld [vmem:[%s1 + $0xc08] sm:$0xff]
  %v425 = vld [vmem:[%s1 + $0xc10] sm:$0xff]
  %v426 = vld [vmem:[%s1 + $0xc18] sm:$0xff]
  %v427 = vld [vmem:[%s1 + $0xc20] sm:$0xff]
  %v428 = vld [vmem:[%s1 + $0xc28] sm:$0xff]
  %v429 = vld [vmem:[%s1 + $0xc30] sm:$0xff]
  %v430 = vld [vmem:[%s1 + $0xc38] sm:$0xff]
  %v431 = vld [vmem:[%s1 + $0xc40] sm:$0xff]
  %v432 = vld [vmem:[%s1 + $0xc48] sm:$0xff]
  %v433 = vld [vmem:[%s1 + $0xc50] sm:$0xff]
  %v434 = vld [vmem:[%s1 + $0xc58] sm:$0xff]
  %v435 = vld [vmem:[%s1 + $0xc60] sm:$0xff]
  %v436 = vld [vmem:[%s1 + $0xc68] sm:$0xff]
  %v437 = vld [vmem:[%s1 + $0xc70] sm:$0xff]
  %v438 = vld [vmem:[%s1 + $0xc78] sm:$0xff]
  %v439 = vld [vmem:[%s1 + $0xc80] sm:$0xff]
  %v440 = vld [vmem:[%s1 + $0xc88] sm:$0xff]
  %v441 = vld [vmem:[%s1 + $0xc90] sm:$0xff]
  %v442 = vld [vmem:[%s1 + $0xc98] sm:$0xff]
  %v443 = vld [vmem:[%s1 + $0xca0] sm:$0xff]
  %v444 = vld [vmem:[%s1 + $0xca8] sm:$0xff]
  %v445 = vld [vmem:[%s1 + $0xcb0] sm:$0xff]
  %v446 = vld [vmem:[%s1 + $0xcb8] sm:$0xff]
  %v447 = vld [vmem:[%s1 + $0xcc0] sm:$0xff]
  %v448 = vld [vmem:[%s1 + $0xcc8] sm:$0xff]
  %v449 = vld [vmem:[%s1 + $0xcd0] sm:$0xff]
  %v450 = vld [vmem:[%s1 + $0xcd8] sm:$0xff]
  %v451 = vld [vmem:[%s1 + $0xce0] sm:$0xff]
  %v452 = vld [vmem:[%s1 + $0xce8] sm:$0xff]
  %v453 = vld [vmem:[%s1 + $0xcf0] sm:$0xff]
  %v454 = vld [vmem:[%s1 + $0xcf8] sm:$0xff]
  %v455 = vld [vmem:[%s1 + $0xd00] sm:$0xff]
  %v456 = vld [vmem:[%s1 + $0xd08] sm:$0xff]
  %v457 = vld [vmem:[%s1 + $0xd10] sm:$0xff]
  %v458 = vld [vmem:[%s1 + $0xd18] sm:$0xff]
  %v459 = vld [vmem:[%s1 + $0xd20] sm:$0xff]
  %v460 = vld [vmem:[%s1 + $0xd28] sm:$0xff]
  %v461 = vld [vmem:[%s1 + $0xd30] sm:$0xff]
  %v462 = vld [vmem:[%s1 + $0xd38] sm:$0xff]
  %v463 = vld [vmem:[%s1 + $0xd40] sm:$0xff]
  %v464 = vld [vmem:[%s1 + $0xd48] sm:$0xff]
  %v465 = vld [vmem:[%s1 + $0xd50] sm:$0xff]
  %v466 = vld [vmem:[%s1 + $0xd58] sm:$0xff]
  %v467 = vld [vmem:[%s1 + $0xd60] sm:$0xff]
  %v468 = vld [vmem:[%s1 + $0xd68] sm:$0xff]
  %v469 = vld [vmem:[%s1 + $0xd70] sm:$0xff]
  %v470 = vld [vmem:[%s1 + $0xd78] sm:$0xff]
  %v471 = vld [vmem:[%s1 + $0xd80] sm:$0xff]
  %v472 = vld [vmem:[%s1 + $0xd88] sm:$0xff]
  %v473 = vld [vmem:[%s1 + $0xd90] sm:$0xff]
  %v474 = vld [vmem:[%s1 + $0xd98] sm:$0xff]
  %v475 = vld [vmem:[%s1 + $0xda0] sm:$0xff]
  %v476 = vld [vmem:[%s1 + $0xda8] sm:$0xff]
  %v477 = vld [vmem:[%s1 + $0xdb0] sm:$0xff]
  %v478 = vld [vmem:[%s1 + $0xdb8] sm:$0xff]
  %v479 = vld [vmem:[%s1 + $0xdc0] sm:$0xff]
  %v480 = vld [vmem:[%s1 + $0xdc8] sm:$0xff]
  %v481 = vld [vmem:[%s1 + $0xdd0] sm:$0xff]
  %v482 = vld [vmem:[%s1 + $0xdd8] sm:$0xff]
  %v483 = vld [vmem:[%s1 + $0xde0] sm:$0xff]
  %v484 = vld [vmem:[%s1 + $0xde8] sm:$0xff]
  %v485 = vld [vmem:[%s1 + $0xdf0] sm:$0xff]
  %v486 = vld [vmem:[%s1 + $0xdf8] sm:$0xff]
  %v487 = vld [vmem:[%s2] sm:$0xff]
  %v489 = vlaneseq
  %v490 = vshrl.u32 %v489, 7
  %v491 = vsub.s32 0, %v490
  %v492 = vrot.slane %v487, %v491
  %v493 = vlaneseq
  %v494 = vshrl.u32 %v493, 7
  %v495 = vsub.s32 1, %v494
  %v496 = vrot.slane %v487, %v495
  %v497 = vlaneseq
  %v498 = vshrl.u32 %v497, 7
  %v499 = vsub.s32 2, %v498
  %v500 = vrot.slane %v487, %v499
  %v501 = vlaneseq
  %v502 = vshrl.u32 %v501, 7
  %v503 = vsub.s32 3, %v502
  %v504 = vrot.slane %v487, %v503
  %v505 = vlaneseq
  %v506 = vshrl.u32 %v505, 7
  %v507 = vsub.s32 4, %v506
  %v508 = vrot.slane %v487, %v507
  %v509 = vlaneseq
  %v510 = vshrl.u32 %v509, 7
  %v511 = vsub.s32 5, %v510
  %v512 = vrot.slane %v487, %v511
  %v513 = vlaneseq
  %v514 = vshrl.u32 %v513, 7
  %v515 = vsub.s32 6, %v514
  %v516 = vrot.slane %v487, %v515
  %v517 = vlaneseq
  %v518 = vshrl.u32 %v517, 7
  %v519 = vsub.s32 7, %v518
  %v520 = vrot.slane %v487, %v519
  %v533 = vunpack.c.l.b16 %v35
  %v534 = vunpack.c.h.b16 %v35
  %v535 = vunpack.c.l.b16 %v36
  %v536 = vunpack.c.h.b16 %v36
  %v537 = vunpack.c.l.b16 %v37
  %v538 = vunpack.c.h.b16 %v37
  %v539 = vunpack.c.l.b16 %v38
  %v540 = vpack.c.b16 %v533, %v533
  %v541 = vpack.c.b16 %v534, %v534
  %v542 = vpack.c.b16 %v535, %v535
  %v543 = vpack.c.b16 %v536, %v536
  %v544 = vpack.c.b16 %v537, %v537
  %v545 = vpack.c.b16 %v538, %v538
  %v546 = vpack.c.b16 %v539, %v539
  %v1002 = vunpack.c.l.b16 %v39
  %v1003 = vunpack.c.h.b16 %v39
  %v1004 = vunpack.c.l.b16 %v40
  %v1005 = vunpack.c.h.b16 %v40
  %v1006 = vunpack.c.l.b16 %v41
  %v1007 = vunpack.c.h.b16 %v41
  %v1008 = vunpack.c.l.b16 %v42
  %v1009 = vunpack.c.h.b16 %v42
  %v1010 = vunpack.c.l.b16 %v43
  %v1011 = vunpack.c.h.b16 %v43
  %v1012 = vunpack.c.l.b16 %v44
  %v1013 = vunpack.c.h.b16 %v44
  %v1014 = vunpack.c.l.b16 %v45
  %v1015 = vunpack.c.h.b16 %v45
  %v1016 = vunpack.c.l.b16 %v46
  %v1017 = vunpack.c.h.b16 %v46
  %v1018 = vunpack.c.l.b16 %v47
  %v1019 = vunpack.c.h.b16 %v47
  %v1020 = vunpack.c.l.b16 %v48
  %v1021 = vunpack.c.h.b16 %v48
  %v1022 = vunpack.c.l.b16 %v49
  %v1023 = vunpack.c.h.b16 %v49
  %v1024 = vunpack.c.l.b16 %v50
  %v1025 = vunpack.c.h.b16 %v50
  %v1026 = vunpack.c.l.b16 %v51
  %v1027 = vunpack.c.h.b16 %v51
  %v1028 = vunpack.c.l.b16 %v52
  %v1029 = vunpack.c.h.b16 %v52
  %v1030 = vunpack.c.l.b16 %v53
  %v1031 = vunpack.c.h.b16 %v53
  %v1032 = vunpack.c.l.b16 %v54
  %v1033 = vunpack.c.h.b16 %v54
  %v1034 = vunpack.c.l.b16 %v55
  %v1035 = vunpack.c.h.b16 %v55
  %v1036 = vunpack.c.l.b16 %v56
  %v1037 = vunpack.c.h.b16 %v56
  %v1038 = vunpack.c.l.b16 %v57
  %v1039 = vunpack.c.h.b16 %v57
  %v1040 = vunpack.c.l.b16 %v58
  %v1041 = vunpack.c.h.b16 %v58
  %v1042 = vunpack.c.l.b16 %v59
  %v1043 = vunpack.c.h.b16 %v59
  %v1044 = vunpack.c.l.b16 %v60
  %v1045 = vunpack.c.h.b16 %v60
  %v1046 = vunpack.c.l.b16 %v61
  %v1047 = vunpack.c.h.b16 %v61
  %v1048 = vunpack.c.l.b16 %v62
  %v1049 = vunpack.c.h.b16 %v62
  %v1050 = vunpack.c.l.b16 %v63
  %v1051 = vunpack.c.h.b16 %v63
  %v1052 = vunpack.c.l.b16 %v64
  %v1053 = vunpack.c.h.b16 %v64
  %v1054 = vunpack.c.l.b16 %v65
  %v1055 = vunpack.c.h.b16 %v65
  %v1056 = vunpack.c.l.b16 %v66
  %v1057 = vunpack.c.h.b16 %v66
  %v1058 = vunpack.c.l.b16 %v67
  %v1059 = vunpack.c.h.b16 %v67
  %v1060 = vunpack.c.l.b16 %v68
  %v1061 = vunpack.c.h.b16 %v68
  %v1062 = vunpack.c.l.b16 %v69
  %v1063 = vunpack.c.h.b16 %v69
  %v1064 = vunpack.c.l.b16 %v70
  %v1065 = vunpack.c.h.b16 %v70
  %v1066 = vunpack.c.l.b16 %v71
  %v1067 = vunpack.c.h.b16 %v71
  %v1068 = vunpack.c.l.b16 %v72
  %v1069 = vunpack.c.h.b16 %v72
  %v1070 = vunpack.c.l.b16 %v73
  %v1071 = vunpack.c.h.b16 %v73
  %v1072 = vunpack.c.l.b16 %v74
  %v1073 = vunpack.c.h.b16 %v74
  %v1074 = vunpack.c.l.b16 %v75
  %v1075 = vunpack.c.h.b16 %v75
  %v1076 = vunpack.c.l.b16 %v76
  %v1077 = vunpack.c.h.b16 %v76
  %v1078 = vunpack.c.l.b16 %v77
  %v1079 = vunpack.c.h.b16 %v77
  %v1080 = vunpack.c.l.b16 %v78
  %v1081 = vunpack.c.h.b16 %v78
  %v1082 = vunpack.c.l.b16 %v79
  %v1083 = vunpack.c.h.b16 %v79
  %v1084 = vunpack.c.l.b16 %v80
  %v1085 = vunpack.c.h.b16 %v80
  %v1086 = vunpack.c.l.b16 %v81
  %v1087 = vunpack.c.h.b16 %v81
  %v1088 = vunpack.c.l.b16 %v82
  %v1089 = vunpack.c.h.b16 %v82
  %v1090 = vunpack.c.l.b16 %v83
  %v1091 = vunpack.c.h.b16 %v83
  %v1092 = vunpack.c.l.b16 %v84
  %v1093 = vunpack.c.h.b16 %v84
  %v1094 = vunpack.c.l.b16 %v85
  %v1095 = vunpack.c.h.b16 %v85
  %v1096 = vunpack.c.l.b16 %v86
  %v1097 = vunpack.c.h.b16 %v86
  %v1098 = vunpack.c.l.b16 %v87
  %v1099 = vunpack.c.h.b16 %v87
  %v1100 = vunpack.c.l.b16 %v88
  %v1101 = vunpack.c.h.b16 %v88
  %v1102 = vunpack.c.l.b16 %v89
  %v1103 = vunpack.c.h.b16 %v89
  %v1104 = vunpack.c.l.b16 %v90
  %v1105 = vunpack.c.h.b16 %v90
  %v1106 = vunpack.c.l.b16 %v91
  %v1107 = vunpack.c.h.b16 %v91
  %v1108 = vunpack.c.l.b16 %v92
  %v1109 = vunpack.c.h.b16 %v92
  %v1110 = vunpack.c.l.b16 %v93
  %v1111 = vunpack.c.h.b16 %v93
  %v1112 = vunpack.c.l.b16 %v94
  %v1113 = vunpack.c.h.b16 %v94
  %v1114 = vunpack.c.l.b16 %v95
  %v1115 = vunpack.c.h.b16 %v95
  %v1116 = vunpack.c.l.b16 %v96
  %v1117 = vunpack.c.h.b16 %v96
  %v1118 = vunpack.c.l.b16 %v97
  %v1119 = vunpack.c.h.b16 %v97
  %v1120 = vunpack.c.l.b16 %v98
  %v1121 = vunpack.c.h.b16 %v98
  %v1122 = vunpack.c.l.b16 %v99
  %v1123 = vunpack.c.h.b16 %v99
  %v1124 = vunpack.c.l.b16 %v100
  %v1125 = vunpack.c.h.b16 %v100
  %v1126 = vunpack.c.l.b16 %v101
  %v1127 = vunpack.c.h.b16 %v101
  %v1128 = vunpack.c.l.b16 %v102
  %v1129 = vunpack.c.h.b16 %v102
  %v1130 = vunpack.c.l.b16 %v103
  %v1131 = vunpack.c.h.b16 %v103
  %v1132 = vunpack.c.l.b16 %v104
  %v1133 = vunpack.c.h.b16 %v104
  %v1134 = vunpack.c.l.b16 %v105
  %v1135 = vunpack.c.h.b16 %v105
  %v1136 = vunpack.c.l.b16 %v106
  %v1137 = vunpack.c.h.b16 %v106
  %v1138 = vunpack.c.l.b16 %v107
  %v1139 = vunpack.c.h.b16 %v107
  %v1140 = vunpack.c.l.b16 %v108
  %v1141 = vunpack.c.h.b16 %v108
  %v1142 = vunpack.c.l.b16 %v109
  %v1143 = vunpack.c.h.b16 %v109
  %v1144 = vunpack.c.l.b16 %v110
  %v1145 = vunpack.c.h.b16 %v110
  %v1146 = vunpack.c.l.b16 %v111
  %v1147 = vunpack.c.h.b16 %v111
  %v1148 = vunpack.c.l.b16 %v112
  %v1149 = vunpack.c.h.b16 %v112
  %v1150 = vunpack.c.l.b16 %v113
  %v1151 = vunpack.c.h.b16 %v113
  %v1152 = vunpack.c.l.b16 %v114
  %v1153 = vunpack.c.h.b16 %v114
  %v1154 = vunpack.c.l.b16 %v115
  %v1155 = vunpack.c.h.b16 %v115
  %v1156 = vunpack.c.l.b16 %v116
  %v1157 = vunpack.c.h.b16 %v116
  %v1158 = vunpack.c.l.b16 %v117
  %v1159 = vunpack.c.h.b16 %v117
  %v1160 = vunpack.c.l.b16 %v118
  %v1161 = vunpack.c.h.b16 %v118
  %v1162 = vunpack.c.l.b16 %v119
  %v1163 = vunpack.c.h.b16 %v119
  %v1164 = vunpack.c.l.b16 %v120
  %v1165 = vunpack.c.h.b16 %v120
  %v1166 = vunpack.c.l.b16 %v121
  %v1167 = vunpack.c.h.b16 %v121
  %v1168 = vunpack.c.l.b16 %v122
  %v1169 = vunpack.c.h.b16 %v122
  %v1170 = vunpack.c.l.b16 %v123
  %v1171 = vunpack.c.h.b16 %v123
  %v1172 = vunpack.c.l.b16 %v124
  %v1173 = vunpack.c.h.b16 %v124
  %v1174 = vunpack.c.l.b16 %v125
  %v1175 = vunpack.c.h.b16 %v125
  %v1176 = vunpack.c.l.b16 %v126
  %v1177 = vunpack.c.h.b16 %v126
  %v1178 = vunpack.c.l.b16 %v127
  %v1179 = vunpack.c.h.b16 %v127
  %v1180 = vunpack.c.l.b16 %v128
  %v1181 = vunpack.c.h.b16 %v128
  %v1182 = vunpack.c.l.b16 %v129
  %v1183 = vunpack.c.h.b16 %v129
  %v1184 = vunpack.c.l.b16 %v130
  %v1185 = vunpack.c.h.b16 %v130
  %v1186 = vunpack.c.l.b16 %v131
  %v1187 = vunpack.c.h.b16 %v131
  %v1188 = vunpack.c.l.b16 %v132
  %v1189 = vunpack.c.h.b16 %v132
  %v1190 = vunpack.c.l.b16 %v133
  %v1191 = vunpack.c.h.b16 %v133
  %v1192 = vunpack.c.l.b16 %v134
  %v1193 = vunpack.c.h.b16 %v134
  %v1194 = vunpack.c.l.b16 %v135
  %v1195 = vunpack.c.h.b16 %v135
  %v1196 = vunpack.c.l.b16 %v136
  %v1197 = vunpack.c.h.b16 %v136
  %v1198 = vunpack.c.l.b16 %v137
  %v1199 = vunpack.c.h.b16 %v137
  %v1200 = vunpack.c.l.b16 %v138
  %v1201 = vunpack.c.h.b16 %v138
  %v1202 = vunpack.c.l.b16 %v139
  %v1203 = vunpack.c.h.b16 %v139
  %v1204 = vunpack.c.l.b16 %v140
  %v1205 = vunpack.c.h.b16 %v140
  %v1206 = vunpack.c.l.b16 %v141
  %v1207 = vunpack.c.h.b16 %v141
  %v1208 = vunpack.c.l.b16 %v142
  %v1209 = vunpack.c.h.b16 %v142
  %v1210 = vunpack.c.l.b16 %v143
  %v1211 = vunpack.c.h.b16 %v143
  %v1212 = vunpack.c.l.b16 %v144
  %v1213 = vunpack.c.h.b16 %v144
  %v1214 = vunpack.c.l.b16 %v145
  %v1215 = vunpack.c.h.b16 %v145
  %v1216 = vunpack.c.l.b16 %v146
  %v1217 = vunpack.c.h.b16 %v146
  %v1218 = vunpack.c.l.b16 %v147
  %v1219 = vunpack.c.h.b16 %v147
  %v1220 = vunpack.c.l.b16 %v148
  %v1221 = vunpack.c.h.b16 %v148
  %v1222 = vunpack.c.l.b16 %v149
  %v1223 = vunpack.c.h.b16 %v149
  %v1224 = vunpack.c.l.b16 %v150
  %v1225 = vunpack.c.h.b16 %v150
  %v1226 = vunpack.c.l.b16 %v151
  %v1227 = vunpack.c.h.b16 %v151
  %v1228 = vunpack.c.l.b16 %v152
  %v1229 = vunpack.c.h.b16 %v152
  %v1230 = vunpack.c.l.b16 %v153
  %v1231 = vunpack.c.h.b16 %v153
  %v1232 = vunpack.c.l.b16 %v154
  %v1233 = vunpack.c.h.b16 %v154
  %v1234 = vunpack.c.l.b16 %v155
  %v1235 = vunpack.c.h.b16 %v155
  %v1236 = vunpack.c.l.b16 %v156
  %v1237 = vunpack.c.h.b16 %v156
  %v1238 = vunpack.c.l.b16 %v157
  %v1239 = vunpack.c.h.b16 %v157
  %v1240 = vunpack.c.l.b16 %v158
  %v1241 = vunpack.c.h.b16 %v158
  %v1242 = vunpack.c.l.b16 %v159
  %v1243 = vunpack.c.h.b16 %v159
  %v1244 = vunpack.c.l.b16 %v160
  %v1245 = vunpack.c.h.b16 %v160
  %v1246 = vunpack.c.l.b16 %v161
  %v1247 = vunpack.c.h.b16 %v161
  %v1248 = vunpack.c.l.b16 %v162
  %v1249 = vunpack.c.h.b16 %v162
  %v1250 = vunpack.c.l.b16 %v163
  %v1251 = vunpack.c.h.b16 %v163
  %v1252 = vunpack.c.l.b16 %v164
  %v1253 = vunpack.c.h.b16 %v164
  %v1254 = vunpack.c.l.b16 %v165
  %v1255 = vunpack.c.h.b16 %v165
  %v1256 = vunpack.c.l.b16 %v166
  %v1257 = vunpack.c.h.b16 %v166
  %v1258 = vunpack.c.l.b16 %v167
  %v1259 = vunpack.c.h.b16 %v167
  %v1260 = vunpack.c.l.b16 %v168
  %v1261 = vunpack.c.h.b16 %v168
  %v1262 = vunpack.c.l.b16 %v169
  %v1263 = vunpack.c.h.b16 %v169
  %v1264 = vunpack.c.l.b16 %v170
  %v1265 = vunpack.c.h.b16 %v170
  %v1266 = vunpack.c.l.b16 %v171
  %v1267 = vunpack.c.h.b16 %v171
  %v1268 = vunpack.c.l.b16 %v172
  %v1269 = vunpack.c.h.b16 %v172
  %v1270 = vunpack.c.l.b16 %v173
  %v1271 = vunpack.c.h.b16 %v173
  %v1272 = vunpack.c.l.b16 %v174
  %v1273 = vunpack.c.h.b16 %v174
  %v1274 = vunpack.c.l.b16 %v175
  %v1275 = vunpack.c.h.b16 %v175
  %v1276 = vunpack.c.l.b16 %v176
  %v1277 = vunpack.c.h.b16 %v176
  %v1278 = vunpack.c.l.b16 %v177
  %v1279 = vunpack.c.h.b16 %v177
  %v1280 = vunpack.c.l.b16 %v178
  %v1281 = vunpack.c.h.b16 %v178
  %v1282 = vunpack.c.l.b16 %v179
  %v1283 = vunpack.c.h.b16 %v179
  %v1284 = vunpack.c.l.b16 %v180
  %v1285 = vunpack.c.h.b16 %v180
  %v1286 = vunpack.c.l.b16 %v181
  %v1287 = vunpack.c.h.b16 %v181
  %v1288 = vunpack.c.l.b16 %v182
  %v1289 = vunpack.c.h.b16 %v182
  %v1290 = vunpack.c.l.b16 %v183
  %v1291 = vunpack.c.h.b16 %v183
  %v1292 = vunpack.c.l.b16 %v184
  %v1293 = vunpack.c.h.b16 %v184
  %v1294 = vunpack.c.l.b16 %v185
  %v1295 = vunpack.c.h.b16 %v185
  %v1296 = vunpack.c.l.b16 %v186
  %v1297 = vunpack.c.h.b16 %v186
  %v1298 = vunpack.c.l.b16 %v187
  %v1299 = vunpack.c.h.b16 %v187
  %v1300 = vunpack.c.l.b16 %v188
  %v1301 = vunpack.c.h.b16 %v188
  %v1302 = vunpack.c.l.b16 %v189
  %v1303 = vunpack.c.h.b16 %v189
  %v1304 = vunpack.c.l.b16 %v190
  %v1305 = vunpack.c.h.b16 %v190
  %v1306 = vunpack.c.l.b16 %v191
  %v1307 = vunpack.c.h.b16 %v191
  %v1308 = vunpack.c.l.b16 %v192
  %v1309 = vunpack.c.h.b16 %v192
  %v1310 = vunpack.c.l.b16 %v193
  %v1311 = vunpack.c.h.b16 %v193
  %v1312 = vunpack.c.l.b16 %v194
  %v1313 = vunpack.c.h.b16 %v194
  %v1314 = vunpack.c.l.b16 %v195
  %v1315 = vunpack.c.h.b16 %v195
  %v1316 = vunpack.c.l.b16 %v196
  %v1317 = vunpack.c.h.b16 %v196
  %v1318 = vunpack.c.l.b16 %v197
  %v1319 = vunpack.c.h.b16 %v197
  %v1320 = vunpack.c.l.b16 %v198
  %v1321 = vunpack.c.h.b16 %v198
  %v1322 = vunpack.c.l.b16 %v199
  %v1323 = vunpack.c.h.b16 %v199
  %v1324 = vunpack.c.l.b16 %v200
  %v1325 = vunpack.c.h.b16 %v200
  %v1326 = vunpack.c.l.b16 %v201
  %v1327 = vunpack.c.h.b16 %v201
  %v1328 = vunpack.c.l.b16 %v202
  %v1329 = vunpack.c.h.b16 %v202
  %v1330 = vunpack.c.l.b16 %v203
  %v1331 = vunpack.c.h.b16 %v203
  %v1332 = vunpack.c.l.b16 %v204
  %v1333 = vunpack.c.h.b16 %v204
  %v1334 = vunpack.c.l.b16 %v205
  %v1335 = vunpack.c.h.b16 %v205
  %v1336 = vunpack.c.l.b16 %v206
  %v1337 = vunpack.c.h.b16 %v206
  %v1338 = vunpack.c.l.b16 %v207
  %v1339 = vunpack.c.h.b16 %v207
  %v1340 = vunpack.c.l.b16 %v208
  %v1341 = vunpack.c.h.b16 %v208
  %v1342 = vunpack.c.l.b16 %v209
  %v1343 = vunpack.c.h.b16 %v209
  %v1344 = vunpack.c.l.b16 %v210
  %v1345 = vunpack.c.h.b16 %v210
  %v1346 = vunpack.c.l.b16 %v211
  %v1347 = vunpack.c.h.b16 %v211
  %v1348 = vunpack.c.l.b16 %v212
  %v1349 = vunpack.c.h.b16 %v212
  %v1350 = vunpack.c.l.b16 %v213
  %v1351 = vunpack.c.h.b16 %v213
  %v1352 = vunpack.c.l.b16 %v214
  %v1353 = vunpack.c.h.b16 %v214
  %v1354 = vunpack.c.l.b16 %v215
  %v1355 = vunpack.c.h.b16 %v215
  %v1356 = vunpack.c.l.b16 %v216
  %v1357 = vunpack.c.h.b16 %v216
  %v1358 = vunpack.c.l.b16 %v217
  %v1359 = vunpack.c.h.b16 %v217
  %v1360 = vunpack.c.l.b16 %v218
  %v1361 = vunpack.c.h.b16 %v218
  %v1362 = vunpack.c.l.b16 %v219
  %v1363 = vunpack.c.h.b16 %v219
  %v1364 = vunpack.c.l.b16 %v220
  %v1365 = vunpack.c.h.b16 %v220
  %v1366 = vunpack.c.l.b16 %v221
  %v1367 = vunpack.c.h.b16 %v221
  %v1368 = vunpack.c.l.b16 %v222
  %v1369 = vunpack.c.h.b16 %v222
  %v1370 = vunpack.c.l.b16 %v223
  %v1371 = vunpack.c.h.b16 %v223
  %v1372 = vunpack.c.l.b16 %v224
  %v1373 = vunpack.c.h.b16 %v224
  %v1374 = vunpack.c.l.b16 %v225
  %v1375 = vunpack.c.h.b16 %v225
  %v1376 = vunpack.c.l.b16 %v226
  %v1377 = vunpack.c.h.b16 %v226
  %v1378 = vunpack.c.l.b16 %v227
  %v1379 = vunpack.c.h.b16 %v227
  %v1380 = vunpack.c.l.b16 %v228
  %v1381 = vunpack.c.h.b16 %v228
  %v1382 = vunpack.c.l.b16 %v229
  %v1383 = vunpack.c.h.b16 %v229
  %v1384 = vunpack.c.l.b16 %v230
  %v1385 = vunpack.c.h.b16 %v230
  %v1386 = vunpack.c.l.b16 %v231
  %v1387 = vunpack.c.h.b16 %v231
  %v1388 = vunpack.c.l.b16 %v232
  %v1389 = vunpack.c.h.b16 %v232
  %v1390 = vunpack.c.l.b16 %v233
  %v1391 = vunpack.c.h.b16 %v233
  %v1392 = vunpack.c.l.b16 %v234
  %v1393 = vunpack.c.h.b16 %v234
  %v1394 = vunpack.c.l.b16 %v235
  %v1395 = vunpack.c.h.b16 %v235
  %v1396 = vunpack.c.l.b16 %v236
  %v1397 = vunpack.c.h.b16 %v236
  %v1398 = vunpack.c.l.b16 %v237
  %v1399 = vunpack.c.h.b16 %v237
  %v1400 = vunpack.c.l.b16 %v238
  %v1401 = vunpack.c.h.b16 %v238
  %v1402 = vunpack.c.l.b16 %v239
  %v1403 = vunpack.c.h.b16 %v239
  %v1404 = vunpack.c.l.b16 %v240
  %v1405 = vunpack.c.h.b16 %v240
  %v1406 = vunpack.c.l.b16 %v241
  %v1407 = vunpack.c.h.b16 %v241
  %v1408 = vunpack.c.l.b16 %v242
  %v1409 = vunpack.c.h.b16 %v242
  %v1410 = vunpack.c.l.b16 %v243
  %v1411 = vunpack.c.h.b16 %v243
  %v1412 = vunpack.c.l.b16 %v244
  %v1413 = vunpack.c.h.b16 %v244
  %v1414 = vunpack.c.l.b16 %v245
  %v1415 = vunpack.c.h.b16 %v245
  %v1416 = vunpack.c.l.b16 %v246
  %v1417 = vunpack.c.h.b16 %v246
  %v1418 = vunpack.c.l.b16 %v247
  %v1419 = vunpack.c.h.b16 %v247
  %v1420 = vunpack.c.l.b16 %v248
  %v1421 = vunpack.c.h.b16 %v248
  %v1422 = vunpack.c.l.b16 %v249
  %v1423 = vunpack.c.h.b16 %v249
  %v1424 = vunpack.c.l.b16 %v250
  %v1425 = vunpack.c.h.b16 %v250
  %v1426 = vunpack.c.l.b16 %v251
  %v1427 = vunpack.c.h.b16 %v251
  %v1428 = vunpack.c.l.b16 %v252
  %v1429 = vunpack.c.h.b16 %v252
  %v1430 = vunpack.c.l.b16 %v253
  %v1431 = vunpack.c.h.b16 %v253
  %v1432 = vunpack.c.l.b16 %v254
  %v1433 = vunpack.c.h.b16 %v254
  %v1434 = vunpack.c.l.b16 %v255
  %v1435 = vunpack.c.h.b16 %v255
  %v1436 = vunpack.c.l.b16 %v256
  %v1437 = vunpack.c.h.b16 %v256
  %v1438 = vunpack.c.l.b16 %v257
  %v1439 = vunpack.c.h.b16 %v257
  %v1440 = vunpack.c.l.b16 %v258
  %v1441 = vunpack.c.h.b16 %v258
  %v1442 = vunpack.c.l.b16 %v259
  %v1443 = vunpack.c.h.b16 %v259
  %v1444 = vunpack.c.l.b16 %v260
  %v1445 = vunpack.c.h.b16 %v260
  %v1446 = vunpack.c.l.b16 %v261
  %v1447 = vunpack.c.h.b16 %v261
  %v1448 = vunpack.c.l.b16 %v262
  %v1449 = vunpack.c.h.b16 %v262
  %v1450 = vunpack.c.l.b16 %v263
  %v1451 = vunpack.c.h.b16 %v263
  %v1452 = vunpack.c.l.b16 %v264
  %v1453 = vunpack.c.h.b16 %v264
  %v1454 = vunpack.c.l.b16 %v265
  %v1455 = vunpack.c.h.b16 %v265
  %v1456 = vunpack.c.l.b16 %v266
  %v1457 = vunpack.c.h.b16 %v266
  %v1458 = vunpack.c.l.b16 %v267
  %v1459 = vunpack.c.h.b16 %v267
  %v1460 = vunpack.c.l.b16 %v268
  %v1461 = vunpack.c.h.b16 %v268
  %v1462 = vunpack.c.l.b16 %v269
  %v1463 = vunpack.c.h.b16 %v269
  %v1464 = vunpack.c.l.b16 %v270
  %v1465 = vunpack.c.h.b16 %v270
  %v1466 = vunpack.c.l.b16 %v271
  %v1467 = vunpack.c.h.b16 %v271
  %v1468 = vunpack.c.l.b16 %v272
  %v1469 = vunpack.c.h.b16 %v272
  %v1470 = vunpack.c.l.b16 %v273
  %v1471 = vunpack.c.h.b16 %v273
  %v1472 = vunpack.c.l.b16 %v274
  %v1473 = vunpack.c.h.b16 %v274
  %v1474 = vunpack.c.l.b16 %v275
  %v1475 = vunpack.c.h.b16 %v275
  %v1476 = vunpack.c.l.b16 %v276
  %v1477 = vunpack.c.h.b16 %v276
  %v1478 = vunpack.c.l.b16 %v277
  %v1479 = vunpack.c.h.b16 %v277
  %v1480 = vunpack.c.l.b16 %v278
  %v1481 = vunpack.c.h.b16 %v278
  %v1482 = vunpack.c.l.b16 %v279
  %v1483 = vunpack.c.h.b16 %v279
  %v1484 = vunpack.c.l.b16 %v280
  %v1485 = vunpack.c.h.b16 %v280
  %v1486 = vunpack.c.l.b16 %v281
  %v1487 = vunpack.c.h.b16 %v281
  %v1488 = vunpack.c.l.b16 %v282
  %v1489 = vunpack.c.h.b16 %v282
  %v1490 = vunpack.c.l.b16 %v283
  %v1491 = vunpack.c.h.b16 %v283
  %v1492 = vunpack.c.l.b16 %v284
  %v1493 = vunpack.c.h.b16 %v284
  %v1494 = vunpack.c.l.b16 %v285
  %v1495 = vunpack.c.h.b16 %v285
  %v1496 = vunpack.c.l.b16 %v286
  %v1497 = vunpack.c.h.b16 %v286
  %v1498 = vunpack.c.l.b16 %v287
  %v1499 = vunpack.c.h.b16 %v287
  %v1500 = vunpack.c.l.b16 %v288
  %v1501 = vunpack.c.h.b16 %v288
  %v1502 = vunpack.c.l.b16 %v289
  %v1503 = vunpack.c.h.b16 %v289
  %v1504 = vunpack.c.l.b16 %v290
  %v1505 = vunpack.c.h.b16 %v290
  %v1506 = vunpack.c.l.b16 %v291
  %v1507 = vunpack.c.h.b16 %v291
  %v1508 = vunpack.c.l.b16 %v292
  %v1509 = vunpack.c.h.b16 %v292
  %v1510 = vunpack.c.l.b16 %v293
  %v1511 = vunpack.c.h.b16 %v293
  %v1512 = vunpack.c.l.b16 %v294
  %v1513 = vunpack.c.h.b16 %v294
  %v1514 = vunpack.c.l.b16 %v295
  %v1515 = vunpack.c.h.b16 %v295
  %v1516 = vunpack.c.l.b16 %v296
  %v1517 = vunpack.c.h.b16 %v296
  %v1518 = vunpack.c.l.b16 %v297
  %v1519 = vunpack.c.h.b16 %v297
  %v1520 = vunpack.c.l.b16 %v298
  %v1521 = vunpack.c.h.b16 %v298
  %v1522 = vunpack.c.l.b16 %v299
  %v1523 = vunpack.c.h.b16 %v299
  %v1524 = vunpack.c.l.b16 %v300
  %v1525 = vunpack.c.h.b16 %v300
  %v1526 = vunpack.c.l.b16 %v301
  %v1527 = vunpack.c.h.b16 %v301
  %v1528 = vunpack.c.l.b16 %v302
  %v1529 = vunpack.c.h.b16 %v302
  %v1530 = vunpack.c.l.b16 %v303
  %v1531 = vunpack.c.h.b16 %v303
  %v1532 = vunpack.c.l.b16 %v304
  %v1533 = vunpack.c.h.b16 %v304
  %v1534 = vunpack.c.l.b16 %v305
  %v1535 = vunpack.c.h.b16 %v305
  %v1536 = vunpack.c.l.b16 %v306
  %v1537 = vunpack.c.h.b16 %v306
  %v1538 = vunpack.c.l.b16 %v307
  %v1539 = vunpack.c.h.b16 %v307
  %v1540 = vunpack.c.l.b16 %v308
  %v1541 = vunpack.c.h.b16 %v308
  %v1542 = vunpack.c.l.b16 %v309
  %v1543 = vunpack.c.h.b16 %v309
  %v1544 = vunpack.c.l.b16 %v310
  %v1545 = vunpack.c.h.b16 %v310
  %v1546 = vunpack.c.l.b16 %v311
  %v1547 = vunpack.c.h.b16 %v311
  %v1548 = vunpack.c.l.b16 %v312
  %v1549 = vunpack.c.h.b16 %v312
  %v1550 = vunpack.c.l.b16 %v313
  %v1551 = vunpack.c.h.b16 %v313
  %v1552 = vunpack.c.l.b16 %v314
  %v1553 = vunpack.c.h.b16 %v314
  %v1554 = vunpack.c.l.b16 %v315
  %v1555 = vunpack.c.h.b16 %v315
  %v1556 = vunpack.c.l.b16 %v316
  %v1557 = vunpack.c.h.b16 %v316
  %v1558 = vunpack.c.l.b16 %v317
  %v1559 = vunpack.c.h.b16 %v317
  %v1560 = vunpack.c.l.b16 %v318
  %v1561 = vunpack.c.h.b16 %v318
  %v1562 = vunpack.c.l.b16 %v319
  %v1563 = vunpack.c.h.b16 %v319
  %v1564 = vunpack.c.l.b16 %v320
  %v1565 = vunpack.c.h.b16 %v320
  %v1566 = vunpack.c.l.b16 %v321
  %v1567 = vunpack.c.h.b16 %v321
  %v1568 = vunpack.c.l.b16 %v322
  %v1569 = vunpack.c.h.b16 %v322
  %v1570 = vunpack.c.l.b16 %v323
  %v1571 = vunpack.c.h.b16 %v323
  %v1572 = vunpack.c.l.b16 %v324
  %v1573 = vunpack.c.h.b16 %v324
  %v1574 = vunpack.c.l.b16 %v325
  %v1575 = vunpack.c.h.b16 %v325
  %v1576 = vunpack.c.l.b16 %v326
  %v1577 = vunpack.c.h.b16 %v326
  %v1578 = vunpack.c.l.b16 %v327
  %v1579 = vunpack.c.h.b16 %v327
  %v1580 = vunpack.c.l.b16 %v328
  %v1581 = vunpack.c.h.b16 %v328
  %v1582 = vunpack.c.l.b16 %v329
  %v1583 = vunpack.c.h.b16 %v329
  %v1584 = vunpack.c.l.b16 %v330
  %v1585 = vunpack.c.h.b16 %v330
  %v1586 = vunpack.c.l.b16 %v331
  %v1587 = vunpack.c.h.b16 %v331
  %v1588 = vunpack.c.l.b16 %v332
  %v1589 = vunpack.c.h.b16 %v332
  %v1590 = vunpack.c.l.b16 %v333
  %v1591 = vunpack.c.h.b16 %v333
  %v1592 = vunpack.c.l.b16 %v334
  %v1593 = vunpack.c.h.b16 %v334
  %v1594 = vunpack.c.l.b16 %v335
  %v1595 = vunpack.c.h.b16 %v335
  %v1596 = vunpack.c.l.b16 %v336
  %v1597 = vunpack.c.h.b16 %v336
  %v1598 = vunpack.c.l.b16 %v337
  %v1599 = vunpack.c.h.b16 %v337
  %v1600 = vunpack.c.l.b16 %v338
  %v1601 = vunpack.c.h.b16 %v338
  %v1602 = vunpack.c.l.b16 %v339
  %v1603 = vunpack.c.h.b16 %v339
  %v1604 = vunpack.c.l.b16 %v340
  %v1605 = vunpack.c.h.b16 %v340
  %v1606 = vunpack.c.l.b16 %v341
  %v1607 = vunpack.c.h.b16 %v341
  %v1608 = vunpack.c.l.b16 %v342
  %v1609 = vunpack.c.h.b16 %v342
  %v1610 = vunpack.c.l.b16 %v343
  %v1611 = vunpack.c.h.b16 %v343
  %v1612 = vunpack.c.l.b16 %v344
  %v1613 = vunpack.c.h.b16 %v344
  %v1614 = vunpack.c.l.b16 %v345
  %v1615 = vunpack.c.h.b16 %v345
  %v1616 = vunpack.c.l.b16 %v346
  %v1617 = vunpack.c.h.b16 %v346
  %v1618 = vunpack.c.l.b16 %v347
  %v1619 = vunpack.c.h.b16 %v347
  %v1620 = vunpack.c.l.b16 %v348
  %v1621 = vunpack.c.h.b16 %v348
  %v1622 = vunpack.c.l.b16 %v349
  %v1623 = vunpack.c.h.b16 %v349
  %v1624 = vunpack.c.l.b16 %v350
  %v1625 = vunpack.c.h.b16 %v350
  %v1626 = vunpack.c.l.b16 %v351
  %v1627 = vunpack.c.h.b16 %v351
  %v1628 = vunpack.c.l.b16 %v352
  %v1629 = vunpack.c.h.b16 %v352
  %v1630 = vunpack.c.l.b16 %v353
  %v1631 = vunpack.c.h.b16 %v353
  %v1632 = vunpack.c.l.b16 %v354
  %v1633 = vunpack.c.h.b16 %v354
  %v1634 = vunpack.c.l.b16 %v355
  %v1635 = vunpack.c.h.b16 %v355
  %v1636 = vunpack.c.l.b16 %v356
  %v1637 = vunpack.c.h.b16 %v356
  %v1638 = vunpack.c.l.b16 %v357
  %v1639 = vunpack.c.h.b16 %v357
  %v1640 = vunpack.c.l.b16 %v358
  %v1641 = vunpack.c.h.b16 %v358
  %v1642 = vunpack.c.l.b16 %v359
  %v1643 = vunpack.c.h.b16 %v359
  %v1644 = vunpack.c.l.b16 %v360
  %v1645 = vunpack.c.h.b16 %v360
  %v1646 = vunpack.c.l.b16 %v361
  %v1647 = vunpack.c.h.b16 %v361
  %v1648 = vunpack.c.l.b16 %v362
  %v1649 = vunpack.c.h.b16 %v362
  %v1650 = vunpack.c.l.b16 %v363
  %v1651 = vunpack.c.h.b16 %v363
  %v1652 = vunpack.c.l.b16 %v364
  %v1653 = vunpack.c.h.b16 %v364
  %v1654 = vunpack.c.l.b16 %v365
  %v1655 = vunpack.c.h.b16 %v365
  %v1656 = vunpack.c.l.b16 %v366
  %v1657 = vunpack.c.h.b16 %v366
  %v1658 = vunpack.c.l.b16 %v367
  %v1659 = vunpack.c.h.b16 %v367
  %v1660 = vunpack.c.l.b16 %v368
  %v1661 = vunpack.c.h.b16 %v368
  %v1662 = vunpack.c.l.b16 %v369
  %v1663 = vunpack.c.h.b16 %v369
  %v1664 = vunpack.c.l.b16 %v370
  %v1665 = vunpack.c.h.b16 %v370
  %v1666 = vunpack.c.l.b16 %v371
  %v1667 = vunpack.c.h.b16 %v371
  %v1668 = vunpack.c.l.b16 %v372
  %v1669 = vunpack.c.h.b16 %v372
  %v1670 = vunpack.c.l.b16 %v373
  %v1671 = vunpack.c.h.b16 %v373
  %v1672 = vunpack.c.l.b16 %v374
  %v1673 = vunpack.c.h.b16 %v374
  %v1674 = vunpack.c.l.b16 %v375
  %v1675 = vunpack.c.h.b16 %v375
  %v1676 = vunpack.c.l.b16 %v376
  %v1677 = vunpack.c.h.b16 %v376
  %v1678 = vunpack.c.l.b16 %v377
  %v1679 = vunpack.c.h.b16 %v377
  %v1680 = vunpack.c.l.b16 %v378
  %v1681 = vunpack.c.h.b16 %v378
  %v1682 = vunpack.c.l.b16 %v379
  %v1683 = vunpack.c.h.b16 %v379
  %v1684 = vunpack.c.l.b16 %v380
  %v1685 = vunpack.c.h.b16 %v380
  %v1686 = vunpack.c.l.b16 %v381
  %v1687 = vunpack.c.h.b16 %v381
  %v1688 = vunpack.c.l.b16 %v382
  %v1689 = vunpack.c.h.b16 %v382
  %v1690 = vunpack.c.l.b16 %v383
  %v1691 = vunpack.c.h.b16 %v383
  %v1692 = vunpack.c.l.b16 %v384
  %v1693 = vunpack.c.h.b16 %v384
  %v1694 = vunpack.c.l.b16 %v385
  %v1695 = vunpack.c.h.b16 %v385
  %v1696 = vunpack.c.l.b16 %v386
  %v1697 = vunpack.c.h.b16 %v386
  %v1698 = vunpack.c.l.b16 %v387
  %v1699 = vunpack.c.h.b16 %v387
  %v1700 = vunpack.c.l.b16 %v388
  %v1701 = vunpack.c.h.b16 %v388
  %v1702 = vunpack.c.l.b16 %v389
  %v1703 = vunpack.c.h.b16 %v389
  %v1704 = vunpack.c.l.b16 %v390
  %v1705 = vunpack.c.h.b16 %v390
  %v1706 = vunpack.c.l.b16 %v391
  %v1707 = vunpack.c.h.b16 %v391
  %v1708 = vunpack.c.l.b16 %v392
  %v1709 = vunpack.c.h.b16 %v392
  %v1710 = vunpack.c.l.b16 %v393
  %v1711 = vunpack.c.h.b16 %v393
  %v1712 = vunpack.c.l.b16 %v394
  %v1713 = vunpack.c.h.b16 %v394
  %v1714 = vunpack.c.l.b16 %v395
  %v1715 = vunpack.c.h.b16 %v395
  %v1716 = vunpack.c.l.b16 %v396
  %v1717 = vunpack.c.h.b16 %v396
  %v1718 = vunpack.c.l.b16 %v397
  %v1719 = vunpack.c.h.b16 %v397
  %v1720 = vunpack.c.l.b16 %v398
  %v1721 = vunpack.c.h.b16 %v398
  %v1722 = vunpack.c.l.b16 %v399
  %v1723 = vunpack.c.h.b16 %v399
  %v1724 = vunpack.c.l.b16 %v400
  %v1725 = vunpack.c.h.b16 %v400
  %v1726 = vunpack.c.l.b16 %v401
  %v1727 = vunpack.c.h.b16 %v401
  %v1728 = vunpack.c.l.b16 %v402
  %v1729 = vunpack.c.h.b16 %v402
  %v1730 = vunpack.c.l.b16 %v403
  %v1731 = vunpack.c.h.b16 %v403
  %v1732 = vunpack.c.l.b16 %v404
  %v1733 = vunpack.c.h.b16 %v404
  %v1734 = vunpack.c.l.b16 %v405
  %v1735 = vunpack.c.h.b16 %v405
  %v1736 = vunpack.c.l.b16 %v406
  %v1737 = vunpack.c.h.b16 %v406
  %v1738 = vunpack.c.l.b16 %v407
  %v1739 = vunpack.c.h.b16 %v407
  %v1740 = vunpack.c.l.b16 %v408
  %v1741 = vunpack.c.h.b16 %v408
  %v1742 = vunpack.c.l.b16 %v409
  %v1743 = vunpack.c.h.b16 %v409
  %v1744 = vunpack.c.l.b16 %v410
  %v1745 = vunpack.c.h.b16 %v410
  %v1746 = vunpack.c.l.b16 %v411
  %v1747 = vunpack.c.h.b16 %v411
  %v1748 = vunpack.c.l.b16 %v412
  %v1749 = vunpack.c.h.b16 %v412
  %v1750 = vunpack.c.l.b16 %v413
  %v1751 = vunpack.c.h.b16 %v413
  %v1752 = vunpack.c.l.b16 %v414
  %v1753 = vunpack.c.h.b16 %v414
  %v1754 = vunpack.c.l.b16 %v415
  %v1755 = vunpack.c.h.b16 %v415
  %v1756 = vunpack.c.l.b16 %v416
  %v1757 = vunpack.c.h.b16 %v416
  %v1758 = vunpack.c.l.b16 %v417
  %v1759 = vunpack.c.h.b16 %v417
  %v1760 = vunpack.c.l.b16 %v418
  %v1761 = vunpack.c.h.b16 %v418
  %v1762 = vunpack.c.l.b16 %v419
  %v1763 = vunpack.c.h.b16 %v419
  %v1764 = vunpack.c.l.b16 %v420
  %v1765 = vunpack.c.h.b16 %v420
  %v1766 = vunpack.c.l.b16 %v421
  %v1767 = vunpack.c.h.b16 %v421
  %v1768 = vunpack.c.l.b16 %v422
  %v1769 = vunpack.c.h.b16 %v422
  %v1770 = vunpack.c.l.b16 %v423
  %v1771 = vunpack.c.h.b16 %v423
  %v1772 = vunpack.c.l.b16 %v424
  %v1773 = vunpack.c.h.b16 %v424
  %v1774 = vunpack.c.l.b16 %v425
  %v1775 = vunpack.c.h.b16 %v425
  %v1776 = vunpack.c.l.b16 %v426
  %v1777 = vunpack.c.h.b16 %v426
  %v1778 = vunpack.c.l.b16 %v427
  %v1779 = vunpack.c.h.b16 %v427
  %v1780 = vunpack.c.l.b16 %v428
  %v1781 = vunpack.c.h.b16 %v428
  %v1782 = vunpack.c.l.b16 %v429
  %v1783 = vunpack.c.h.b16 %v429
  %v1784 = vunpack.c.l.b16 %v430
  %v1785 = vunpack.c.h.b16 %v430
  %v1786 = vunpack.c.l.b16 %v431
  %v1787 = vunpack.c.h.b16 %v431
  %v1788 = vunpack.c.l.b16 %v432
  %v1789 = vunpack.c.h.b16 %v432
  %v1790 = vunpack.c.l.b16 %v433
  %v1791 = vunpack.c.h.b16 %v433
  %v1792 = vunpack.c.l.b16 %v434
  %v1793 = vunpack.c.h.b16 %v434
  %v1794 = vunpack.c.l.b16 %v435
  %v1795 = vunpack.c.h.b16 %v435
  %v1796 = vunpack.c.l.b16 %v436
  %v1797 = vunpack.c.h.b16 %v436
  %v1798 = vunpack.c.l.b16 %v437
  %v1799 = vunpack.c.h.b16 %v437
  %v1800 = vunpack.c.l.b16 %v438
  %v1801 = vunpack.c.h.b16 %v438
  %v1802 = vunpack.c.l.b16 %v439
  %v1803 = vunpack.c.h.b16 %v439
  %v1804 = vunpack.c.l.b16 %v440
  %v1805 = vunpack.c.h.b16 %v440
  %v1806 = vunpack.c.l.b16 %v441
  %v1807 = vunpack.c.h.b16 %v441
  %v1808 = vunpack.c.l.b16 %v442
  %v1809 = vunpack.c.h.b16 %v442
  %v1810 = vunpack.c.l.b16 %v443
  %v1811 = vunpack.c.h.b16 %v443
  %v1812 = vunpack.c.l.b16 %v444
  %v1813 = vunpack.c.h.b16 %v444
  %v1814 = vunpack.c.l.b16 %v445
  %v1815 = vunpack.c.h.b16 %v445
  %v1816 = vunpack.c.l.b16 %v446
  %v1817 = vunpack.c.h.b16 %v446
  %v1818 = vunpack.c.l.b16 %v447
  %v1819 = vunpack.c.h.b16 %v447
  %v1820 = vunpack.c.l.b16 %v448
  %v1821 = vunpack.c.h.b16 %v448
  %v1822 = vunpack.c.l.b16 %v449
  %v1823 = vunpack.c.h.b16 %v449
  %v1824 = vunpack.c.l.b16 %v450
  %v1825 = vunpack.c.h.b16 %v450
  %v1826 = vunpack.c.l.b16 %v451
  %v1827 = vunpack.c.h.b16 %v451
  %v1828 = vunpack.c.l.b16 %v452
  %v1829 = vunpack.c.h.b16 %v452
  %v1830 = vunpack.c.l.b16 %v453
  %v1831 = vunpack.c.h.b16 %v453
  %v1832 = vunpack.c.l.b16 %v454
  %v1833 = vunpack.c.h.b16 %v454
  %v1834 = vunpack.c.l.b16 %v455
  %v1835 = vunpack.c.h.b16 %v455
  %v1836 = vunpack.c.l.b16 %v456
  %v1837 = vunpack.c.h.b16 %v456
  %v1838 = vunpack.c.l.b16 %v457
  %v1839 = vunpack.c.h.b16 %v457
  %v1840 = vunpack.c.l.b16 %v458
  %v1841 = vunpack.c.h.b16 %v458
  %v1842 = vunpack.c.l.b16 %v459
  %v1843 = vunpack.c.h.b16 %v459
  %v1844 = vunpack.c.l.b16 %v460
  %v1845 = vunpack.c.h.b16 %v460
  %v1846 = vunpack.c.l.b16 %v461
  %v1847 = vunpack.c.h.b16 %v461
  %v1848 = vunpack.c.l.b16 %v462
  %v1849 = vunpack.c.h.b16 %v462
  %v1850 = vunpack.c.l.b16 %v463
  %v1851 = vunpack.c.h.b16 %v463
  %v1852 = vunpack.c.l.b16 %v464
  %v1853 = vunpack.c.h.b16 %v464
  %v1854 = vunpack.c.l.b16 %v465
  %v1855 = vunpack.c.h.b16 %v465
  %v1856 = vunpack.c.l.b16 %v466
  %v1857 = vunpack.c.h.b16 %v466
  %v1858 = vunpack.c.l.b16 %v467
  %v1859 = vunpack.c.h.b16 %v467
  %v1860 = vunpack.c.l.b16 %v468
  %v1861 = vunpack.c.h.b16 %v468
  %v1862 = vunpack.c.l.b16 %v469
  %v1863 = vunpack.c.h.b16 %v469
  %v1864 = vunpack.c.l.b16 %v470
  %v1865 = vunpack.c.h.b16 %v470
  %v1866 = vunpack.c.l.b16 %v471
  %v1867 = vunpack.c.h.b16 %v471
  %v1868 = vunpack.c.l.b16 %v472
  %v1869 = vunpack.c.h.b16 %v472
  %v1870 = vunpack.c.l.b16 %v473
  %v1871 = vunpack.c.h.b16 %v473
  %v1872 = vunpack.c.l.b16 %v474
  %v1873 = vunpack.c.h.b16 %v474
  %v1874 = vunpack.c.l.b16 %v475
  %v1875 = vunpack.c.h.b16 %v475
  %v1876 = vunpack.c.l.b16 %v476
  %v1877 = vunpack.c.h.b16 %v476
  %v1878 = vunpack.c.l.b16 %v477
  %v1879 = vunpack.c.h.b16 %v477
  %v1880 = vunpack.c.l.b16 %v478
  %v1881 = vunpack.c.h.b16 %v478
  %v1882 = vunpack.c.l.b16 %v479
  %v1883 = vunpack.c.h.b16 %v479
  %v1884 = vunpack.c.l.b16 %v480
  %v1885 = vunpack.c.h.b16 %v480
  %v1886 = vunpack.c.l.b16 %v481
  %v1887 = vunpack.c.h.b16 %v481
  %v1888 = vunpack.c.l.b16 %v482
  %v1889 = vunpack.c.h.b16 %v482
  %v1890 = vunpack.c.l.b16 %v483
  %v1891 = vunpack.c.h.b16 %v483
  %v1892 = vunpack.c.l.b16 %v484
  %v1893 = vunpack.c.h.b16 %v484
  %v1894 = vunpack.c.l.b16 %v485
  %v1895 = vunpack.c.h.b16 %v485
  %v1896 = vunpack.c.l.b16 %v486
  %v1897 = vunpack.c.h.b16 %v486
  %v1898 = vpack.c.b16 %v1010, %v1002
  %v1899 = vpack.c.b16 %v1011, %v1003
  %v1900 = vpack.c.b16 %v1012, %v1004
  %v1901 = vpack.c.b16 %v1013, %v1005
  %v1902 = vpack.c.b16 %v1014, %v1006
  %v1903 = vpack.c.b16 %v1015, %v1007
  %v1904 = vpack.c.b16 %v1016, %v1008
  %v1905 = vpack.c.b16 %v1017, %v1009
  %v1906 = vpack.c.b16 %v1026, %v1018
  %v1907 = vpack.c.b16 %v1027, %v1019
  %v1908 = vpack.c.b16 %v1028, %v1020
  %v1909 = vpack.c.b16 %v1029, %v1021
  %v1910 = vpack.c.b16 %v1030, %v1022
  %v1911 = vpack.c.b16 %v1031, %v1023
  %v1912 = vpack.c.b16 %v1032, %v1024
  %v1913 = vpack.c.b16 %v1033, %v1025
  %v1914 = vpack.c.b16 %v1042, %v1034
  %v1915 = vpack.c.b16 %v1043, %v1035
  %v1916 = vpack.c.b16 %v1044, %v1036
  %v1917 = vpack.c.b16 %v1045, %v1037
  %v1918 = vpack.c.b16 %v1046, %v1038
  %v1919 = vpack.c.b16 %v1047, %v1039
  %v1920 = vpack.c.b16 %v1048, %v1040
  %v1921 = vpack.c.b16 %v1049, %v1041
  %v1922 = vpack.c.b16 %v1058, %v1050
  %v1923 = vpack.c.b16 %v1059, %v1051
  %v1924 = vpack.c.b16 %v1060, %v1052
  %v1925 = vpack.c.b16 %v1061, %v1053
  %v1926 = vpack.c.b16 %v1062, %v1054
  %v1927 = vpack.c.b16 %v1063, %v1055
  %v1928 = vpack.c.b16 %v1064, %v1056
  %v1929 = vpack.c.b16 %v1065, %v1057
  %v1930 = vpack.c.b16 %v1074, %v1066
  %v1931 = vpack.c.b16 %v1075, %v1067
  %v1932 = vpack.c.b16 %v1076, %v1068
  %v1933 = vpack.c.b16 %v1077, %v1069
  %v1934 = vpack.c.b16 %v1078, %v1070
  %v1935 = vpack.c.b16 %v1079, %v1071
  %v1936 = vpack.c.b16 %v1080, %v1072
  %v1937 = vpack.c.b16 %v1081, %v1073
  %v1938 = vpack.c.b16 %v1090, %v1082
  %v1939 = vpack.c.b16 %v1091, %v1083
  %v1940 = vpack.c.b16 %v1092, %v1084
  %v1941 = vpack.c.b16 %v1093, %v1085
  %v1942 = vpack.c.b16 %v1094, %v1086
  %v1943 = vpack.c.b16 %v1095, %v1087
  %v1944 = vpack.c.b16 %v1096, %v1088
  %v1945 = vpack.c.b16 %v1097, %v1089
  %v1946 = vpack.c.b16 %v1106, %v1098
  %v1947 = vpack.c.b16 %v1107, %v1099
  %v1948 = vpack.c.b16 %v1108, %v1100
  %v1949 = vpack.c.b16 %v1109, %v1101
  %v1950 = vpack.c.b16 %v1110, %v1102
  %v1951 = vpack.c.b16 %v1111, %v1103
  %v1952 = vpack.c.b16 %v1112, %v1104
  %v1953 = vpack.c.b16 %v1113, %v1105
  %v1954 = vpack.c.b16 %v1122, %v1114
  %v1955 = vpack.c.b16 %v1123, %v1115
  %v1956 = vpack.c.b16 %v1124, %v1116
  %v1957 = vpack.c.b16 %v1125, %v1117
  %v1958 = vpack.c.b16 %v1126, %v1118
  %v1959 = vpack.c.b16 %v1127, %v1119
  %v1960 = vpack.c.b16 %v1128, %v1120
  %v1961 = vpack.c.b16 %v1129, %v1121
  %v1962 = vpack.c.b16 %v1138, %v1130
  %v1963 = vpack.c.b16 %v1139, %v1131
  %v1964 = vpack.c.b16 %v1140, %v1132
  %v1965 = vpack.c.b16 %v1141, %v1133
  %v1966 = vpack.c.b16 %v1142, %v1134
  %v1967 = vpack.c.b16 %v1143, %v1135
  %v1968 = vpack.c.b16 %v1144, %v1136
  %v1969 = vpack.c.b16 %v1145, %v1137
  %v1970 = vpack.c.b16 %v1154, %v1146
  %v1971 = vpack.c.b16 %v1155, %v1147
  %v1972 = vpack.c.b16 %v1156, %v1148
  %v1973 = vpack.c.b16 %v1157, %v1149
  %v1974 = vpack.c.b16 %v1158, %v1150
  %v1975 = vpack.c.b16 %v1159, %v1151
  %v1976 = vpack.c.b16 %v1160, %v1152
  %v1977 = vpack.c.b16 %v1161, %v1153
  %v1978 = vpack.c.b16 %v1170, %v1162
  %v1979 = vpack.c.b16 %v1171, %v1163
  %v1980 = vpack.c.b16 %v1172, %v1164
  %v1981 = vpack.c.b16 %v1173, %v1165
  %v1982 = vpack.c.b16 %v1174, %v1166
  %v1983 = vpack.c.b16 %v1175, %v1167
  %v1984 = vpack.c.b16 %v1176, %v1168
  %v1985 = vpack.c.b16 %v1177, %v1169
  %v1986 = vpack.c.b16 %v1186, %v1178
  %v1987 = vpack.c.b16 %v1187, %v1179
  %v1988 = vpack.c.b16 %v1188, %v1180
  %v1989 = vpack.c.b16 %v1189, %v1181
  %v1990 = vpack.c.b16 %v1190, %v1182
  %v1991 = vpack.c.b16 %v1191, %v1183
  %v1992 = vpack.c.b16 %v1192, %v1184
  %v1993 = vpack.c.b16 %v1193, %v1185
  %v1994 = vpack.c.b16 %v1202, %v1194
  %v1995 = vpack.c.b16 %v1203, %v1195
  %v1996 = vpack.c.b16 %v1204, %v1196
  %v1997 = vpack.c.b16 %v1205, %v1197
  %v1998 = vpack.c.b16 %v1206, %v1198
  %v1999 = vpack.c.b16 %v1207, %v1199
  %v2000 = vpack.c.b16 %v1208, %v1200
  %v2001 = vpack.c.b16 %v1209, %v1201
  %v2002 = vpack.c.b16 %v1218, %v1210
  %v2003 = vpack.c.b16 %v1219, %v1211
  %v2004 = vpack.c.b16 %v1220, %v1212
  %v2005 = vpack.c.b16 %v1221, %v1213
  %v2006 = vpack.c.b16 %v1222, %v1214
  %v2007 = vpack.c.b16 %v1223, %v1215
  %v2008 = vpack.c.b16 %v1224, %v1216
  %v2009 = vpack.c.b16 %v1225, %v1217
  %v2010 = vpack.c.b16 %v1234, %v1226
  %v2011 = vpack.c.b16 %v1235, %v1227
  %v2012 = vpack.c.b16 %v1236, %v1228
  %v2013 = vpack.c.b16 %v1237, %v1229
  %v2014 = vpack.c.b16 %v1238, %v1230
  %v2015 = vpack.c.b16 %v1239, %v1231
  %v2016 = vpack.c.b16 %v1240, %v1232
  %v2017 = vpack.c.b16 %v1241, %v1233
  %v2018 = vpack.c.b16 %v1250, %v1242
  %v2019 = vpack.c.b16 %v1251, %v1243
  %v2020 = vpack.c.b16 %v1252, %v1244
  %v2021 = vpack.c.b16 %v1253, %v1245
  %v2022 = vpack.c.b16 %v1254, %v1246
  %v2023 = vpack.c.b16 %v1255, %v1247
  %v2024 = vpack.c.b16 %v1256, %v1248
  %v2025 = vpack.c.b16 %v1257, %v1249
  %v2026 = vpack.c.b16 %v1266, %v1258
  %v2027 = vpack.c.b16 %v1267, %v1259
  %v2028 = vpack.c.b16 %v1268, %v1260
  %v2029 = vpack.c.b16 %v1269, %v1261
  %v2030 = vpack.c.b16 %v1270, %v1262
  %v2031 = vpack.c.b16 %v1271, %v1263
  %v2032 = vpack.c.b16 %v1272, %v1264
  %v2033 = vpack.c.b16 %v1273, %v1265
  %v2034 = vpack.c.b16 %v1282, %v1274
  %v2035 = vpack.c.b16 %v1283, %v1275
  %v2036 = vpack.c.b16 %v1284, %v1276
  %v2037 = vpack.c.b16 %v1285, %v1277
  %v2038 = vpack.c.b16 %v1286, %v1278
  %v2039 = vpack.c.b16 %v1287, %v1279
  %v2040 = vpack.c.b16 %v1288, %v1280
  %v2041 = vpack.c.b16 %v1289, %v1281
  %v2042 = vpack.c.b16 %v1298, %v1290
  %v2043 = vpack.c.b16 %v1299, %v1291
  %v2044 = vpack.c.b16 %v1300, %v1292
  %v2045 = vpack.c.b16 %v1301, %v1293
  %v2046 = vpack.c.b16 %v1302, %v1294
  %v2047 = vpack.c.b16 %v1303, %v1295
  %v2048 = vpack.c.b16 %v1304, %v1296
  %v2049 = vpack.c.b16 %v1305, %v1297
  %v2050 = vpack.c.b16 %v1314, %v1306
  %v2051 = vpack.c.b16 %v1315, %v1307
  %v2052 = vpack.c.b16 %v1316, %v1308
  %v2053 = vpack.c.b16 %v1317, %v1309
  %v2054 = vpack.c.b16 %v1318, %v1310
  %v2055 = vpack.c.b16 %v1319, %v1311
  %v2056 = vpack.c.b16 %v1320, %v1312
  %v2057 = vpack.c.b16 %v1321, %v1313
  %v2058 = vpack.c.b16 %v1330, %v1322
  %v2059 = vpack.c.b16 %v1331, %v1323
  %v2060 = vpack.c.b16 %v1332, %v1324
  %v2061 = vpack.c.b16 %v1333, %v1325
  %v2062 = vpack.c.b16 %v1334, %v1326
  %v2063 = vpack.c.b16 %v1335, %v1327
  %v2064 = vpack.c.b16 %v1336, %v1328
  %v2065 = vpack.c.b16 %v1337, %v1329
  %v2066 = vpack.c.b16 %v1346, %v1338
  %v2067 = vpack.c.b16 %v1347, %v1339
  %v2068 = vpack.c.b16 %v1348, %v1340
  %v2069 = vpack.c.b16 %v1349, %v1341
  %v2070 = vpack.c.b16 %v1350, %v1342
  %v2071 = vpack.c.b16 %v1351, %v1343
  %v2072 = vpack.c.b16 %v1352, %v1344
  %v2073 = vpack.c.b16 %v1353, %v1345
  %v2074 = vpack.c.b16 %v1362, %v1354
  %v2075 = vpack.c.b16 %v1363, %v1355
  %v2076 = vpack.c.b16 %v1364, %v1356
  %v2077 = vpack.c.b16 %v1365, %v1357
  %v2078 = vpack.c.b16 %v1366, %v1358
  %v2079 = vpack.c.b16 %v1367, %v1359
  %v2080 = vpack.c.b16 %v1368, %v1360
  %v2081 = vpack.c.b16 %v1369, %v1361
  %v2082 = vpack.c.b16 %v1378, %v1370
  %v2083 = vpack.c.b16 %v1379, %v1371
  %v2084 = vpack.c.b16 %v1380, %v1372
  %v2085 = vpack.c.b16 %v1381, %v1373
  %v2086 = vpack.c.b16 %v1382, %v1374
  %v2087 = vpack.c.b16 %v1383, %v1375
  %v2088 = vpack.c.b16 %v1384, %v1376
  %v2089 = vpack.c.b16 %v1385, %v1377
  %v2090 = vpack.c.b16 %v1394, %v1386
  %v2091 = vpack.c.b16 %v1395, %v1387
  %v2092 = vpack.c.b16 %v1396, %v1388
  %v2093 = vpack.c.b16 %v1397, %v1389
  %v2094 = vpack.c.b16 %v1398, %v1390
  %v2095 = vpack.c.b16 %v1399, %v1391
  %v2096 = vpack.c.b16 %v1400, %v1392
  %v2097 = vpack.c.b16 %v1401, %v1393
  %v2098 = vpack.c.b16 %v1410, %v1402
  %v2099 = vpack.c.b16 %v1411, %v1403
  %v2100 = vpack.c.b16 %v1412, %v1404
  %v2101 = vpack.c.b16 %v1413, %v1405
  %v2102 = vpack.c.b16 %v1414, %v1406
  %v2103 = vpack.c.b16 %v1415, %v1407
  %v2104 = vpack.c.b16 %v1416, %v1408
  %v2105 = vpack.c.b16 %v1417, %v1409
  %v2106 = vpack.c.b16 %v1426, %v1418
  %v2107 = vpack.c.b16 %v1427, %v1419
  %v2108 = vpack.c.b16 %v1428, %v1420
  %v2109 = vpack.c.b16 %v1429, %v1421
  %v2110 = vpack.c.b16 %v1430, %v1422
  %v2111 = vpack.c.b16 %v1431, %v1423
  %v2112 = vpack.c.b16 %v1432, %v1424
  %v2113 = vpack.c.b16 %v1433, %v1425
  %v2114 = vpack.c.b16 %v1442, %v1434
  %v2115 = vpack.c.b16 %v1443, %v1435
  %v2116 = vpack.c.b16 %v1444, %v1436
  %v2117 = vpack.c.b16 %v1445, %v1437
  %v2118 = vpack.c.b16 %v1446, %v1438
  %v2119 = vpack.c.b16 %v1447, %v1439
  %v2120 = vpack.c.b16 %v1448, %v1440
  %v2121 = vpack.c.b16 %v1449, %v1441
  %v2122 = vpack.c.b16 %v1458, %v1450
  %v2123 = vpack.c.b16 %v1459, %v1451
  %v2124 = vpack.c.b16 %v1460, %v1452
  %v2125 = vpack.c.b16 %v1461, %v1453
  %v2126 = vpack.c.b16 %v1462, %v1454
  %v2127 = vpack.c.b16 %v1463, %v1455
  %v2128 = vpack.c.b16 %v1464, %v1456
  %v2129 = vpack.c.b16 %v1465, %v1457
  %v2130 = vpack.c.b16 %v1474, %v1466
  %v2131 = vpack.c.b16 %v1475, %v1467
  %v2132 = vpack.c.b16 %v1476, %v1468
  %v2133 = vpack.c.b16 %v1477, %v1469
  %v2134 = vpack.c.b16 %v1478, %v1470
  %v2135 = vpack.c.b16 %v1479, %v1471
  %v2136 = vpack.c.b16 %v1480, %v1472
  %v2137 = vpack.c.b16 %v1481, %v1473
  %v2138 = vpack.c.b16 %v1490, %v1482
  %v2139 = vpack.c.b16 %v1491, %v1483
  %v2140 = vpack.c.b16 %v1492, %v1484
  %v2141 = vpack.c.b16 %v1493, %v1485
  %v2142 = vpack.c.b16 %v1494, %v1486
  %v2143 = vpack.c.b16 %v1495, %v1487
  %v2144 = vpack.c.b16 %v1496, %v1488
  %v2145 = vpack.c.b16 %v1497, %v1489
  %v2146 = vpack.c.b16 %v1506, %v1498
  %v2147 = vpack.c.b16 %v1507, %v1499
  %v2148 = vpack.c.b16 %v1508, %v1500
  %v2149 = vpack.c.b16 %v1509, %v1501
  %v2150 = vpack.c.b16 %v1510, %v1502
  %v2151 = vpack.c.b16 %v1511, %v1503
  %v2152 = vpack.c.b16 %v1512, %v1504
  %v2153 = vpack.c.b16 %v1513, %v1505
  %v2154 = vpack.c.b16 %v1522, %v1514
  %v2155 = vpack.c.b16 %v1523, %v1515
  %v2156 = vpack.c.b16 %v1524, %v1516
  %v2157 = vpack.c.b16 %v1525, %v1517
  %v2158 = vpack.c.b16 %v1526, %v1518
  %v2159 = vpack.c.b16 %v1527, %v1519
  %v2160 = vpack.c.b16 %v1528, %v1520
  %v2161 = vpack.c.b16 %v1529, %v1521
  %v2162 = vpack.c.b16 %v1538, %v1530
  %v2163 = vpack.c.b16 %v1539, %v1531
  %v2164 = vpack.c.b16 %v1540, %v1532
  %v2165 = vpack.c.b16 %v1541, %v1533
  %v2166 = vpack.c.b16 %v1542, %v1534
  %v2167 = vpack.c.b16 %v1543, %v1535
  %v2168 = vpack.c.b16 %v1544, %v1536
  %v2169 = vpack.c.b16 %v1545, %v1537
  %v2170 = vpack.c.b16 %v1554, %v1546
  %v2171 = vpack.c.b16 %v1555, %v1547
  %v2172 = vpack.c.b16 %v1556, %v1548
  %v2173 = vpack.c.b16 %v1557, %v1549
  %v2174 = vpack.c.b16 %v1558, %v1550
  %v2175 = vpack.c.b16 %v1559, %v1551
  %v2176 = vpack.c.b16 %v1560, %v1552
  %v2177 = vpack.c.b16 %v1561, %v1553
  %v2178 = vpack.c.b16 %v1570, %v1562
  %v2179 = vpack.c.b16 %v1571, %v1563
  %v2180 = vpack.c.b16 %v1572, %v1564
  %v2181 = vpack.c.b16 %v1573, %v1565
  %v2182 = vpack.c.b16 %v1574, %v1566
  %v2183 = vpack.c.b16 %v1575, %v1567
  %v2184 = vpack.c.b16 %v1576, %v1568
  %v2185 = vpack.c.b16 %v1577, %v1569
  %v2186 = vpack.c.b16 %v1586, %v1578
  %v2187 = vpack.c.b16 %v1587, %v1579
  %v2188 = vpack.c.b16 %v1588, %v1580
  %v2189 = vpack.c.b16 %v1589, %v1581
  %v2190 = vpack.c.b16 %v1590, %v1582
  %v2191 = vpack.c.b16 %v1591, %v1583
  %v2192 = vpack.c.b16 %v1592, %v1584
  %v2193 = vpack.c.b16 %v1593, %v1585
  %v2194 = vpack.c.b16 %v1602, %v1594
  %v2195 = vpack.c.b16 %v1603, %v1595
  %v2196 = vpack.c.b16 %v1604, %v1596
  %v2197 = vpack.c.b16 %v1605, %v1597
  %v2198 = vpack.c.b16 %v1606, %v1598
  %v2199 = vpack.c.b16 %v1607, %v1599
  %v2200 = vpack.c.b16 %v1608, %v1600
  %v2201 = vpack.c.b16 %v1609, %v1601
  %v2202 = vpack.c.b16 %v1618, %v1610
  %v2203 = vpack.c.b16 %v1619, %v1611
  %v2204 = vpack.c.b16 %v1620, %v1612
  %v2205 = vpack.c.b16 %v1621, %v1613
  %v2206 = vpack.c.b16 %v1622, %v1614
  %v2207 = vpack.c.b16 %v1623, %v1615
  %v2208 = vpack.c.b16 %v1624, %v1616
  %v2209 = vpack.c.b16 %v1625, %v1617
  %v2210 = vpack.c.b16 %v1634, %v1626
  %v2211 = vpack.c.b16 %v1635, %v1627
  %v2212 = vpack.c.b16 %v1636, %v1628
  %v2213 = vpack.c.b16 %v1637, %v1629
  %v2214 = vpack.c.b16 %v1638, %v1630
  %v2215 = vpack.c.b16 %v1639, %v1631
  %v2216 = vpack.c.b16 %v1640, %v1632
  %v2217 = vpack.c.b16 %v1641, %v1633
  %v2218 = vpack.c.b16 %v1650, %v1642
  %v2219 = vpack.c.b16 %v1651, %v1643
  %v2220 = vpack.c.b16 %v1652, %v1644
  %v2221 = vpack.c.b16 %v1653, %v1645
  %v2222 = vpack.c.b16 %v1654, %v1646
  %v2223 = vpack.c.b16 %v1655, %v1647
  %v2224 = vpack.c.b16 %v1656, %v1648
  %v2225 = vpack.c.b16 %v1657, %v1649
  %v2226 = vpack.c.b16 %v1666, %v1658
  %v2227 = vpack.c.b16 %v1667, %v1659
  %v2228 = vpack.c.b16 %v1668, %v1660
  %v2229 = vpack.c.b16 %v1669, %v1661
  %v2230 = vpack.c.b16 %v1670, %v1662
  %v2231 = vpack.c.b16 %v1671, %v1663
  %v2232 = vpack.c.b16 %v1672, %v1664
  %v2233 = vpack.c.b16 %v1673, %v1665
  %v2234 = vpack.c.b16 %v1682, %v1674
  %v2235 = vpack.c.b16 %v1683, %v1675
  %v2236 = vpack.c.b16 %v1684, %v1676
  %v2237 = vpack.c.b16 %v1685, %v1677
  %v2238 = vpack.c.b16 %v1686, %v1678
  %v2239 = vpack.c.b16 %v1687, %v1679
  %v2240 = vpack.c.b16 %v1688, %v1680
  %v2241 = vpack.c.b16 %v1689, %v1681
  %v2242 = vpack.c.b16 %v1698, %v1690
  %v2243 = vpack.c.b16 %v1699, %v1691
  %v2244 = vpack.c.b16 %v1700, %v1692
  %v2245 = vpack.c.b16 %v1701, %v1693
  %v2246 = vpack.c.b16 %v1702, %v1694
  %v2247 = vpack.c.b16 %v1703, %v1695
  %v2248 = vpack.c.b16 %v1704, %v1696
  %v2249 = vpack.c.b16 %v1705, %v1697
  %v2250 = vpack.c.b16 %v1714, %v1706
  %v2251 = vpack.c.b16 %v1715, %v1707
  %v2252 = vpack.c.b16 %v1716, %v1708
  %v2253 = vpack.c.b16 %v1717, %v1709
  %v2254 = vpack.c.b16 %v1718, %v1710
  %v2255 = vpack.c.b16 %v1719, %v1711
  %v2256 = vpack.c.b16 %v1720, %v1712
  %v2257 = vpack.c.b16 %v1721, %v1713
  %v2258 = vpack.c.b16 %v1730, %v1722
  %v2259 = vpack.c.b16 %v1731, %v1723
  %v2260 = vpack.c.b16 %v1732, %v1724
  %v2261 = vpack.c.b16 %v1733, %v1725
  %v2262 = vpack.c.b16 %v1734, %v1726
  %v2263 = vpack.c.b16 %v1735, %v1727
  %v2264 = vpack.c.b16 %v1736, %v1728
  %v2265 = vpack.c.b16 %v1737, %v1729
  %v2266 = vpack.c.b16 %v1746, %v1738
  %v2267 = vpack.c.b16 %v1747, %v1739
  %v2268 = vpack.c.b16 %v1748, %v1740
  %v2269 = vpack.c.b16 %v1749, %v1741
  %v2270 = vpack.c.b16 %v1750, %v1742
  %v2271 = vpack.c.b16 %v1751, %v1743
  %v2272 = vpack.c.b16 %v1752, %v1744
  %v2273 = vpack.c.b16 %v1753, %v1745
  %v2274 = vpack.c.b16 %v1762, %v1754
  %v2275 = vpack.c.b16 %v1763, %v1755
  %v2276 = vpack.c.b16 %v1764, %v1756
  %v2277 = vpack.c.b16 %v1765, %v1757
  %v2278 = vpack.c.b16 %v1766, %v1758
  %v2279 = vpack.c.b16 %v1767, %v1759
  %v2280 = vpack.c.b16 %v1768, %v1760
  %v2281 = vpack.c.b16 %v1769, %v1761
  %v2282 = vpack.c.b16 %v1778, %v1770
  %v2283 = vpack.c.b16 %v1779, %v1771
  %v2284 = vpack.c.b16 %v1780, %v1772
  %v2285 = vpack.c.b16 %v1781, %v1773
  %v2286 = vpack.c.b16 %v1782, %v1774
  %v2287 = vpack.c.b16 %v1783, %v1775
  %v2288 = vpack.c.b16 %v1784, %v1776
  %v2289 = vpack.c.b16 %v1785, %v1777
  %v2290 = vpack.c.b16 %v1794, %v1786
  %v2291 = vpack.c.b16 %v1795, %v1787
  %v2292 = vpack.c.b16 %v1796, %v1788
  %v2293 = vpack.c.b16 %v1797, %v1789
  %v2294 = vpack.c.b16 %v1798, %v1790
  %v2295 = vpack.c.b16 %v1799, %v1791
  %v2296 = vpack.c.b16 %v1800, %v1792
  %v2297 = vpack.c.b16 %v1801, %v1793
  %v2298 = vpack.c.b16 %v1810, %v1802
  %v2299 = vpack.c.b16 %v1811, %v1803
  %v2300 = vpack.c.b16 %v1812, %v1804
  %v2301 = vpack.c.b16 %v1813, %v1805
  %v2302 = vpack.c.b16 %v1814, %v1806
  %v2303 = vpack.c.b16 %v1815, %v1807
  %v2304 = vpack.c.b16 %v1816, %v1808
  %v2305 = vpack.c.b16 %v1817, %v1809
  %v2306 = vpack.c.b16 %v1826, %v1818
  %v2307 = vpack.c.b16 %v1827, %v1819
  %v2308 = vpack.c.b16 %v1828, %v1820
  %v2309 = vpack.c.b16 %v1829, %v1821
  %v2310 = vpack.c.b16 %v1830, %v1822
  %v2311 = vpack.c.b16 %v1831, %v1823
  %v2312 = vpack.c.b16 %v1832, %v1824
  %v2313 = vpack.c.b16 %v1833, %v1825
  %v2314 = vpack.c.b16 %v1842, %v1834
  %v2315 = vpack.c.b16 %v1843, %v1835
  %v2316 = vpack.c.b16 %v1844, %v1836
  %v2317 = vpack.c.b16 %v1845, %v1837
  %v2318 = vpack.c.b16 %v1846, %v1838
  %v2319 = vpack.c.b16 %v1847, %v1839
  %v2320 = vpack.c.b16 %v1848, %v1840
  %v2321 = vpack.c.b16 %v1849, %v1841
  %v2322 = vpack.c.b16 %v1858, %v1850
  %v2323 = vpack.c.b16 %v1859, %v1851
  %v2324 = vpack.c.b16 %v1860, %v1852
  %v2325 = vpack.c.b16 %v1861, %v1853
  %v2326 = vpack.c.b16 %v1862, %v1854
  %v2327 = vpack.c.b16 %v1863, %v1855
  %v2328 = vpack.c.b16 %v1864, %v1856
  %v2329 = vpack.c.b16 %v1865, %v1857
  %v2330 = vpack.c.b16 %v1874, %v1866
  %v2331 = vpack.c.b16 %v1875, %v1867
  %v2332 = vpack.c.b16 %v1876, %v1868
  %v2333 = vpack.c.b16 %v1877, %v1869
  %v2334 = vpack.c.b16 %v1878, %v1870
  %v2335 = vpack.c.b16 %v1879, %v1871
  %v2336 = vpack.c.b16 %v1880, %v1872
  %v2337 = vpack.c.b16 %v1881, %v1873
  %v2338 = vpack.c.b16 %v1890, %v1882
  %v2339 = vpack.c.b16 %v1891, %v1883
  %v2340 = vpack.c.b16 %v1892, %v1884
  %v2341 = vpack.c.b16 %v1893, %v1885
  %v2342 = vpack.c.b16 %v1894, %v1886
  %v2343 = vpack.c.b16 %v1895, %v1887
  %v2344 = vpack.c.b16 %v1896, %v1888
  %v2345 = vpack.c.b16 %v1897, %v1889
  %2794 = vmatprep.subr.bf16.mxu0 %v1899
  %2795 = vmatpush1.bf16.msra.mxu0 %v1898
  %2796 = vmatprep.subr.bf16.mxu0 %v1907
  %2797 = vmatpush1.bf16.msra.mxu0 %v1906
  %2798 = vmatprep.subr.bf16.mxu0 %v1915
  %2799 = vmatpush1.bf16.msra.mxu0 %v1914
  %2800 = vmatprep.subr.bf16.mxu0 %v1923
  %2801 = vmatpush1.bf16.msra.mxu0 %v1922
  %2802 = vmatprep.subr.bf16.mxu0 %v1931
  %2803 = vmatpush1.bf16.msra.mxu0 %v1930
  %2804 = vmatprep.subr.bf16.mxu0 %v1939
  %2805 = vmatpush1.bf16.msra.mxu0 %v1938
  %2806 = vmatprep.subr.bf16.mxu0 %v1947
  %2807 = vmatpush1.bf16.msra.mxu0 %v1946
  %2808 = vmatprep.subr.bf16.mxu0 %v1955
  %2809 = vmatpush1.bf16.msra.mxu0 %v1954
  %2810 = vmatprep.subr.bf16.mxu0 %v1963
  %2811 = vmatpush1.bf16.msra.mxu0 %v1962
  %2812 = vmatprep.subr.bf16.mxu0 %v1971
  %2813 = vmatpush1.bf16.msra.mxu0 %v1970
  %2814 = vmatprep.subr.bf16.mxu0 %v1979
  %2815 = vmatpush1.bf16.msra.mxu0 %v1978
  %2816 = vmatprep.subr.bf16.mxu0 %v1987
  %2817 = vmatpush1.bf16.msra.mxu0 %v1986
  %2818 = vmatprep.subr.bf16.mxu0 %v1995
  %2819 = vmatpush1.bf16.msra.mxu0 %v1994
  %2820 = vmatprep.subr.bf16.mxu0 %v2003
  %2821 = vmatpush1.bf16.msra.mxu0 %v2002
  %2822 = vmatprep.subr.bf16.mxu0 %v2011
  %2823 = vmatpush1.bf16.msra.mxu0 %v2010
  %2824 = vmatprep.subr.bf16.mxu0 %v2019
  %2825 = vmatpush1.bf16.msra.mxu0 %v2018
  %2826 = vmatprep.mubr.bf16.mxu0 %v541
  %2827 = vmatmul.mubr.bf16.gmra.mrb[0].mxu0 %v540
  %v2828 = vpop.f32.mrb[0].mxu0
  %v2829 = vadd.f32 %v492, %v2828
  %v2830 = vpop.f32.mrb[0].mxu0
  %v2831 = vadd.f32 %v496, %v2830
  %v2832 = vpop.f32.mrb[0].mxu0
  %v2833 = vpop.f32.mrb[0].mxu0
  %2834 = vdwg.mxu0
  %2835 = vmatprep.subr.bf16.mxu0 %v2027
  %2836 = vmatpush1.bf16.msra.mxu0 %v2026
  %2837 = vmatprep.subr.bf16.mxu0 %v2035
  %2838 = vmatpush1.bf16.msra.mxu0 %v2034
  %2839 = vmatprep.subr.bf16.mxu0 %v2043
  %2840 = vmatpush1.bf16.msra.mxu0 %v2042
  %2841 = vmatprep.subr.bf16.mxu0 %v2051
  %2842 = vmatpush1.bf16.msra.mxu0 %v2050
  %2843 = vmatprep.subr.bf16.mxu0 %v2059
  %2844 = vmatpush1.bf16.msra.mxu0 %v2058
  %2845 = vmatprep.subr.bf16.mxu0 %v2067
  %2846 = vmatpush1.bf16.msra.mxu0 %v2066
  %2847 = vmatprep.subr.bf16.mxu0 %v2075
  %2848 = vmatpush1.bf16.msra.mxu0 %v2074
  %2849 = vmatprep.subr.bf16.mxu0 %v2083
  %2850 = vmatpush1.bf16.msra.mxu0 %v2082
  %2851 = vmatprep.subr.bf16.mxu0 %v2091
  %2852 = vmatpush1.bf16.msra.mxu0 %v2090
  %2853 = vmatprep.subr.bf16.mxu0 %v2099
  %2854 = vmatpush1.bf16.msra.mxu0 %v2098
  %2855 = vmatprep.subr.bf16.mxu0 %v2107
  %2856 = vmatpush1.bf16.msra.mxu0 %v2106
  %2857 = vmatprep.subr.bf16.mxu0 %v2115
  %2858 = vmatpush1.bf16.msra.mxu0 %v2114
  %2859 = vmatprep.subr.bf16.mxu0 %v2123
  %2860 = vmatpush1.bf16.msra.mxu0 %v2122
  %2861 = vmatprep.subr.bf16.mxu0 %v2131
  %2862 = vmatpush1.bf16.msra.mxu0 %v2130
  %2863 = vmatprep.subr.bf16.mxu0 %v2139
  %2864 = vmatpush1.bf16.msra.mxu0 %v2138
  %2865 = vmatprep.subr.bf16.mxu0 %v2147
  %2866 = vmatpush1.bf16.msra.mxu0 %v2146
  %2867 = vmatprep.mubr.bf16.mxu0 %v543
  %2868 = vmatmul.mubr.bf16.gmra.mrb[0].mxu0 %v542
  %v2869 = vpop.f32.mrb[0].mxu0
  %v2870 = vadd.f32 %v2829, %v2869
  %v2871 = vpop.f32.mrb[0].mxu0
  %v2872 = vadd.f32 %v2831, %v2871
  %v2873 = vpop.f32.mrb[0].mxu0
  %v2874 = vpop.f32.mrb[0].mxu0
  %2875 = vdwg.mxu0
  %2876 = vmatprep.subr.bf16.mxu0 %v2155
  %2877 = vmatpush1.bf16.msra.mxu0 %v2154
  %2878 = vmatprep.subr.bf16.mxu0 %v2163
  %2879 = vmatpush1.bf16.msra.mxu0 %v2162
  %2880 = vmatprep.subr.bf16.mxu0 %v2171
  %2881 = vmatpush1.bf16.msra.mxu0 %v2170
  %2882 = vmatprep.subr.bf16.mxu0 %v2179
  %2883 = vmatpush1.bf16.msra.mxu0 %v2178
  %2884 = vmatprep.subr.bf16.mxu0 %v2187
  %2885 = vmatpush1.bf16.msra.mxu0 %v2186
  %2886 = vmatprep.subr.bf16.mxu0 %v2195
  %2887 = vmatpush1.bf16.msra.mxu0 %v2194
  %2888 = vmatprep.subr.bf16.mxu0 %v2203
  %2889 = vmatpush1.bf16.msra.mxu0 %v2202
  %2890 = vmatprep.subr.bf16.mxu0 %v2211
  %2891 = vmatpush1.bf16.msra.mxu0 %v2210
  %2892 = vmatprep.subr.bf16.mxu0 %v2219
  %2893 = vmatpush1.bf16.msra.mxu0 %v2218
  %2894 = vmatprep.subr.bf16.mxu0 %v2227
  %2895 = vmatpush1.bf16.msra.mxu0 %v2226
  %2896 = vmatprep.subr.bf16.mxu0 %v2235
  %2897 = vmatpush1.bf16.msra.mxu0 %v2234
  %2898 = vmatprep.subr.bf16.mxu0 %v2243
  %2899 = vmatpush1.bf16.msra.mxu0 %v2242
  %2900 = vmatprep.subr.bf16.mxu0 %v2251
  %2901 = vmatpush1.bf16.msra.mxu0 %v2250
  %2902 = vmatprep.subr.bf16.mxu0 %v2259
  %2903 = vmatpush1.bf16.msra.mxu0 %v2258
  %2904 = vmatprep.subr.bf16.mxu0 %v2267
  %2905 = vmatpush1.bf16.msra.mxu0 %v2266
  %2906 = vmatprep.subr.bf16.mxu0 %v2275
  %2907 = vmatpush1.bf16.msra.mxu0 %v2274
  %2908 = vmatprep.mubr.bf16.mxu0 %v545
  %2909 = vmatmul.mubr.bf16.gmra.mrb[0].mxu0 %v544
  %v2910 = vpop.f32.mrb[0].mxu0
  %v2911 = vadd.f32 %v2870, %v2910
  %v2912 = vpop.f32.mrb[0].mxu0
  %v2913 = vadd.f32 %v2872, %v2912
  %v2914 = vpop.f32.mrb[0].mxu0
  %v2915 = vpop.f32.mrb[0].mxu0
  %2916 = vdwg.mxu0
  %2917 = vmatprep.subr.bf16.mxu0 %v2283
  %2918 = vmatpush1.bf16.msra.mxu0 %v2282
  %2919 = vmatprep.subr.bf16.mxu0 %v2291
  %2920 = vmatpush1.bf16.msra.mxu0 %v2290
  %2921 = vmatprep.subr.bf16.mxu0 %v2299
  %2922 = vmatpush1.bf16.msra.mxu0 %v2298
  %2923 = vmatprep.subr.bf16.mxu0 %v2307
  %2924 = vmatpush1.bf16.msra.mxu0 %v2306
  %2925 = vmatprep.subr.bf16.mxu0 %v2315
  %2926 = vmatpush1.bf16.msra.mxu0 %v2314
  %2927 = vmatprep.subr.bf16.mxu0 %v2323
  %2928 = vmatpush1.bf16.msra.mxu0 %v2322
  %2929 = vmatprep.subr.bf16.mxu0 %v2331
  %2930 = vmatpush1.bf16.msra.mxu0 %v2330
  %2931 = vmatprep.subr.bf16.mxu0 %v2339
  %2932 = vmatpush1.bf16.msra.mxu0 %v2338
  %2933 = vmatprep.subr.bf16.mxu0 0
  %2934 = vmatpush1.bf16.msra.mxu0 0
  %2935 = vmatprep.subr.bf16.mxu0 0
  %2936 = vmatpush1.bf16.msra.mxu0 0
  %2937 = vmatprep.subr.bf16.mxu0 0
  %2938 = vmatpush1.bf16.msra.mxu0 0
  %2939 = vmatprep.subr.bf16.mxu0 0
  %2940 = vmatpush1.bf16.msra.mxu0 0
  %2941 = vmatprep.subr.bf16.mxu0 0
  %2942 = vmatpush1.bf16.msra.mxu0 0
  %2943 = vmatprep.subr.bf16.mxu0 0
  %2944 = vmatpush1.bf16.msra.mxu0 0
  %2945 = vmatprep.subr.bf16.mxu0 0
  %2946 = vmatpush1.bf16.msra.mxu0 0
  %2947 = vmatprep.subr.bf16.mxu0 0
  %2948 = vmatpush1.bf16.msra.mxu0 0
  %2949 = vmatprep.mubr.bf16.mxu0 0
  %2950 = vmatmul.mubr.bf16.gmra.mrb[0].mxu0 %v546
  %v2951 = vpop.f32.mrb[0].mxu0
  %v2952 = vadd.f32 %v2911, %v2951
  %v2953 = vpop.f32.mrb[0].mxu0
  %v2954 = vadd.f32 %v2913, %v2953
  %v2955 = vpop.f32.mrb[0].mxu0
  %v2956 = vpop.f32.mrb[0].mxu0
  %2957 = vdwg.mxu0
  %2958 = vmatprep.subr.bf16.mxu0 %v1901
  %2959 = vmatpush1.bf16.msra.mxu0 %v1900
  %2960 = vmatprep.subr.bf16.mxu0 %v1909
  %2961 = vmatpush1.bf16.msra.mxu0 %v1908
  %2962 = vmatprep.subr.bf16.mxu0 %v1917
  %2963 = vmatpush1.bf16.msra.mxu0 %v1916
  %2964 = vmatprep.subr.bf16.mxu0 %v1925
  %2965 = vmatpush1.bf16.msra.mxu0 %v1924
  %2966 = vmatprep.subr.bf16.mxu0 %v1933
  %2967 = vmatpush1.bf16.msra.mxu0 %v1932
  %2968 = vmatprep.subr.bf16.mxu0 %v1941
  %2969 = vmatpush1.bf16.msra.mxu0 %v1940
  %2970 = vmatprep.subr.bf16.mxu0 %v1949
  %2971 = vmatpush1.bf16.msra.mxu0 %v1948
  %2972 = vmatprep.subr.bf16.mxu0 %v1957
  %2973 = vmatpush1.bf16.msra.mxu0 %v1956
  %2974 = vmatprep.subr.bf16.mxu0 %v1965
  %2975 = vmatpush1.bf16.msra.mxu0 %v1964
  %2976 = vmatprep.subr.bf16.mxu0 %v1973
  %2977 = vmatpush1.bf16.msra.mxu0 %v1972
  %2978 = vmatprep.subr.bf16.mxu0 %v1981
  %2979 = vmatpush1.bf16.msra.mxu0 %v1980
  %2980 = vmatprep.subr.bf16.mxu0 %v1989
  %2981 = vmatpush1.bf16.msra.mxu0 %v1988
  %2982 = vmatprep.subr.bf16.mxu0 %v1997
  %2983 = vmatpush1.bf16.msra.mxu0 %v1996
  %2984 = vmatprep.subr.bf16.mxu0 %v2005
  %2985 = vmatpush1.bf16.msra.mxu0 %v2004
  %2986 = vmatprep.subr.bf16.mxu0 %v2013
  %2987 = vmatpush1.bf16.msra.mxu0 %v2012
  %2988 = vmatprep.subr.bf16.mxu0 %v2021
  %2989 = vmatpush1.bf16.msra.mxu0 %v2020
  %2990 = vmatprep.mubr.bf16.mxu0 %v541
  %2991 = vmatmul.mubr.bf16.gmra.mrb[0].mxu0 %v540
  %v2992 = vpop.f32.mrb[0].mxu0
  %v2993 = vadd.f32 %v500, %v2992
  %v2994 = vpop.f32.mrb[0].mxu0
  %v2995 = vadd.f32 %v504, %v2994
  %v2996 = vpop.f32.mrb[0].mxu0
  %v2997 = vpop.f32.mrb[0].mxu0
  %2998 = vdwg.mxu0
  %2999 = vmatprep.subr.bf16.mxu0 %v2029
  %3000 = vmatpush1.bf16.msra.mxu0 %v2028
  %3001 = vmatprep.subr.bf16.mxu0 %v2037
  %3002 = vmatpush1.bf16.msra.mxu0 %v2036
  %3003 = vmatprep.subr.bf16.mxu0 %v2045
  %3004 = vmatpush1.bf16.msra.mxu0 %v2044
  %3005 = vmatprep.subr.bf16.mxu0 %v2053
  %3006 = vmatpush1.bf16.msra.mxu0 %v2052
  %3007 = vmatprep.subr.bf16.mxu0 %v2061
  %3008 = vmatpush1.bf16.msra.mxu0 %v2060
  %3009 = vmatprep.subr.bf16.mxu0 %v2069
  %3010 = vmatpush1.bf16.msra.mxu0 %v2068
  %3011 = vmatprep.subr.bf16.mxu0 %v2077
  %3012 = vmatpush1.bf16.msra.mxu0 %v2076
  %3013 = vmatprep.subr.bf16.mxu0 %v2085
  %3014 = vmatpush1.bf16.msra.mxu0 %v2084
  %3015 = vmatprep.subr.bf16.mxu0 %v2093
  %3016 = vmatpush1.bf16.msra.mxu0 %v2092
  %3017 = vmatprep.subr.bf16.mxu0 %v2101
  %3018 = vmatpush1.bf16.msra.mxu0 %v2100
  %3019 = vmatprep.subr.bf16.mxu0 %v2109
  %3020 = vmatpush1.bf16.msra.mxu0 %v2108
  %3021 = vmatprep.subr.bf16.mxu0 %v2117
  %3022 = vmatpush1.bf16.msra.mxu0 %v2116
  %3023 = vmatprep.subr.bf16.mxu0 %v2125
  %3024 = vmatpush1.bf16.msra.mxu0 %v2124
  %3025 = vmatprep.subr.bf16.mxu0 %v2133
  %3026 = vmatpush1.bf16.msra.mxu0 %v2132
  %3027 = vmatprep.subr.bf16.mxu0 %v2141
  %3028 = vmatpush1.bf16.msra.mxu0 %v2140
  %3029 = vmatprep.subr.bf16.mxu0 %v2149
  %3030 = vmatpush1.bf16.msra.mxu0 %v2148
  %3031 = vmatprep.mubr.bf16.mxu0 %v543
  %3032 = vmatmul.mubr.bf16.gmra.mrb[0].mxu0 %v542
  %v3033 = vpop.f32.mrb[0].mxu0
  %v3034 = vadd.f32 %v2993, %v3033
  %v3035 = vpop.f32.mrb[0].mxu0
  %v3036 = vadd.f32 %v2995, %v3035
  %v3037 = vpop.f32.mrb[0].mxu0
  %v3038 = vpop.f32.mrb[0].mxu0
  %3039 = vdwg.mxu0
  %3040 = vmatprep.subr.bf16.mxu0 %v2157
  %3041 = vmatpush1.bf16.msra.mxu0 %v2156
  %3042 = vmatprep.subr.bf16.mxu0 %v2165
  %3043 = vmatpush1.bf16.msra.mxu0 %v2164
  %3044 = vmatprep.subr.bf16.mxu0 %v2173
  %3045 = vmatpush1.bf16.msra.mxu0 %v2172
  %3046 = vmatprep.subr.bf16.mxu0 %v2181
  %3047 = vmatpush1.bf16.msra.mxu0 %v2180
  %3048 = vmatprep.subr.bf16.mxu0 %v2189
  %3049 = vmatpush1.bf16.msra.mxu0 %v2188
  %3050 = vmatprep.subr.bf16.mxu0 %v2197
  %3051 = vmatpush1.bf16.msra.mxu0 %v2196
  %3052 = vmatprep.subr.bf16.mxu0 %v2205
  %3053 = vmatpush1.bf16.msra.mxu0 %v2204
  %3054 = vmatprep.subr.bf16.mxu0 %v2213
  %3055 = vmatpush1.bf16.msra.mxu0 %v2212
  %3056 = vmatprep.subr.bf16.mxu0 %v2221
  %3057 = vmatpush1.bf16.msra.mxu0 %v2220
  %3058 = vmatprep.subr.bf16.mxu0 %v2229
  %3059 = vmatpush1.bf16.msra.mxu0 %v2228
  %3060 = vmatprep.subr.bf16.mxu0 %v2237
  %3061 = vmatpush1.bf16.msra.mxu0 %v2236
  %3062 = vmatprep.subr.bf16.mxu0 %v2245
  %3063 = vmatpush1.bf16.msra.mxu0 %v2244
  %3064 = vmatprep.subr.bf16.mxu0 %v2253
  %3065 = vmatpush1.bf16.msra.mxu0 %v2252
  %3066 = vmatprep.subr.bf16.mxu0 %v2261
  %3067 = vmatpush1.bf16.msra.mxu0 %v2260
  %3068 = vmatprep.subr.bf16.mxu0 %v2269
  %3069 = vmatpush1.bf16.msra.mxu0 %v2268
  %3070 = vmatprep.subr.bf16.mxu0 %v2277
  %3071 = vmatpush1.bf16.msra.mxu0 %v2276
  %3072 = vmatprep.mubr.bf16.mxu0 %v545
  %3073 = vmatmul.mubr.bf16.gmra.mrb[0].mxu0 %v544
  %v3074 = vpop.f32.mrb[0].mxu0
  %v3075 = vadd.f32 %v3034, %v3074
  %v3076 = vpop.f32.mrb[0].mxu0
  %v3077 = vadd.f32 %v3036, %v3076
  %v3078 = vpop.f32.mrb[0].mxu0
  %v3079 = vpop.f32.mrb[0].mxu0
  %3080 = vdwg.mxu0
  %3081 = vmatprep.subr.bf16.mxu0 %v2285
  %3082 = vmatpush1.bf16.msra.mxu0 %v2284
  %3083 = vmatprep.subr.bf16.mxu0 %v2293
  %3084 = vmatpush1.bf16.msra.mxu0 %v2292
  %3085 = vmatprep.subr.bf16.mxu0 %v2301
  %3086 = vmatpush1.bf16.msra.mxu0 %v2300
  %3087 = vmatprep.subr.bf16.mxu0 %v2309
  %3088 = vmatpush1.bf16.msra.mxu0 %v2308
  %3089 = vmatprep.subr.bf16.mxu0 %v2317
  %3090 = vmatpush1.bf16.msra.mxu0 %v2316
  %3091 = vmatprep.subr.bf16.mxu0 %v2325
  %3092 = vmatpush1.bf16.msra.mxu0 %v2324
  %3093 = vmatprep.subr.bf16.mxu0 %v2333
  %3094 = vmatpush1.bf16.msra.mxu0 %v2332
  %3095 = vmatprep.subr.bf16.mxu0 %v2341
  %3096 = vmatpush1.bf16.msra.mxu0 %v2340
  %3097 = vmatprep.subr.bf16.mxu0 0
  %3098 = vmatpush1.bf16.msra.mxu0 0
  %3099 = vmatprep.subr.bf16.mxu0 0
  %3100 = vmatpush1.bf16.msra.mxu0 0
  %3101 = vmatprep.subr.bf16.mxu0 0
  %3102 = vmatpush1.bf16.msra.mxu0 0
  %3103 = vmatprep.subr.bf16.mxu0 0
  %3104 = vmatpush1.bf16.msra.mxu0 0
  %3105 = vmatprep.subr.bf16.mxu0 0
  %3106 = vmatpush1.bf16.msra.mxu0 0
  %3107 = vmatprep.subr.bf16.mxu0 0
  %3108 = vmatpush1.bf16.msra.mxu0 0
  %3109 = vmatprep.subr.bf16.mxu0 0
  %3110 = vmatpush1.bf16.msra.mxu0 0
  %3111 = vmatprep.subr.bf16.mxu0 0
  %3112 = vmatpush1.bf16.msra.mxu0 0
  %3113 = vmatprep.mubr.bf16.mxu0 0
  %3114 = vmatmul.mubr.bf16.gmra.mrb[0].mxu0 %v546
  %v3115 = vpop.f32.mrb[0].mxu0
  %v3116 = vadd.f32 %v3075, %v3115
  %v3117 = vpop.f32.mrb[0].mxu0
  %v3118 = vadd.f32 %v3077, %v3117
  %v3119 = vpop.f32.mrb[0].mxu0
  %v3120 = vpop.f32.mrb[0].mxu0
  %3121 = vdwg.mxu0
  %3122 = vmatprep.subr.bf16.mxu0 %v1903
  %3123 = vmatpush1.bf16.msra.mxu0 %v1902
  %3124 = vmatprep.subr.bf16.mxu0 %v1911
  %3125 = vmatpush1.bf16.msra.mxu0 %v1910
  %3126 = vmatprep.subr.bf16.mxu0 %v1919
  %3127 = vmatpush1.bf16.msra.mxu0 %v1918
  %3128 = vmatprep.subr.bf16.mxu0 %v1927
  %3129 = vmatpush1.bf16.msra.mxu0 %v1926
  %3130 = vmatprep.subr.bf16.mxu0 %v1935
  %3131 = vmatpush1.bf16.msra.mxu0 %v1934
  %3132 = vmatprep.subr.bf16.mxu0 %v1943
  %3133 = vmatpush1.bf16.msra.mxu0 %v1942
  %3134 = vmatprep.subr.bf16.mxu0 %v1951
  %3135 = vmatpush1.bf16.msra.mxu0 %v1950
  %3136 = vmatprep.subr.bf16.mxu0 %v1959
  %3137 = vmatpush1.bf16.msra.mxu0 %v1958
  %3138 = vmatprep.subr.bf16.mxu0 %v1967
  %3139 = vmatpush1.bf16.msra.mxu0 %v1966
  %3140 = vmatprep.subr.bf16.mxu0 %v1975
  %3141 = vmatpush1.bf16.msra.mxu0 %v1974
  %3142 = vmatprep.subr.bf16.mxu0 %v1983
  %3143 = vmatpush1.bf16.msra.mxu0 %v1982
  %3144 = vmatprep.subr.bf16.mxu0 %v1991
  %3145 = vmatpush1.bf16.msra.mxu0 %v1990
  %3146 = vmatprep.subr.bf16.mxu0 %v1999
  %3147 = vmatpush1.bf16.msra.mxu0 %v1998
  %3148 = vmatprep.subr.bf16.mxu0 %v2007
  %3149 = vmatpush1.bf16.msra.mxu0 %v2006
  %3150 = vmatprep.subr.bf16.mxu0 %v2015
  %3151 = vmatpush1.bf16.msra.mxu0 %v2014
  %3152 = vmatprep.subr.bf16.mxu0 %v2023
  %3153 = vmatpush1.bf16.msra.mxu0 %v2022
  %3154 = vmatprep.mubr.bf16.mxu0 %v541
  %3155 = vmatmul.mubr.bf16.gmra.mrb[0].mxu0 %v540
  %v3156 = vpop.f32.mrb[0].mxu0
  %v3157 = vadd.f32 %v508, %v3156
  %v3158 = vpop.f32.mrb[0].mxu0
  %v3159 = vadd.f32 %v512, %v3158
  %v3160 = vpop.f32.mrb[0].mxu0
  %v3161 = vpop.f32.mrb[0].mxu0
  %3162 = vdwg.mxu0
  %3163 = vmatprep.subr.bf16.mxu0 %v2031
  %3164 = vmatpush1.bf16.msra.mxu0 %v2030
  %3165 = vmatprep.subr.bf16.mxu0 %v2039
  %3166 = vmatpush1.bf16.msra.mxu0 %v2038
  %3167 = vmatprep.subr.bf16.mxu0 %v2047
  %3168 = vmatpush1.bf16.msra.mxu0 %v2046
  %3169 = vmatprep.subr.bf16.mxu0 %v2055
  %3170 = vmatpush1.bf16.msra.mxu0 %v2054
  %3171 = vmatprep.subr.bf16.mxu0 %v2063
  %3172 = vmatpush1.bf16.msra.mxu0 %v2062
  %3173 = vmatprep.subr.bf16.mxu0 %v2071
  %3174 = vmatpush1.bf16.msra.mxu0 %v2070
  %3175 = vmatprep.subr.bf16.mxu0 %v2079
  %3176 = vmatpush1.bf16.msra.mxu0 %v2078
  %3177 = vmatprep.subr.bf16.mxu0 %v2087
  %3178 = vmatpush1.bf16.msra.mxu0 %v2086
  %3179 = vmatprep.subr.bf16.mxu0 %v2095
  %3180 = vmatpush1.bf16.msra.mxu0 %v2094
  %3181 = vmatprep.subr.bf16.mxu0 %v2103
  %3182 = vmatpush1.bf16.msra.mxu0 %v2102
  %3183 = vmatprep.subr.bf16.mxu0 %v2111
  %3184 = vmatpush1.bf16.msra.mxu0 %v2110
  %3185 = vmatprep.subr.bf16.mxu0 %v2119
  %3186 = vmatpush1.bf16.msra.mxu0 %v2118
  %3187 = vmatprep.subr.bf16.mxu0 %v2127
  %3188 = vmatpush1.bf16.msra.mxu0 %v2126
  %3189 = vmatprep.subr.bf16.mxu0 %v2135
  %3190 = vmatpush1.bf16.msra.mxu0 %v2134
  %3191 = vmatprep.subr.bf16.mxu0 %v2143
  %3192 = vmatpush1.bf16.msra.mxu0 %v2142
  %3193 = vmatprep.subr.bf16.mxu0 %v2151
  %3194 = vmatpush1.bf16.msra.mxu0 %v2150
  %3195 = vmatprep.mubr.bf16.mxu0 %v543
  %3196 = vmatmul.mubr.bf16.gmra.mrb[0].mxu0 %v542
  %v3197 = vpop.f32.mrb[0].mxu0
  %v3198 = vadd.f32 %v3157, %v3197
  %v3199 = vpop.f32.mrb[0].mxu0
  %v3200 = vadd.f32 %v3159, %v3199
  %v3201 = vpop.f32.mrb[0].mxu0
  %v3202 = vpop.f32.mrb[0].mxu0
  %3203 = vdwg.mxu0
  %3204 = vmatprep.subr.bf16.mxu0 %v2159
  %3205 = vmatpush1.bf16.msra.mxu0 %v2158
  %3206 = vmatprep.subr.bf16.mxu0 %v2167
  %3207 = vmatpush1.bf16.msra.mxu0 %v2166
  %3208 = vmatprep.subr.bf16.mxu0 %v2175
  %3209 = vmatpush1.bf16.msra.mxu0 %v2174
  %3210 = vmatprep.subr.bf16.mxu0 %v2183
  %3211 = vmatpush1.bf16.msra.mxu0 %v2182
  %3212 = vmatprep.subr.bf16.mxu0 %v2191
  %3213 = vmatpush1.bf16.msra.mxu0 %v2190
  %3214 = vmatprep.subr.bf16.mxu0 %v2199
  %3215 = vmatpush1.bf16.msra.mxu0 %v2198
  %3216 = vmatprep.subr.bf16.mxu0 %v2207
  %3217 = vmatpush1.bf16.msra.mxu0 %v2206
  %3218 = vmatprep.subr.bf16.mxu0 %v2215
  %3219 = vmatpush1.bf16.msra.mxu0 %v2214
  %3220 = vmatprep.subr.bf16.mxu0 %v2223
  %3221 = vmatpush1.bf16.msra.mxu0 %v2222
  %3222 = vmatprep.subr.bf16.mxu0 %v2231
  %3223 = vmatpush1.bf16.msra.mxu0 %v2230
  %3224 = vmatprep.subr.bf16.mxu0 %v2239
  %3225 = vmatpush1.bf16.msra.mxu0 %v2238
  %3226 = vmatprep.subr.bf16.mxu0 %v2247
  %3227 = vmatpush1.bf16.msra.mxu0 %v2246
  %3228 = vmatprep.subr.bf16.mxu0 %v2255
  %3229 = vmatpush1.bf16.msra.mxu0 %v2254
  %3230 = vmatprep.subr.bf16.mxu0 %v2263
  %3231 = vmatpush1.bf16.msra.mxu0 %v2262
  %3232 = vmatprep.subr.bf16.mxu0 %v2271
  %3233 = vmatpush1.bf16.msra.mxu0 %v2270
  %3234 = vmatprep.subr.bf16.mxu0 %v2279
  %3235 = vmatpush1.bf16.msra.mxu0 %v2278
  %3236 = vmatprep.mubr.bf16.mxu0 %v545
  %3237 = vmatmul.mubr.bf16.gmra.mrb[0].mxu0 %v544
  %v3238 = vpop.f32.mrb[0].mxu0
  %v3239 = vadd.f32 %v3198, %v3238
  %v3240 = vpop.f32.mrb[0].mxu0
  %v3241 = vadd.f32 %v3200, %v3240
  %v3242 = vpop.f32.mrb[0].mxu0
  %v3243 = vpop.f32.mrb[0].mxu0
  %3244 = vdwg.mxu0
  %3245 = vmatprep.subr.bf16.mxu0 %v2287
  %3246 = vmatpush1.bf16.msra.mxu0 %v2286
  %3247 = vmatprep.subr.bf16.mxu0 %v2295
  %3248 = vmatpush1.bf16.msra.mxu0 %v2294
  %3249 = vmatprep.subr.bf16.mxu0 %v2303
  %3250 = vmatpush1.bf16.msra.mxu0 %v2302
  %3251 = vmatprep.subr.bf16.mxu0 %v2311
  %3252 = vmatpush1.bf16.msra.mxu0 %v2310
  %3253 = vmatprep.subr.bf16.mxu0 %v2319
  %3254 = vmatpush1.bf16.msra.mxu0 %v2318
  %3255 = vmatprep.subr.bf16.mxu0 %v2327
  %3256 = vmatpush1.bf16.msra.mxu0 %v2326
  %3257 = vmatprep.subr.bf16.mxu0 %v2335
  %3258 = vmatpush1.bf16.msra.mxu0 %v2334
  %3259 = vmatprep.subr.bf16.mxu0 %v2343
  %3260 = vmatpush1.bf16.msra.mxu0 %v2342
  %3261 = vmatprep.subr.bf16.mxu0 0
  %3262 = vmatpush1.bf16.msra.mxu0 0
  %3263 = vmatprep.subr.bf16.mxu0 0
  %3264 = vmatpush1.bf16.msra.mxu0 0
  %3265 = vmatprep.subr.bf16.mxu0 0
  %3266 = vmatpush1.bf16.msra.mxu0 0
  %3267 = vmatprep.subr.bf16.mxu0 0
  %3268 = vmatpush1.bf16.msra.mxu0 0
  %3269 = vmatprep.subr.bf16.mxu0 0
  %3270 = vmatpush1.bf16.msra.mxu0 0
  %3271 = vmatprep.subr.bf16.mxu0 0
  %3272 = vmatpush1.bf16.msra.mxu0 0
  %3273 = vmatprep.subr.bf16.mxu0 0
  %3274 = vmatpush1.bf16.msra.mxu0 0
  %3275 = vmatprep.subr.bf16.mxu0 0
  %3276 = vmatpush1.bf16.msra.mxu0 0
  %3277 = vmatprep.mubr.bf16.mxu0 0
  %3278 = vmatmul.mubr.bf16.gmra.mrb[0].mxu0 %v546
  %v3279 = vpop.f32.mrb[0].mxu0
  %v3280 = vadd.f32 %v3239, %v3279
  %v3281 = vpop.f32.mrb[0].mxu0
  %v3282 = vadd.f32 %v3241, %v3281
  %v3283 = vpop.f32.mrb[0].mxu0
  %v3284 = vpop.f32.mrb[0].mxu0
  %3285 = vdwg.mxu0
  %3286 = vmatprep.subr.bf16.mxu0 %v1905
  %3287 = vmatpush1.bf16.msra.mxu0 %v1904
  %3288 = vmatprep.subr.bf16.mxu0 %v1913
  %3289 = vmatpush1.bf16.msra.mxu0 %v1912
  %3290 = vmatprep.subr.bf16.mxu0 %v1921
  %3291 = vmatpush1.bf16.msra.mxu0 %v1920
  %3292 = vmatprep.subr.bf16.mxu0 %v1929
  %3293 = vmatpush1.bf16.msra.mxu0 %v1928
  %3294 = vmatprep.subr.bf16.mxu0 %v1937
  %3295 = vmatpush1.bf16.msra.mxu0 %v1936
  %3296 = vmatprep.subr.bf16.mxu0 %v1945
  %3297 = vmatpush1.bf16.msra.mxu0 %v1944
  %3298 = vmatprep.subr.bf16.mxu0 %v1953
  %3299 = vmatpush1.bf16.msra.mxu0 %v1952
  %3300 = vmatprep.subr.bf16.mxu0 %v1961
  %3301 = vmatpush1.bf16.msra.mxu0 %v1960
  %3302 = vmatprep.subr.bf16.mxu0 %v1969
  %3303 = vmatpush1.bf16.msra.mxu0 %v1968
  %3304 = vmatprep.subr.bf16.mxu0 %v1977
  %3305 = vmatpush1.bf16.msra.mxu0 %v1976
  %3306 = vmatprep.subr.bf16.mxu0 %v1985
  %3307 = vmatpush1.bf16.msra.mxu0 %v1984
  %3308 = vmatprep.subr.bf16.mxu0 %v1993
  %3309 = vmatpush1.bf16.msra.mxu0 %v1992
  %3310 = vmatprep.subr.bf16.mxu0 %v2001
  %3311 = vmatpush1.bf16.msra.mxu0 %v2000
  %3312 = vmatprep.subr.bf16.mxu0 %v2009
  %3313 = vmatpush1.bf16.msra.mxu0 %v2008
  %3314 = vmatprep.subr.bf16.mxu0 %v2017
  %3315 = vmatpush1.bf16.msra.mxu0 %v2016
  %3316 = vmatprep.subr.bf16.mxu0 %v2025
  %3317 = vmatpush1.bf16.msra.mxu0 %v2024
  %3318 = vmatprep.mubr.bf16.mxu0 %v541
  %3319 = vmatmul.mubr.bf16.gmra.mrb[0].mxu0 %v540
  %v3320 = vpop.f32.mrb[0].mxu0
  %v3321 = vadd.f32 %v516, %v3320
  %v3322 = vpop.f32.mrb[0].mxu0
  %v3323 = vadd.f32 %v520, %v3322
  %v3324 = vpop.f32.mrb[0].mxu0
  %v3325 = vpop.f32.mrb[0].mxu0
  %3326 = vdwg.mxu0
  %3327 = vmatprep.subr.bf16.mxu0 %v2033
  %3328 = vmatpush1.bf16.msra.mxu0 %v2032
  %3329 = vmatprep.subr.bf16.mxu0 %v2041
  %3330 = vmatpush1.bf16.msra.mxu0 %v2040
  %3331 = vmatprep.subr.bf16.mxu0 %v2049
  %3332 = vmatpush1.bf16.msra.mxu0 %v2048
  %3333 = vmatprep.subr.bf16.mxu0 %v2057
  %3334 = vmatpush1.bf16.msra.mxu0 %v2056
  %3335 = vmatprep.subr.bf16.mxu0 %v2065
  %3336 = vmatpush1.bf16.msra.mxu0 %v2064
  %3337 = vmatprep.subr.bf16.mxu0 %v2073
  %3338 = vmatpush1.bf16.msra.mxu0 %v2072
  %3339 = vmatprep.subr.bf16.mxu0 %v2081
  %3340 = vmatpush1.bf16.msra.mxu0 %v2080
  %3341 = vmatprep.subr.bf16.mxu0 %v2089
  %3342 = vmatpush1.bf16.msra.mxu0 %v2088
  %3343 = vmatprep.subr.bf16.mxu0 %v2097
  %3344 = vmatpush1.bf16.msra.mxu0 %v2096
  %3345 = vmatprep.subr.bf16.mxu0 %v2105
  %3346 = vmatpush1.bf16.msra.mxu0 %v2104
  %3347 = vmatprep.subr.bf16.mxu0 %v2113
  %3348 = vmatpush1.bf16.msra.mxu0 %v2112
  %3349 = vmatprep.subr.bf16.mxu0 %v2121
  %3350 = vmatpush1.bf16.msra.mxu0 %v2120
  %3351 = vmatprep.subr.bf16.mxu0 %v2129
  %3352 = vmatpush1.bf16.msra.mxu0 %v2128
  %3353 = vmatprep.subr.bf16.mxu0 %v2137
  %3354 = vmatpush1.bf16.msra.mxu0 %v2136
  %3355 = vmatprep.subr.bf16.mxu0 %v2145
  %3356 = vmatpush1.bf16.msra.mxu0 %v2144
  %3357 = vmatprep.subr.bf16.mxu0 %v2153
  %3358 = vmatpush1.bf16.msra.mxu0 %v2152
  %3359 = vmatprep.mubr.bf16.mxu0 %v543
  %3360 = vmatmul.mubr.bf16.gmra.mrb[0].mxu0 %v542
  %v3361 = vpop.f32.mrb[0].mxu0
  %v3362 = vadd.f32 %v3321, %v3361
  %v3363 = vpop.f32.mrb[0].mxu0
  %v3364 = vadd.f32 %v3323, %v3363
  %v3365 = vpop.f32.mrb[0].mxu0
  %v3366 = vpop.f32.mrb[0].mxu0
  %3367 = vdwg.mxu0
  %3368 = vmatprep.subr.bf16.mxu0 %v2161
  %3369 = vmatpush1.bf16.msra.mxu0 %v2160
  %3370 = vmatprep.subr.bf16.mxu0 %v2169
  %3371 = vmatpush1.bf16.msra.mxu0 %v2168
  %3372 = vmatprep.subr.bf16.mxu0 %v2177
  %3373 = vmatpush1.bf16.msra.mxu0 %v2176
  %3374 = vmatprep.subr.bf16.mxu0 %v2185
  %3375 = vmatpush1.bf16.msra.mxu0 %v2184
  %3376 = vmatprep.subr.bf16.mxu0 %v2193
  %3377 = vmatpush1.bf16.msra.mxu0 %v2192
  %3378 = vmatprep.subr.bf16.mxu0 %v2201
  %3379 = vmatpush1.bf16.msra.mxu0 %v2200
  %3380 = vmatprep.subr.bf16.mxu0 %v2209
  %3381 = vmatpush1.bf16.msra.mxu0 %v2208
  %3382 = vmatprep.subr.bf16.mxu0 %v2217
  %3383 = vmatpush1.bf16.msra.mxu0 %v2216
  %3384 = vmatprep.subr.bf16.mxu0 %v2225
  %3385 = vmatpush1.bf16.msra.mxu0 %v2224
  %3386 = vmatprep.subr.bf16.mxu0 %v2233
  %3387 = vmatpush1.bf16.msra.mxu0 %v2232
  %3388 = vmatprep.subr.bf16.mxu0 %v2241
  %3389 = vmatpush1.bf16.msra.mxu0 %v2240
  %3390 = vmatprep.subr.bf16.mxu0 %v2249
  %3391 = vmatpush1.bf16.msra.mxu0 %v2248
  %3392 = vmatprep.subr.bf16.mxu0 %v2257
  %3393 = vmatpush1.bf16.msra.mxu0 %v2256
  %3394 = vmatprep.subr.bf16.mxu0 %v2265
  %3395 = vmatpush1.bf16.msra.mxu0 %v2264
  %3396 = vmatprep.subr.bf16.mxu0 %v2273
  %3397 = vmatpush1.bf16.msra.mxu0 %v2272
  %3398 = vmatprep.subr.bf16.mxu0 %v2281
  %3399 = vmatpush1.bf16.msra.mxu0 %v2280
  %3400 = vmatprep.mubr.bf16.mxu0 %v545
  %3401 = vmatmul.mubr.bf16.gmra.mrb[0].mxu0 %v544
  %v3402 = vpop.f32.mrb[0].mxu0
  %v3403 = vadd.f32 %v3362, %v3402
  %v3404 = vpop.f32.mrb[0].mxu0
  %v3405 = vadd.f32 %v3364, %v3404
  %v3406 = vpop.f32.mrb[0].mxu0
  %v3407 = vpop.f32.mrb[0].mxu0
  %3408 = vdwg.mxu0
  %3409 = vmatprep.subr.bf16.mxu0 %v2289
  %3410 = vmatpush1.bf16.msra.mxu0 %v2288
  %3411 = vmatprep.subr.bf16.mxu0 %v2297
  %3412 = vmatpush1.bf16.msra.mxu0 %v2296
  %3413 = vmatprep.subr.bf16.mxu0 %v2305
  %3414 = vmatpush1.bf16.msra.mxu0 %v2304
  %3415 = vmatprep.subr.bf16.mxu0 %v2313
  %3416 = vmatpush1.bf16.msra.mxu0 %v2312
  %3417 = vmatprep.subr.bf16.mxu0 %v2321
  %3418 = vmatpush1.bf16.msra.mxu0 %v2320
  %3419 = vmatprep.subr.bf16.mxu0 %v2329
  %3420 = vmatpush1.bf16.msra.mxu0 %v2328
  %3421 = vmatprep.subr.bf16.mxu0 %v2337
  %3422 = vmatpush1.bf16.msra.mxu0 %v2336
  %3423 = vmatprep.subr.bf16.mxu0 %v2345
  %3424 = vmatpush1.bf16.msra.mxu0 %v2344
  %3425 = vmatprep.subr.bf16.mxu0 0
  %3426 = vmatpush1.bf16.msra.mxu0 0
  %3427 = vmatprep.subr.bf16.mxu0 0
  %3428 = vmatpush1.bf16.msra.mxu0 0
  %3429 = vmatprep.subr.bf16.mxu0 0
  %3430 = vmatpush1.bf16.msra.mxu0 0
  %3431 = vmatprep.subr.bf16.mxu0 0
  %3432 = vmatpush1.bf16.msra.mxu0 0
  %3433 = vmatprep.subr.bf16.mxu0 0
  %3434 = vmatpush1.bf16.msra.mxu0 0
  %3435 = vmatprep.subr.bf16.mxu0 0
  %3436 = vmatpush1.bf16.msra.mxu0 0
  %3437 = vmatprep.subr.bf16.mxu0 0
  %3438 = vmatpush1.bf16.msra.mxu0 0
  %3439 = vmatprep.subr.bf16.mxu0 0
  %3440 = vmatpush1.bf16.msra.mxu0 0
  %3441 = vmatprep.mubr.bf16.mxu0 0
  %3442 = vmatmul.mubr.bf16.gmra.mrb[0].mxu0 %v546
  %v3443 = vpop.f32.mrb[0].mxu0
  %v3444 = vadd.f32 %v3403, %v3443
  %v3445 = vpop.f32.mrb[0].mxu0
  %v3446 = vadd.f32 %v3405, %v3445
  %v3447 = vpop.f32.mrb[0].mxu0
  %v3448 = vpop.f32.mrb[0].mxu0
  %3449 = vdwg.mxu0
  %vm3450 = vcmp.gt.f32.partialorder %v2952, 0.0
  %vm3451 = vcmp.gt.f32.partialorder %v2954, 0.0
  %vm3452 = vcmp.gt.f32.partialorder %v3116, 0.0
  %vm3453 = vcmp.gt.f32.partialorder %v3118, 0.0
  %vm3454 = vcmp.gt.f32.partialorder %v3280, 0.0
  %vm3455 = vcmp.gt.f32.partialorder %v3282, 0.0
  %vm3456 = vcmp.gt.f32.partialorder %v3444, 0.0
  %vm3457 = vcmp.gt.f32.partialorder %v3446, 0.0
  %v3458 = vmul.f32 %v2952, 0.01
  %v3459 = vmul.f32 %v2954, 0.01
  %v3460 = vmul.f32 %v3116, 0.01
  %v3461 = vmul.f32 %v3118, 0.01
  %v3462 = vmul.f32 %v3280, 0.01
  %v3463 = vmul.f32 %v3282, 0.01
  %v3464 = vmul.f32 %v3444, 0.01
  %v3465 = vmul.f32 %v3446, 0.01
  %v3466 = vsel %vm3450, %v2952, %v3458
  %v3467 = vsel %vm3451, %v2954, %v3459
  %v3468 = vsel %vm3452, %v3116, %v3460
  %v3469 = vsel %vm3453, %v3118, %v3461
  %v3470 = vsel %vm3454, %v3280, %v3462
  %v3471 = vsel %vm3455, %v3282, %v3463
  %v3472 = vsel %vm3456, %v3444, %v3464
  %v3473 = vsel %vm3457, %v3446, %v3465
  %v3474 = vpack.c.bf16 %v3466, %v3466
  %v3475 = vpack.c.bf16 %v3467, %v3467
  %v3476 = vpack.c.bf16 %v3468, %v3468
  %v3477 = vpack.c.bf16 %v3469, %v3469
  %v3478 = vpack.c.bf16 %v3470, %v3470
  %v3479 = vpack.c.bf16 %v3471, %v3471
  %v3480 = vpack.c.bf16 %v3472, %v3472
  %v3481 = vpack.c.bf16 %v3473, %v3473
  %v3482 = vld [vmem:[%s3] sm:$0xff]
  %v3483 = vld [vmem:[%s3 + $0x8] sm:$0xff]
  %v3484 = vld [vmem:[%s3 + $0x10] sm:$0xff]
  %v3485 = vld [vmem:[%s3 + $0x18] sm:$0xff]
  %v3486 = vld [vmem:[%s3 + $0x20] sm:$0xff]
  %v3487 = vld [vmem:[%s3 + $0x28] sm:$0xff]
  %v3488 = vld [vmem:[%s3 + $0x30] sm:$0xff]
  %v3489 = vld [vmem:[%s3 + $0x38] sm:$0xff]
  %v3490 = vld [vmem:[%s3 + $0x40] sm:$0xff]
  %v3491 = vld [vmem:[%s3 + $0x48] sm:$0xff]
  %v3492 = vld [vmem:[%s3 + $0x50] sm:$0xff]
  %v3493 = vld [vmem:[%s3 + $0x58] sm:$0xff]
  %v3494 = vld [vmem:[%s3 + $0x60] sm:$0xff]
  %v3495 = vld [vmem:[%s3 + $0x68] sm:$0xff]
  %v3496 = vld [vmem:[%s3 + $0x70] sm:$0xff]
  %v3497 = vld [vmem:[%s3 + $0x78] sm:$0xff]
  %v3498 = vld [vmem:[%s3 + $0x80] sm:$0xff]
  %v3499 = vld [vmem:[%s3 + $0x88] sm:$0xff]
  %v3500 = vld [vmem:[%s3 + $0x90] sm:$0xff]
  %v3501 = vld [vmem:[%s3 + $0x98] sm:$0xff]
  %v3502 = vld [vmem:[%s3 + $0xa0] sm:$0xff]
  %v3503 = vld [vmem:[%s3 + $0xa8] sm:$0xff]
  %v3504 = vld [vmem:[%s3 + $0xb0] sm:$0xff]
  %v3505 = vld [vmem:[%s3 + $0xb8] sm:$0xff]
  %v3506 = vld [vmem:[%s3 + $0xc0] sm:$0xff]
  %v3507 = vld [vmem:[%s3 + $0xc8] sm:$0xff]
  %v3508 = vld [vmem:[%s3 + $0xd0] sm:$0xff]
  %v3509 = vld [vmem:[%s3 + $0xd8] sm:$0xff]
  %v3510 = vld [vmem:[%s3 + $0xe0] sm:$0xff]
  %v3511 = vld [vmem:[%s3 + $0xe8] sm:$0xff]
  %v3512 = vld [vmem:[%s3 + $0xf0] sm:$0xff]
  %v3513 = vld [vmem:[%s3 + $0xf8] sm:$0xff]
  %v3514 = vld [vmem:[%s3 + $0x100] sm:$0xff]
  %v3515 = vld [vmem:[%s3 + $0x108] sm:$0xff]
  %v3516 = vld [vmem:[%s3 + $0x110] sm:$0xff]
  %v3517 = vld [vmem:[%s3 + $0x118] sm:$0xff]
  %v3518 = vld [vmem:[%s3 + $0x120] sm:$0xff]
  %v3519 = vld [vmem:[%s3 + $0x128] sm:$0xff]
  %v3520 = vld [vmem:[%s3 + $0x130] sm:$0xff]
  %v3521 = vld [vmem:[%s3 + $0x138] sm:$0xff]
  %v3522 = vld [vmem:[%s3 + $0x140] sm:$0xff]
  %v3523 = vld [vmem:[%s3 + $0x148] sm:$0xff]
  %v3524 = vld [vmem:[%s3 + $0x150] sm:$0xff]
  %v3525 = vld [vmem:[%s3 + $0x158] sm:$0xff]
  %v3526 = vld [vmem:[%s3 + $0x160] sm:$0xff]
  %v3527 = vld [vmem:[%s3 + $0x168] sm:$0xff]
  %v3528 = vld [vmem:[%s3 + $0x170] sm:$0xff]
  %v3529 = vld [vmem:[%s3 + $0x178] sm:$0xff]
  %v3530 = vld [vmem:[%s3 + $0x180] sm:$0xff]
  %v3531 = vld [vmem:[%s3 + $0x188] sm:$0xff]
  %v3532 = vld [vmem:[%s3 + $0x190] sm:$0xff]
  %v3533 = vld [vmem:[%s3 + $0x198] sm:$0xff]
  %v3534 = vld [vmem:[%s3 + $0x1a0] sm:$0xff]
  %v3535 = vld [vmem:[%s3 + $0x1a8] sm:$0xff]
  %v3536 = vld [vmem:[%s3 + $0x1b0] sm:$0xff]
  %v3537 = vld [vmem:[%s3 + $0x1b8] sm:$0xff]
  %v3538 = vld [vmem:[%s3 + $0x1c0] sm:$0xff]
  %v3539 = vld [vmem:[%s3 + $0x1c8] sm:$0xff]
  %v3540 = vld [vmem:[%s3 + $0x1d0] sm:$0xff]
  %v3541 = vld [vmem:[%s3 + $0x1d8] sm:$0xff]
  %v3542 = vld [vmem:[%s3 + $0x1e0] sm:$0xff]
  %v3543 = vld [vmem:[%s3 + $0x1e8] sm:$0xff]
  %v3544 = vld [vmem:[%s3 + $0x1f0] sm:$0xff]
  %v3545 = vld [vmem:[%s3 + $0x1f8] sm:$0xff]
  %v3546 = vld [vmem:[%s3 + $0x200] sm:$0xff]
  %v3547 = vld [vmem:[%s3 + $0x208] sm:$0xff]
  %v3548 = vld [vmem:[%s3 + $0x210] sm:$0xff]
  %v3549 = vld [vmem:[%s3 + $0x218] sm:$0xff]
  %v3550 = vld [vmem:[%s3 + $0x220] sm:$0xff]
  %v3551 = vld [vmem:[%s3 + $0x228] sm:$0xff]
  %v3552 = vld [vmem:[%s3 + $0x230] sm:$0xff]
  %v3553 = vld [vmem:[%s3 + $0x238] sm:$0xff]
  %v3554 = vld [vmem:[%s3 + $0x240] sm:$0xff]
  %v3555 = vld [vmem:[%s3 + $0x248] sm:$0xff]
  %v3556 = vld [vmem:[%s3 + $0x250] sm:$0xff]
  %v3557 = vld [vmem:[%s3 + $0x258] sm:$0xff]
  %v3558 = vld [vmem:[%s3 + $0x260] sm:$0xff]
  %v3559 = vld [vmem:[%s3 + $0x268] sm:$0xff]
  %v3560 = vld [vmem:[%s3 + $0x270] sm:$0xff]
  %v3561 = vld [vmem:[%s3 + $0x278] sm:$0xff]
  %v3562 = vld [vmem:[%s3 + $0x280] sm:$0xff]
  %v3563 = vld [vmem:[%s3 + $0x288] sm:$0xff]
  %v3564 = vld [vmem:[%s3 + $0x290] sm:$0xff]
  %v3565 = vld [vmem:[%s3 + $0x298] sm:$0xff]
  %v3566 = vld [vmem:[%s3 + $0x2a0] sm:$0xff]
  %v3567 = vld [vmem:[%s3 + $0x2a8] sm:$0xff]
  %v3568 = vld [vmem:[%s3 + $0x2b0] sm:$0xff]
  %v3569 = vld [vmem:[%s3 + $0x2b8] sm:$0xff]
  %v3570 = vld [vmem:[%s3 + $0x2c0] sm:$0xff]
  %v3571 = vld [vmem:[%s3 + $0x2c8] sm:$0xff]
  %v3572 = vld [vmem:[%s3 + $0x2d0] sm:$0xff]
  %v3573 = vld [vmem:[%s3 + $0x2d8] sm:$0xff]
  %v3574 = vld [vmem:[%s3 + $0x2e0] sm:$0xff]
  %v3575 = vld [vmem:[%s3 + $0x2e8] sm:$0xff]
  %v3576 = vld [vmem:[%s3 + $0x2f0] sm:$0xff]
  %v3577 = vld [vmem:[%s3 + $0x2f8] sm:$0xff]
  %v3578 = vld [vmem:[%s3 + $0x300] sm:$0xff]
  %v3579 = vld [vmem:[%s3 + $0x308] sm:$0xff]
  %v3580 = vld [vmem:[%s3 + $0x310] sm:$0xff]
  %v3581 = vld [vmem:[%s3 + $0x318] sm:$0xff]
  %v3582 = vld [vmem:[%s3 + $0x320] sm:$0xff]
  %v3583 = vld [vmem:[%s3 + $0x328] sm:$0xff]
  %v3584 = vld [vmem:[%s3 + $0x330] sm:$0xff]
  %v3585 = vld [vmem:[%s3 + $0x338] sm:$0xff]
  %v3586 = vld [vmem:[%s3 + $0x340] sm:$0xff]
  %v3587 = vld [vmem:[%s3 + $0x348] sm:$0xff]
  %v3588 = vld [vmem:[%s3 + $0x350] sm:$0xff]
  %v3589 = vld [vmem:[%s3 + $0x358] sm:$0xff]
  %v3590 = vld [vmem:[%s3 + $0x360] sm:$0xff]
  %v3591 = vld [vmem:[%s3 + $0x368] sm:$0xff]
  %v3592 = vld [vmem:[%s3 + $0x370] sm:$0xff]
  %v3593 = vld [vmem:[%s3 + $0x378] sm:$0xff]
  %v3594 = vld [vmem:[%s3 + $0x380] sm:$0xff]
  %v3595 = vld [vmem:[%s3 + $0x388] sm:$0xff]
  %v3596 = vld [vmem:[%s3 + $0x390] sm:$0xff]
  %v3597 = vld [vmem:[%s3 + $0x398] sm:$0xff]
  %v3598 = vld [vmem:[%s3 + $0x3a0] sm:$0xff]
  %v3599 = vld [vmem:[%s3 + $0x3a8] sm:$0xff]
  %v3600 = vld [vmem:[%s3 + $0x3b0] sm:$0xff]
  %v3601 = vld [vmem:[%s3 + $0x3b8] sm:$0xff]
  %v3602 = vld [vmem:[%s3 + $0x3c0] sm:$0xff]
  %v3603 = vld [vmem:[%s3 + $0x3c8] sm:$0xff]
  %v3604 = vld [vmem:[%s3 + $0x3d0] sm:$0xff]
  %v3605 = vld [vmem:[%s3 + $0x3d8] sm:$0xff]
  %v3606 = vld [vmem:[%s3 + $0x3e0] sm:$0xff]
  %v3607 = vld [vmem:[%s3 + $0x3e8] sm:$0xff]
  %v3608 = vld [vmem:[%s3 + $0x3f0] sm:$0xff]
  %v3609 = vld [vmem:[%s3 + $0x3f8] sm:$0xff]
  %v3610 = vld [vmem:[%s3 + $0x400] sm:$0xff]
  %v3611 = vld [vmem:[%s3 + $0x408] sm:$0xff]
  %v3612 = vld [vmem:[%s3 + $0x410] sm:$0xff]
  %v3613 = vld [vmem:[%s3 + $0x418] sm:$0xff]
  %v3614 = vld [vmem:[%s3 + $0x420] sm:$0xff]
  %v3615 = vld [vmem:[%s3 + $0x428] sm:$0xff]
  %v3616 = vld [vmem:[%s3 + $0x430] sm:$0xff]
  %v3617 = vld [vmem:[%s3 + $0x438] sm:$0xff]
  %v3618 = vld [vmem:[%s3 + $0x440] sm:$0xff]
  %v3619 = vld [vmem:[%s3 + $0x448] sm:$0xff]
  %v3620 = vld [vmem:[%s3 + $0x450] sm:$0xff]
  %v3621 = vld [vmem:[%s3 + $0x458] sm:$0xff]
  %v3622 = vld [vmem:[%s3 + $0x460] sm:$0xff]
  %v3623 = vld [vmem:[%s3 + $0x468] sm:$0xff]
  %v3624 = vld [vmem:[%s3 + $0x470] sm:$0xff]
  %v3625 = vld [vmem:[%s3 + $0x478] sm:$0xff]
  %v3626 = vld [vmem:[%s3 + $0x480] sm:$0xff]
  %v3627 = vld [vmem:[%s3 + $0x488] sm:$0xff]
  %v3628 = vld [vmem:[%s3 + $0x490] sm:$0xff]
  %v3629 = vld [vmem:[%s3 + $0x498] sm:$0xff]
  %v3630 = vld [vmem:[%s3 + $0x4a0] sm:$0xff]
  %v3631 = vld [vmem:[%s3 + $0x4a8] sm:$0xff]
  %v3632 = vld [vmem:[%s3 + $0x4b0] sm:$0xff]
  %v3633 = vld [vmem:[%s3 + $0x4b8] sm:$0xff]
  %v3634 = vld [vmem:[%s3 + $0x4c0] sm:$0xff]
  %v3635 = vld [vmem:[%s3 + $0x4c8] sm:$0xff]
  %v3636 = vld [vmem:[%s3 + $0x4d0] sm:$0xff]
  %v3637 = vld [vmem:[%s3 + $0x4d8] sm:$0xff]
  %v3638 = vld [vmem:[%s3 + $0x4e0] sm:$0xff]
  %v3639 = vld [vmem:[%s3 + $0x4e8] sm:$0xff]
  %v3640 = vld [vmem:[%s3 + $0x4f0] sm:$0xff]
  %v3641 = vld [vmem:[%s3 + $0x4f8] sm:$0xff]
  %v3642 = vld [vmem:[%s3 + $0x500] sm:$0xff]
  %v3643 = vld [vmem:[%s3 + $0x508] sm:$0xff]
  %v3644 = vld [vmem:[%s3 + $0x510] sm:$0xff]
  %v3645 = vld [vmem:[%s3 + $0x518] sm:$0xff]
  %v3646 = vld [vmem:[%s3 + $0x520] sm:$0xff]
  %v3647 = vld [vmem:[%s3 + $0x528] sm:$0xff]
  %v3648 = vld [vmem:[%s3 + $0x530] sm:$0xff]
  %v3649 = vld [vmem:[%s3 + $0x538] sm:$0xff]
  %v3650 = vld [vmem:[%s3 + $0x540] sm:$0xff]
  %v3651 = vld [vmem:[%s3 + $0x548] sm:$0xff]
  %v3652 = vld [vmem:[%s3 + $0x550] sm:$0xff]
  %v3653 = vld [vmem:[%s3 + $0x558] sm:$0xff]
  %v3654 = vld [vmem:[%s3 + $0x560] sm:$0xff]
  %v3655 = vld [vmem:[%s3 + $0x568] sm:$0xff]
  %v3656 = vld [vmem:[%s3 + $0x570] sm:$0xff]
  %v3657 = vld [vmem:[%s3 + $0x578] sm:$0xff]
  %v3658 = vld [vmem:[%s3 + $0x580] sm:$0xff]
  %v3659 = vld [vmem:[%s3 + $0x588] sm:$0xff]
  %v3660 = vld [vmem:[%s3 + $0x590] sm:$0xff]
  %v3661 = vld [vmem:[%s3 + $0x598] sm:$0xff]
  %v3662 = vld [vmem:[%s3 + $0x5a0] sm:$0xff]
  %v3663 = vld [vmem:[%s3 + $0x5a8] sm:$0xff]
  %v3664 = vld [vmem:[%s3 + $0x5b0] sm:$0xff]
  %v3665 = vld [vmem:[%s3 + $0x5b8] sm:$0xff]
  %v3666 = vld [vmem:[%s3 + $0x5c0] sm:$0xff]
  %v3667 = vld [vmem:[%s3 + $0x5c8] sm:$0xff]
  %v3668 = vld [vmem:[%s3 + $0x5d0] sm:$0xff]
  %v3669 = vld [vmem:[%s3 + $0x5d8] sm:$0xff]
  %v3670 = vld [vmem:[%s3 + $0x5e0] sm:$0xff]
  %v3671 = vld [vmem:[%s3 + $0x5e8] sm:$0xff]
  %v3672 = vld [vmem:[%s3 + $0x5f0] sm:$0xff]
  %v3673 = vld [vmem:[%s3 + $0x5f8] sm:$0xff]
  %v3674 = vld [vmem:[%s3 + $0x600] sm:$0xff]
  %v3675 = vld [vmem:[%s3 + $0x608] sm:$0xff]
  %v3676 = vld [vmem:[%s3 + $0x610] sm:$0xff]
  %v3677 = vld [vmem:[%s3 + $0x618] sm:$0xff]
  %v3678 = vld [vmem:[%s3 + $0x620] sm:$0xff]
  %v3679 = vld [vmem:[%s3 + $0x628] sm:$0xff]
  %v3680 = vld [vmem:[%s3 + $0x630] sm:$0xff]
  %v3681 = vld [vmem:[%s3 + $0x638] sm:$0xff]
  %v3682 = vld [vmem:[%s3 + $0x640] sm:$0xff]
  %v3683 = vld [vmem:[%s3 + $0x648] sm:$0xff]
  %v3684 = vld [vmem:[%s3 + $0x650] sm:$0xff]
  %v3685 = vld [vmem:[%s3 + $0x658] sm:$0xff]
  %v3686 = vld [vmem:[%s3 + $0x660] sm:$0xff]
  %v3687 = vld [vmem:[%s3 + $0x668] sm:$0xff]
  %v3688 = vld [vmem:[%s3 + $0x670] sm:$0xff]
  %v3689 = vld [vmem:[%s3 + $0x678] sm:$0xff]
  %v3690 = vld [vmem:[%s3 + $0x680] sm:$0xff]
  %v3691 = vld [vmem:[%s3 + $0x688] sm:$0xff]
  %v3692 = vld [vmem:[%s3 + $0x690] sm:$0xff]
  %v3693 = vld [vmem:[%s3 + $0x698] sm:$0xff]
  %v3694 = vld [vmem:[%s3 + $0x6a0] sm:$0xff]
  %v3695 = vld [vmem:[%s3 + $0x6a8] sm:$0xff]
  %v3696 = vld [vmem:[%s3 + $0x6b0] sm:$0xff]
  %v3697 = vld [vmem:[%s3 + $0x6b8] sm:$0xff]
  %v3698 = vld [vmem:[%s3 + $0x6c0] sm:$0xff]
  %v3699 = vld [vmem:[%s3 + $0x6c8] sm:$0xff]
  %v3700 = vld [vmem:[%s3 + $0x6d0] sm:$0xff]
  %v3701 = vld [vmem:[%s3 + $0x6d8] sm:$0xff]
  %v3702 = vld [vmem:[%s3 + $0x6e0] sm:$0xff]
  %v3703 = vld [vmem:[%s3 + $0x6e8] sm:$0xff]
  %v3704 = vld [vmem:[%s3 + $0x6f0] sm:$0xff]
  %v3705 = vld [vmem:[%s3 + $0x6f8] sm:$0xff]
  %v3706 = vld [vmem:[%s3 + $0x700] sm:$0xff]
  %v3707 = vld [vmem:[%s3 + $0x708] sm:$0xff]
  %v3708 = vld [vmem:[%s3 + $0x710] sm:$0xff]
  %v3709 = vld [vmem:[%s3 + $0x718] sm:$0xff]
  %v3710 = vld [vmem:[%s3 + $0x720] sm:$0xff]
  %v3711 = vld [vmem:[%s3 + $0x728] sm:$0xff]
  %v3712 = vld [vmem:[%s3 + $0x730] sm:$0xff]
  %v3713 = vld [vmem:[%s3 + $0x738] sm:$0xff]
  %v3714 = vld [vmem:[%s3 + $0x740] sm:$0xff]
  %v3715 = vld [vmem:[%s3 + $0x748] sm:$0xff]
  %v3716 = vld [vmem:[%s3 + $0x750] sm:$0xff]
  %v3717 = vld [vmem:[%s3 + $0x758] sm:$0xff]
  %v3718 = vld [vmem:[%s3 + $0x760] sm:$0xff]
  %v3719 = vld [vmem:[%s3 + $0x768] sm:$0xff]
  %v3720 = vld [vmem:[%s3 + $0x770] sm:$0xff]
  %v3721 = vld [vmem:[%s3 + $0x778] sm:$0xff]
  %v3722 = vld [vmem:[%s3 + $0x780] sm:$0xff]
  %v3723 = vld [vmem:[%s3 + $0x788] sm:$0xff]
  %v3724 = vld [vmem:[%s3 + $0x790] sm:$0xff]
  %v3725 = vld [vmem:[%s3 + $0x798] sm:$0xff]
  %v3726 = vld [vmem:[%s3 + $0x7a0] sm:$0xff]
  %v3727 = vld [vmem:[%s3 + $0x7a8] sm:$0xff]
  %v3728 = vld [vmem:[%s3 + $0x7b0] sm:$0xff]
  %v3729 = vld [vmem:[%s3 + $0x7b8] sm:$0xff]
  %v3730 = vld [vmem:[%s3 + $0x7c0] sm:$0xff]
  %v3731 = vld [vmem:[%s3 + $0x7c8] sm:$0xff]
  %v3732 = vld [vmem:[%s3 + $0x7d0] sm:$0xff]
  %v3733 = vld [vmem:[%s3 + $0x7d8] sm:$0xff]
  %v3734 = vld [vmem:[%s3 + $0x7e0] sm:$0xff]
  %v3735 = vld [vmem:[%s3 + $0x7e8] sm:$0xff]
  %v3736 = vld [vmem:[%s3 + $0x7f0] sm:$0xff]
  %v3737 = vld [vmem:[%s3 + $0x7f8] sm:$0xff]
  %v3738 = vld [vmem:[%s4] sm:$0xf]
  %v3740 = vlaneseq
  %v3741 = vshrl.u32 %v3740, 7
  %v3742 = vsub.s32 0, %v3741
  %v3743 = vrot.slane %v3738, %v3742
  %v3744 = vlaneseq
  %v3745 = vshrl.u32 %v3744, 7
  %v3746 = vsub.s32 1, %v3745
  %v3747 = vrot.slane %v3738, %v3746
  %v3748 = vlaneseq
  %v3749 = vshrl.u32 %v3748, 7
  %v3750 = vsub.s32 2, %v3749
  %v3751 = vrot.slane %v3738, %v3750
  %v3752 = vlaneseq
  %v3753 = vshrl.u32 %v3752, 7
  %v3754 = vsub.s32 3, %v3753
  %v3755 = vrot.slane %v3738, %v3754
  %v4016 = vunpack.c.l.b16 %v3482
  %v4017 = vunpack.c.h.b16 %v3482
  %v4018 = vunpack.c.l.b16 %v3483
  %v4019 = vunpack.c.h.b16 %v3483
  %v4020 = vunpack.c.l.b16 %v3484
  %v4021 = vunpack.c.h.b16 %v3484
  %v4022 = vunpack.c.l.b16 %v3485
  %v4023 = vunpack.c.h.b16 %v3485
  %v4024 = vunpack.c.l.b16 %v3486
  %v4025 = vunpack.c.h.b16 %v3486
  %v4026 = vunpack.c.l.b16 %v3487
  %v4027 = vunpack.c.h.b16 %v3487
  %v4028 = vunpack.c.l.b16 %v3488
  %v4029 = vunpack.c.h.b16 %v3488
  %v4030 = vunpack.c.l.b16 %v3489
  %v4031 = vunpack.c.h.b16 %v3489
  %v4032 = vunpack.c.l.b16 %v3490
  %v4033 = vunpack.c.h.b16 %v3490
  %v4034 = vunpack.c.l.b16 %v3491
  %v4035 = vunpack.c.h.b16 %v3491
  %v4036 = vunpack.c.l.b16 %v3492
  %v4037 = vunpack.c.h.b16 %v3492
  %v4038 = vunpack.c.l.b16 %v3493
  %v4039 = vunpack.c.h.b16 %v3493
  %v4040 = vunpack.c.l.b16 %v3494
  %v4041 = vunpack.c.h.b16 %v3494
  %v4042 = vunpack.c.l.b16 %v3495
  %v4043 = vunpack.c.h.b16 %v3495
  %v4044 = vunpack.c.l.b16 %v3496
  %v4045 = vunpack.c.h.b16 %v3496
  %v4046 = vunpack.c.l.b16 %v3497
  %v4047 = vunpack.c.h.b16 %v3497
  %v4048 = vunpack.c.l.b16 %v3498
  %v4049 = vunpack.c.h.b16 %v3498
  %v4050 = vunpack.c.l.b16 %v3499
  %v4051 = vunpack.c.h.b16 %v3499
  %v4052 = vunpack.c.l.b16 %v3500
  %v4053 = vunpack.c.h.b16 %v3500
  %v4054 = vunpack.c.l.b16 %v3501
  %v4055 = vunpack.c.h.b16 %v3501
  %v4056 = vunpack.c.l.b16 %v3502
  %v4057 = vunpack.c.h.b16 %v3502
  %v4058 = vunpack.c.l.b16 %v3503
  %v4059 = vunpack.c.h.b16 %v3503
  %v4060 = vunpack.c.l.b16 %v3504
  %v4061 = vunpack.c.h.b16 %v3504
  %v4062 = vunpack.c.l.b16 %v3505
  %v4063 = vunpack.c.h.b16 %v3505
  %v4064 = vunpack.c.l.b16 %v3506
  %v4065 = vunpack.c.h.b16 %v3506
  %v4066 = vunpack.c.l.b16 %v3507
  %v4067 = vunpack.c.h.b16 %v3507
  %v4068 = vunpack.c.l.b16 %v3508
  %v4069 = vunpack.c.h.b16 %v3508
  %v4070 = vunpack.c.l.b16 %v3509
  %v4071 = vunpack.c.h.b16 %v3509
  %v4072 = vunpack.c.l.b16 %v3510
  %v4073 = vunpack.c.h.b16 %v3510
  %v4074 = vunpack.c.l.b16 %v3511
  %v4075 = vunpack.c.h.b16 %v3511
  %v4076 = vunpack.c.l.b16 %v3512
  %v4077 = vunpack.c.h.b16 %v3512
  %v4078 = vunpack.c.l.b16 %v3513
  %v4079 = vunpack.c.h.b16 %v3513
  %v4080 = vunpack.c.l.b16 %v3514
  %v4081 = vunpack.c.h.b16 %v3514
  %v4082 = vunpack.c.l.b16 %v3515
  %v4083 = vunpack.c.h.b16 %v3515
  %v4084 = vunpack.c.l.b16 %v3516
  %v4085 = vunpack.c.h.b16 %v3516
  %v4086 = vunpack.c.l.b16 %v3517
  %v4087 = vunpack.c.h.b16 %v3517
  %v4088 = vunpack.c.l.b16 %v3518
  %v4089 = vunpack.c.h.b16 %v3518
  %v4090 = vunpack.c.l.b16 %v3519
  %v4091 = vunpack.c.h.b16 %v3519
  %v4092 = vunpack.c.l.b16 %v3520
  %v4093 = vunpack.c.h.b16 %v3520
  %v4094 = vunpack.c.l.b16 %v3521
  %v4095 = vunpack.c.h.b16 %v3521
  %v4096 = vunpack.c.l.b16 %v3522
  %v4097 = vunpack.c.h.b16 %v3522
  %v4098 = vunpack.c.l.b16 %v3523
  %v4099 = vunpack.c.h.b16 %v3523
  %v4100 = vunpack.c.l.b16 %v3524
  %v4101 = vunpack.c.h.b16 %v3524
  %v4102 = vunpack.c.l.b16 %v3525
  %v4103 = vunpack.c.h.b16 %v3525
  %v4104 = vunpack.c.l.b16 %v3526
  %v4105 = vunpack.c.h.b16 %v3526
  %v4106 = vunpack.c.l.b16 %v3527
  %v4107 = vunpack.c.h.b16 %v3527
  %v4108 = vunpack.c.l.b16 %v3528
  %v4109 = vunpack.c.h.b16 %v3528
  %v4110 = vunpack.c.l.b16 %v3529
  %v4111 = vunpack.c.h.b16 %v3529
  %v4112 = vunpack.c.l.b16 %v3530
  %v4113 = vunpack.c.h.b16 %v3530
  %v4114 = vunpack.c.l.b16 %v3531
  %v4115 = vunpack.c.h.b16 %v3531
  %v4116 = vunpack.c.l.b16 %v3532
  %v4117 = vunpack.c.h.b16 %v3532
  %v4118 = vunpack.c.l.b16 %v3533
  %v4119 = vunpack.c.h.b16 %v3533
  %v4120 = vunpack.c.l.b16 %v3534
  %v4121 = vunpack.c.h.b16 %v3534
  %v4122 = vunpack.c.l.b16 %v3535
  %v4123 = vunpack.c.h.b16 %v3535
  %v4124 = vunpack.c.l.b16 %v3536
  %v4125 = vunpack.c.h.b16 %v3536
  %v4126 = vunpack.c.l.b16 %v3537
  %v4127 = vunpack.c.h.b16 %v3537
  %v4128 = vunpack.c.l.b16 %v3538
  %v4129 = vunpack.c.h.b16 %v3538
  %v4130 = vunpack.c.l.b16 %v3539
  %v4131 = vunpack.c.h.b16 %v3539
  %v4132 = vunpack.c.l.b16 %v3540
  %v4133 = vunpack.c.h.b16 %v3540
  %v4134 = vunpack.c.l.b16 %v3541
  %v4135 = vunpack.c.h.b16 %v3541
  %v4136 = vunpack.c.l.b16 %v3542
  %v4137 = vunpack.c.h.b16 %v3542
  %v4138 = vunpack.c.l.b16 %v3543
  %v4139 = vunpack.c.h.b16 %v3543
  %v4140 = vunpack.c.l.b16 %v3544
  %v4141 = vunpack.c.h.b16 %v3544
  %v4142 = vunpack.c.l.b16 %v3545
  %v4143 = vunpack.c.h.b16 %v3545
  %v4144 = vunpack.c.l.b16 %v3546
  %v4145 = vunpack.c.h.b16 %v3546
  %v4146 = vunpack.c.l.b16 %v3547
  %v4147 = vunpack.c.h.b16 %v3547
  %v4148 = vunpack.c.l.b16 %v3548
  %v4149 = vunpack.c.h.b16 %v3548
  %v4150 = vunpack.c.l.b16 %v3549
  %v4151 = vunpack.c.h.b16 %v3549
  %v4152 = vunpack.c.l.b16 %v3550
  %v4153 = vunpack.c.h.b16 %v3550
  %v4154 = vunpack.c.l.b16 %v3551
  %v4155 = vunpack.c.h.b16 %v3551
  %v4156 = vunpack.c.l.b16 %v3552
  %v4157 = vunpack.c.h.b16 %v3552
  %v4158 = vunpack.c.l.b16 %v3553
  %v4159 = vunpack.c.h.b16 %v3553
  %v4160 = vunpack.c.l.b16 %v3554
  %v4161 = vunpack.c.h.b16 %v3554
  %v4162 = vunpack.c.l.b16 %v3555
  %v4163 = vunpack.c.h.b16 %v3555
  %v4164 = vunpack.c.l.b16 %v3556
  %v4165 = vunpack.c.h.b16 %v3556
  %v4166 = vunpack.c.l.b16 %v3557
  %v4167 = vunpack.c.h.b16 %v3557
  %v4168 = vunpack.c.l.b16 %v3558
  %v4169 = vunpack.c.h.b16 %v3558
  %v4170 = vunpack.c.l.b16 %v3559
  %v4171 = vunpack.c.h.b16 %v3559
  %v4172 = vunpack.c.l.b16 %v3560
  %v4173 = vunpack.c.h.b16 %v3560
  %v4174 = vunpack.c.l.b16 %v3561
  %v4175 = vunpack.c.h.b16 %v3561
  %v4176 = vunpack.c.l.b16 %v3562
  %v4177 = vunpack.c.h.b16 %v3562
  %v4178 = vunpack.c.l.b16 %v3563
  %v4179 = vunpack.c.h.b16 %v3563
  %v4180 = vunpack.c.l.b16 %v3564
  %v4181 = vunpack.c.h.b16 %v3564
  %v4182 = vunpack.c.l.b16 %v3565
  %v4183 = vunpack.c.h.b16 %v3565
  %v4184 = vunpack.c.l.b16 %v3566
  %v4185 = vunpack.c.h.b16 %v3566
  %v4186 = vunpack.c.l.b16 %v3567
  %v4187 = vunpack.c.h.b16 %v3567
  %v4188 = vunpack.c.l.b16 %v3568
  %v4189 = vunpack.c.h.b16 %v3568
  %v4190 = vunpack.c.l.b16 %v3569
  %v4191 = vunpack.c.h.b16 %v3569
  %v4192 = vunpack.c.l.b16 %v3570
  %v4193 = vunpack.c.h.b16 %v3570
  %v4194 = vunpack.c.l.b16 %v3571
  %v4195 = vunpack.c.h.b16 %v3571
  %v4196 = vunpack.c.l.b16 %v3572
  %v4197 = vunpack.c.h.b16 %v3572
  %v4198 = vunpack.c.l.b16 %v3573
  %v4199 = vunpack.c.h.b16 %v3573
  %v4200 = vunpack.c.l.b16 %v3574
  %v4201 = vunpack.c.h.b16 %v3574
  %v4202 = vunpack.c.l.b16 %v3575
  %v4203 = vunpack.c.h.b16 %v3575
  %v4204 = vunpack.c.l.b16 %v3576
  %v4205 = vunpack.c.h.b16 %v3576
  %v4206 = vunpack.c.l.b16 %v3577
  %v4207 = vunpack.c.h.b16 %v3577
  %v4208 = vunpack.c.l.b16 %v3578
  %v4209 = vunpack.c.h.b16 %v3578
  %v4210 = vunpack.c.l.b16 %v3579
  %v4211 = vunpack.c.h.b16 %v3579
  %v4212 = vunpack.c.l.b16 %v3580
  %v4213 = vunpack.c.h.b16 %v3580
  %v4214 = vunpack.c.l.b16 %v3581
  %v4215 = vunpack.c.h.b16 %v3581
  %v4216 = vunpack.c.l.b16 %v3582
  %v4217 = vunpack.c.h.b16 %v3582
  %v4218 = vunpack.c.l.b16 %v3583
  %v4219 = vunpack.c.h.b16 %v3583
  %v4220 = vunpack.c.l.b16 %v3584
  %v4221 = vunpack.c.h.b16 %v3584
  %v4222 = vunpack.c.l.b16 %v3585
  %v4223 = vunpack.c.h.b16 %v3585
  %v4224 = vunpack.c.l.b16 %v3586
  %v4225 = vunpack.c.h.b16 %v3586
  %v4226 = vunpack.c.l.b16 %v3587
  %v4227 = vunpack.c.h.b16 %v3587
  %v4228 = vunpack.c.l.b16 %v3588
  %v4229 = vunpack.c.h.b16 %v3588
  %v4230 = vunpack.c.l.b16 %v3589
  %v4231 = vunpack.c.h.b16 %v3589
  %v4232 = vunpack.c.l.b16 %v3590
  %v4233 = vunpack.c.h.b16 %v3590
  %v4234 = vunpack.c.l.b16 %v3591
  %v4235 = vunpack.c.h.b16 %v3591
  %v4236 = vunpack.c.l.b16 %v3592
  %v4237 = vunpack.c.h.b16 %v3592
  %v4238 = vunpack.c.l.b16 %v3593
  %v4239 = vunpack.c.h.b16 %v3593
  %v4240 = vunpack.c.l.b16 %v3594
  %v4241 = vunpack.c.h.b16 %v3594
  %v4242 = vunpack.c.l.b16 %v3595
  %v4243 = vunpack.c.h.b16 %v3595
  %v4244 = vunpack.c.l.b16 %v3596
  %v4245 = vunpack.c.h.b16 %v3596
  %v4246 = vunpack.c.l.b16 %v3597
  %v4247 = vunpack.c.h.b16 %v3597
  %v4248 = vunpack.c.l.b16 %v3598
  %v4249 = vunpack.c.h.b16 %v3598
  %v4250 = vunpack.c.l.b16 %v3599
  %v4251 = vunpack.c.h.b16 %v3599
  %v4252 = vunpack.c.l.b16 %v3600
  %v4253 = vunpack.c.h.b16 %v3600
  %v4254 = vunpack.c.l.b16 %v3601
  %v4255 = vunpack.c.h.b16 %v3601
  %v4256 = vunpack.c.l.b16 %v3602
  %v4257 = vunpack.c.h.b16 %v3602
  %v4258 = vunpack.c.l.b16 %v3603
  %v4259 = vunpack.c.h.b16 %v3603
  %v4260 = vunpack.c.l.b16 %v3604
  %v4261 = vunpack.c.h.b16 %v3604
  %v4262 = vunpack.c.l.b16 %v3605
  %v4263 = vunpack.c.h.b16 %v3605
  %v4264 = vunpack.c.l.b16 %v3606
  %v4265 = vunpack.c.h.b16 %v3606
  %v4266 = vunpack.c.l.b16 %v3607
  %v4267 = vunpack.c.h.b16 %v3607
  %v4268 = vunpack.c.l.b16 %v3608
  %v4269 = vunpack.c.h.b16 %v3608
  %v4270 = vunpack.c.l.b16 %v3609
  %v4271 = vunpack.c.h.b16 %v3609
  %v4272 = vunpack.c.l.b16 %v3610
  %v4273 = vunpack.c.h.b16 %v3610
  %v4274 = vunpack.c.l.b16 %v3611
  %v4275 = vunpack.c.h.b16 %v3611
  %v4276 = vunpack.c.l.b16 %v3612
  %v4277 = vunpack.c.h.b16 %v3612
  %v4278 = vunpack.c.l.b16 %v3613
  %v4279 = vunpack.c.h.b16 %v3613
  %v4280 = vunpack.c.l.b16 %v3614
  %v4281 = vunpack.c.h.b16 %v3614
  %v4282 = vunpack.c.l.b16 %v3615
  %v4283 = vunpack.c.h.b16 %v3615
  %v4284 = vunpack.c.l.b16 %v3616
  %v4285 = vunpack.c.h.b16 %v3616
  %v4286 = vunpack.c.l.b16 %v3617
  %v4287 = vunpack.c.h.b16 %v3617
  %v4288 = vunpack.c.l.b16 %v3618
  %v4289 = vunpack.c.h.b16 %v3618
  %v4290 = vunpack.c.l.b16 %v3619
  %v4291 = vunpack.c.h.b16 %v3619
  %v4292 = vunpack.c.l.b16 %v3620
  %v4293 = vunpack.c.h.b16 %v3620
  %v4294 = vunpack.c.l.b16 %v3621
  %v4295 = vunpack.c.h.b16 %v3621
  %v4296 = vunpack.c.l.b16 %v3622
  %v4297 = vunpack.c.h.b16 %v3622
  %v4298 = vunpack.c.l.b16 %v3623
  %v4299 = vunpack.c.h.b16 %v3623
  %v4300 = vunpack.c.l.b16 %v3624
  %v4301 = vunpack.c.h.b16 %v3624
  %v4302 = vunpack.c.l.b16 %v3625
  %v4303 = vunpack.c.h.b16 %v3625
  %v4304 = vunpack.c.l.b16 %v3626
  %v4305 = vunpack.c.h.b16 %v3626
  %v4306 = vunpack.c.l.b16 %v3627
  %v4307 = vunpack.c.h.b16 %v3627
  %v4308 = vunpack.c.l.b16 %v3628
  %v4309 = vunpack.c.h.b16 %v3628
  %v4310 = vunpack.c.l.b16 %v3629
  %v4311 = vunpack.c.h.b16 %v3629
  %v4312 = vunpack.c.l.b16 %v3630
  %v4313 = vunpack.c.h.b16 %v3630
  %v4314 = vunpack.c.l.b16 %v3631
  %v4315 = vunpack.c.h.b16 %v3631
  %v4316 = vunpack.c.l.b16 %v3632
  %v4317 = vunpack.c.h.b16 %v3632
  %v4318 = vunpack.c.l.b16 %v3633
  %v4319 = vunpack.c.h.b16 %v3633
  %v4320 = vunpack.c.l.b16 %v3634
  %v4321 = vunpack.c.h.b16 %v3634
  %v4322 = vunpack.c.l.b16 %v3635
  %v4323 = vunpack.c.h.b16 %v3635
  %v4324 = vunpack.c.l.b16 %v3636
  %v4325 = vunpack.c.h.b16 %v3636
  %v4326 = vunpack.c.l.b16 %v3637
  %v4327 = vunpack.c.h.b16 %v3637
  %v4328 = vunpack.c.l.b16 %v3638
  %v4329 = vunpack.c.h.b16 %v3638
  %v4330 = vunpack.c.l.b16 %v3639
  %v4331 = vunpack.c.h.b16 %v3639
  %v4332 = vunpack.c.l.b16 %v3640
  %v4333 = vunpack.c.h.b16 %v3640
  %v4334 = vunpack.c.l.b16 %v3641
  %v4335 = vunpack.c.h.b16 %v3641
  %v4336 = vunpack.c.l.b16 %v3642
  %v4337 = vunpack.c.h.b16 %v3642
  %v4338 = vunpack.c.l.b16 %v3643
  %v4339 = vunpack.c.h.b16 %v3643
  %v4340 = vunpack.c.l.b16 %v3644
  %v4341 = vunpack.c.h.b16 %v3644
  %v4342 = vunpack.c.l.b16 %v3645
  %v4343 = vunpack.c.h.b16 %v3645
  %v4344 = vunpack.c.l.b16 %v3646
  %v4345 = vunpack.c.h.b16 %v3646
  %v4346 = vunpack.c.l.b16 %v3647
  %v4347 = vunpack.c.h.b16 %v3647
  %v4348 = vunpack.c.l.b16 %v3648
  %v4349 = vunpack.c.h.b16 %v3648
  %v4350 = vunpack.c.l.b16 %v3649
  %v4351 = vunpack.c.h.b16 %v3649
  %v4352 = vunpack.c.l.b16 %v3650
  %v4353 = vunpack.c.h.b16 %v3650
  %v4354 = vunpack.c.l.b16 %v3651
  %v4355 = vunpack.c.h.b16 %v3651
  %v4356 = vunpack.c.l.b16 %v3652
  %v4357 = vunpack.c.h.b16 %v3652
  %v4358 = vunpack.c.l.b16 %v3653
  %v4359 = vunpack.c.h.b16 %v3653
  %v4360 = vunpack.c.l.b16 %v3654
  %v4361 = vunpack.c.h.b16 %v3654
  %v4362 = vunpack.c.l.b16 %v3655
  %v4363 = vunpack.c.h.b16 %v3655
  %v4364 = vunpack.c.l.b16 %v3656
  %v4365 = vunpack.c.h.b16 %v3656
  %v4366 = vunpack.c.l.b16 %v3657
  %v4367 = vunpack.c.h.b16 %v3657
  %v4368 = vunpack.c.l.b16 %v3658
  %v4369 = vunpack.c.h.b16 %v3658
  %v4370 = vunpack.c.l.b16 %v3659
  %v4371 = vunpack.c.h.b16 %v3659
  %v4372 = vunpack.c.l.b16 %v3660
  %v4373 = vunpack.c.h.b16 %v3660
  %v4374 = vunpack.c.l.b16 %v3661
  %v4375 = vunpack.c.h.b16 %v3661
  %v4376 = vunpack.c.l.b16 %v3662
  %v4377 = vunpack.c.h.b16 %v3662
  %v4378 = vunpack.c.l.b16 %v3663
  %v4379 = vunpack.c.h.b16 %v3663
  %v4380 = vunpack.c.l.b16 %v3664
  %v4381 = vunpack.c.h.b16 %v3664
  %v4382 = vunpack.c.l.b16 %v3665
  %v4383 = vunpack.c.h.b16 %v3665
  %v4384 = vunpack.c.l.b16 %v3666
  %v4385 = vunpack.c.h.b16 %v3666
  %v4386 = vunpack.c.l.b16 %v3667
  %v4387 = vunpack.c.h.b16 %v3667
  %v4388 = vunpack.c.l.b16 %v3668
  %v4389 = vunpack.c.h.b16 %v3668
  %v4390 = vunpack.c.l.b16 %v3669
  %v4391 = vunpack.c.h.b16 %v3669
  %v4392 = vunpack.c.l.b16 %v3670
  %v4393 = vunpack.c.h.b16 %v3670
  %v4394 = vunpack.c.l.b16 %v3671
  %v4395 = vunpack.c.h.b16 %v3671
  %v4396 = vunpack.c.l.b16 %v3672
  %v4397 = vunpack.c.h.b16 %v3672
  %v4398 = vunpack.c.l.b16 %v3673
  %v4399 = vunpack.c.h.b16 %v3673
  %v4400 = vunpack.c.l.b16 %v3674
  %v4401 = vunpack.c.h.b16 %v3674
  %v4402 = vunpack.c.l.b16 %v3675
  %v4403 = vunpack.c.h.b16 %v3675
  %v4404 = vunpack.c.l.b16 %v3676
  %v4405 = vunpack.c.h.b16 %v3676
  %v4406 = vunpack.c.l.b16 %v3677
  %v4407 = vunpack.c.h.b16 %v3677
  %v4408 = vunpack.c.l.b16 %v3678
  %v4409 = vunpack.c.h.b16 %v3678
  %v4410 = vunpack.c.l.b16 %v3679
  %v4411 = vunpack.c.h.b16 %v3679
  %v4412 = vunpack.c.l.b16 %v3680
  %v4413 = vunpack.c.h.b16 %v3680
  %v4414 = vunpack.c.l.b16 %v3681
  %v4415 = vunpack.c.h.b16 %v3681
  %v4416 = vunpack.c.l.b16 %v3682
  %v4417 = vunpack.c.h.b16 %v3682
  %v4418 = vunpack.c.l.b16 %v3683
  %v4419 = vunpack.c.h.b16 %v3683
  %v4420 = vunpack.c.l.b16 %v3684
  %v4421 = vunpack.c.h.b16 %v3684
  %v4422 = vunpack.c.l.b16 %v3685
  %v4423 = vunpack.c.h.b16 %v3685
  %v4424 = vunpack.c.l.b16 %v3686
  %v4425 = vunpack.c.h.b16 %v3686
  %v4426 = vunpack.c.l.b16 %v3687
  %v4427 = vunpack.c.h.b16 %v3687
  %v4428 = vunpack.c.l.b16 %v3688
  %v4429 = vunpack.c.h.b16 %v3688
  %v4430 = vunpack.c.l.b16 %v3689
  %v4431 = vunpack.c.h.b16 %v3689
  %v4432 = vunpack.c.l.b16 %v3690
  %v4433 = vunpack.c.h.b16 %v3690
  %v4434 = vunpack.c.l.b16 %v3691
  %v4435 = vunpack.c.h.b16 %v3691
  %v4436 = vunpack.c.l.b16 %v3692
  %v4437 = vunpack.c.h.b16 %v3692
  %v4438 = vunpack.c.l.b16 %v3693
  %v4439 = vunpack.c.h.b16 %v3693
  %v4440 = vunpack.c.l.b16 %v3694
  %v4441 = vunpack.c.h.b16 %v3694
  %v4442 = vunpack.c.l.b16 %v3695
  %v4443 = vunpack.c.h.b16 %v3695
  %v4444 = vunpack.c.l.b16 %v3696
  %v4445 = vunpack.c.h.b16 %v3696
  %v4446 = vunpack.c.l.b16 %v3697
  %v4447 = vunpack.c.h.b16 %v3697
  %v4448 = vunpack.c.l.b16 %v3698
  %v4449 = vunpack.c.h.b16 %v3698
  %v4450 = vunpack.c.l.b16 %v3699
  %v4451 = vunpack.c.h.b16 %v3699
  %v4452 = vunpack.c.l.b16 %v3700
  %v4453 = vunpack.c.h.b16 %v3700
  %v4454 = vunpack.c.l.b16 %v3701
  %v4455 = vunpack.c.h.b16 %v3701
  %v4456 = vunpack.c.l.b16 %v3702
  %v4457 = vunpack.c.h.b16 %v3702
  %v4458 = vunpack.c.l.b16 %v3703
  %v4459 = vunpack.c.h.b16 %v3703
  %v4460 = vunpack.c.l.b16 %v3704
  %v4461 = vunpack.c.h.b16 %v3704
  %v4462 = vunpack.c.l.b16 %v3705
  %v4463 = vunpack.c.h.b16 %v3705
  %v4464 = vunpack.c.l.b16 %v3706
  %v4465 = vunpack.c.h.b16 %v3706
  %v4466 = vunpack.c.l.b16 %v3707
  %v4467 = vunpack.c.h.b16 %v3707
  %v4468 = vunpack.c.l.b16 %v3708
  %v4469 = vunpack.c.h.b16 %v3708
  %v4470 = vunpack.c.l.b16 %v3709
  %v4471 = vunpack.c.h.b16 %v3709
  %v4472 = vunpack.c.l.b16 %v3710
  %v4473 = vunpack.c.h.b16 %v3710
  %v4474 = vunpack.c.l.b16 %v3711
  %v4475 = vunpack.c.h.b16 %v3711
  %v4476 = vunpack.c.l.b16 %v3712
  %v4477 = vunpack.c.h.b16 %v3712
  %v4478 = vunpack.c.l.b16 %v3713
  %v4479 = vunpack.c.h.b16 %v3713
  %v4480 = vunpack.c.l.b16 %v3714
  %v4481 = vunpack.c.h.b16 %v3714
  %v4482 = vunpack.c.l.b16 %v3715
  %v4483 = vunpack.c.h.b16 %v3715
  %v4484 = vunpack.c.l.b16 %v3716
  %v4485 = vunpack.c.h.b16 %v3716
  %v4486 = vunpack.c.l.b16 %v3717
  %v4487 = vunpack.c.h.b16 %v3717
  %v4488 = vunpack.c.l.b16 %v3718
  %v4489 = vunpack.c.h.b16 %v3718
  %v4490 = vunpack.c.l.b16 %v3719
  %v4491 = vunpack.c.h.b16 %v3719
  %v4492 = vunpack.c.l.b16 %v3720
  %v4493 = vunpack.c.h.b16 %v3720
  %v4494 = vunpack.c.l.b16 %v3721
  %v4495 = vunpack.c.h.b16 %v3721
  %v4496 = vunpack.c.l.b16 %v3722
  %v4497 = vunpack.c.h.b16 %v3722
  %v4498 = vunpack.c.l.b16 %v3723
  %v4499 = vunpack.c.h.b16 %v3723
  %v4500 = vunpack.c.l.b16 %v3724
  %v4501 = vunpack.c.h.b16 %v3724
  %v4502 = vunpack.c.l.b16 %v3725
  %v4503 = vunpack.c.h.b16 %v3725
  %v4504 = vunpack.c.l.b16 %v3726
  %v4505 = vunpack.c.h.b16 %v3726
  %v4506 = vunpack.c.l.b16 %v3727
  %v4507 = vunpack.c.h.b16 %v3727
  %v4508 = vunpack.c.l.b16 %v3728
  %v4509 = vunpack.c.h.b16 %v3728
  %v4510 = vunpack.c.l.b16 %v3729
  %v4511 = vunpack.c.h.b16 %v3729
  %v4512 = vunpack.c.l.b16 %v3730
  %v4513 = vunpack.c.h.b16 %v3730
  %v4514 = vunpack.c.l.b16 %v3731
  %v4515 = vunpack.c.h.b16 %v3731
  %v4516 = vunpack.c.l.b16 %v3732
  %v4517 = vunpack.c.h.b16 %v3732
  %v4518 = vunpack.c.l.b16 %v3733
  %v4519 = vunpack.c.h.b16 %v3733
  %v4520 = vunpack.c.l.b16 %v3734
  %v4521 = vunpack.c.h.b16 %v3734
  %v4522 = vunpack.c.l.b16 %v3735
  %v4523 = vunpack.c.h.b16 %v3735
  %v4524 = vunpack.c.l.b16 %v3736
  %v4525 = vunpack.c.h.b16 %v3736
  %v4526 = vunpack.c.l.b16 %v3737
  %v4527 = vunpack.c.h.b16 %v3737
  %v4528 = vpack.c.b16 %v4020, %v4016
  %v4529 = vpack.c.b16 %v4021, %v4017
  %v4530 = vpack.c.b16 %v4022, %v4018
  %v4531 = vpack.c.b16 %v4023, %v4019
  %v4532 = vpack.c.b16 %v4028, %v4024
  %v4533 = vpack.c.b16 %v4029, %v4025
  %v4534 = vpack.c.b16 %v4030, %v4026
  %v4535 = vpack.c.b16 %v4031, %v4027
  %v4536 = vpack.c.b16 %v4036, %v4032
  %v4537 = vpack.c.b16 %v4037, %v4033
  %v4538 = vpack.c.b16 %v4038, %v4034
  %v4539 = vpack.c.b16 %v4039, %v4035
  %v4540 = vpack.c.b16 %v4044, %v4040
  %v4541 = vpack.c.b16 %v4045, %v4041
  %v4542 = vpack.c.b16 %v4046, %v4042
  %v4543 = vpack.c.b16 %v4047, %v4043
  %v4544 = vpack.c.b16 %v4052, %v4048
  %v4545 = vpack.c.b16 %v4053, %v4049
  %v4546 = vpack.c.b16 %v4054, %v4050
  %v4547 = vpack.c.b16 %v4055, %v4051
  %v4548 = vpack.c.b16 %v4060, %v4056
  %v4549 = vpack.c.b16 %v4061, %v4057
  %v4550 = vpack.c.b16 %v4062, %v4058
  %v4551 = vpack.c.b16 %v4063, %v4059
  %v4552 = vpack.c.b16 %v4068, %v4064
  %v4553 = vpack.c.b16 %v4069, %v4065
  %v4554 = vpack.c.b16 %v4070, %v4066
  %v4555 = vpack.c.b16 %v4071, %v4067
  %v4556 = vpack.c.b16 %v4076, %v4072
  %v4557 = vpack.c.b16 %v4077, %v4073
  %v4558 = vpack.c.b16 %v4078, %v4074
  %v4559 = vpack.c.b16 %v4079, %v4075
  %v4560 = vpack.c.b16 %v4084, %v4080
  %v4561 = vpack.c.b16 %v4085, %v4081
  %v4562 = vpack.c.b16 %v4086, %v4082
  %v4563 = vpack.c.b16 %v4087, %v4083
  %v4564 = vpack.c.b16 %v4092, %v4088
  %v4565 = vpack.c.b16 %v4093, %v4089
  %v4566 = vpack.c.b16 %v4094, %v4090
  %v4567 = vpack.c.b16 %v4095, %v4091
  %v4568 = vpack.c.b16 %v4100, %v4096
  %v4569 = vpack.c.b16 %v4101, %v4097
  %v4570 = vpack.c.b16 %v4102, %v4098
  %v4571 = vpack.c.b16 %v4103, %v4099
  %v4572 = vpack.c.b16 %v4108, %v4104
  %v4573 = vpack.c.b16 %v4109, %v4105
  %v4574 = vpack.c.b16 %v4110, %v4106
  %v4575 = vpack.c.b16 %v4111, %v4107
  %v4576 = vpack.c.b16 %v4116, %v4112
  %v4577 = vpack.c.b16 %v4117, %v4113
  %v4578 = vpack.c.b16 %v4118, %v4114
  %v4579 = vpack.c.b16 %v4119, %v4115
  %v4580 = vpack.c.b16 %v4124, %v4120
  %v4581 = vpack.c.b16 %v4125, %v4121
  %v4582 = vpack.c.b16 %v4126, %v4122
  %v4583 = vpack.c.b16 %v4127, %v4123
  %v4584 = vpack.c.b16 %v4132, %v4128
  %v4585 = vpack.c.b16 %v4133, %v4129
  %v4586 = vpack.c.b16 %v4134, %v4130
  %v4587 = vpack.c.b16 %v4135, %v4131
  %v4588 = vpack.c.b16 %v4140, %v4136
  %v4589 = vpack.c.b16 %v4141, %v4137
  %v4590 = vpack.c.b16 %v4142, %v4138
  %v4591 = vpack.c.b16 %v4143, %v4139
  %v4592 = vpack.c.b16 %v4148, %v4144
  %v4593 = vpack.c.b16 %v4149, %v4145
  %v4594 = vpack.c.b16 %v4150, %v4146
  %v4595 = vpack.c.b16 %v4151, %v4147
  %v4596 = vpack.c.b16 %v4156, %v4152
  %v4597 = vpack.c.b16 %v4157, %v4153
  %v4598 = vpack.c.b16 %v4158, %v4154
  %v4599 = vpack.c.b16 %v4159, %v4155
  %v4600 = vpack.c.b16 %v4164, %v4160
  %v4601 = vpack.c.b16 %v4165, %v4161
  %v4602 = vpack.c.b16 %v4166, %v4162
  %v4603 = vpack.c.b16 %v4167, %v4163
  %v4604 = vpack.c.b16 %v4172, %v4168
  %v4605 = vpack.c.b16 %v4173, %v4169
  %v4606 = vpack.c.b16 %v4174, %v4170
  %v4607 = vpack.c.b16 %v4175, %v4171
  %v4608 = vpack.c.b16 %v4180, %v4176
  %v4609 = vpack.c.b16 %v4181, %v4177
  %v4610 = vpack.c.b16 %v4182, %v4178
  %v4611 = vpack.c.b16 %v4183, %v4179
  %v4612 = vpack.c.b16 %v4188, %v4184
  %v4613 = vpack.c.b16 %v4189, %v4185
  %v4614 = vpack.c.b16 %v4190, %v4186
  %v4615 = vpack.c.b16 %v4191, %v4187
  %v4616 = vpack.c.b16 %v4196, %v4192
  %v4617 = vpack.c.b16 %v4197, %v4193
  %v4618 = vpack.c.b16 %v4198, %v4194
  %v4619 = vpack.c.b16 %v4199, %v4195
  %v4620 = vpack.c.b16 %v4204, %v4200
  %v4621 = vpack.c.b16 %v4205, %v4201
  %v4622 = vpack.c.b16 %v4206, %v4202
  %v4623 = vpack.c.b16 %v4207, %v4203
  %v4624 = vpack.c.b16 %v4212, %v4208
  %v4625 = vpack.c.b16 %v4213, %v4209
  %v4626 = vpack.c.b16 %v4214, %v4210
  %v4627 = vpack.c.b16 %v4215, %v4211
  %v4628 = vpack.c.b16 %v4220, %v4216
  %v4629 = vpack.c.b16 %v4221, %v4217
  %v4630 = vpack.c.b16 %v4222, %v4218
  %v4631 = vpack.c.b16 %v4223, %v4219
  %v4632 = vpack.c.b16 %v4228, %v4224
  %v4633 = vpack.c.b16 %v4229, %v4225
  %v4634 = vpack.c.b16 %v4230, %v4226
  %v4635 = vpack.c.b16 %v4231, %v4227
  %v4636 = vpack.c.b16 %v4236, %v4232
  %v4637 = vpack.c.b16 %v4237, %v4233
  %v4638 = vpack.c.b16 %v4238, %v4234
  %v4639 = vpack.c.b16 %v4239, %v4235
  %v4640 = vpack.c.b16 %v4244, %v4240
  %v4641 = vpack.c.b16 %v4245, %v4241
  %v4642 = vpack.c.b16 %v4246, %v4242
  %v4643 = vpack.c.b16 %v4247, %v4243
  %v4644 = vpack.c.b16 %v4252, %v4248
  %v4645 = vpack.c.b16 %v4253, %v4249
  %v4646 = vpack.c.b16 %v4254, %v4250
  %v4647 = vpack.c.b16 %v4255, %v4251
  %v4648 = vpack.c.b16 %v4260, %v4256
  %v4649 = vpack.c.b16 %v4261, %v4257
  %v4650 = vpack.c.b16 %v4262, %v4258
  %v4651 = vpack.c.b16 %v4263, %v4259
  %v4652 = vpack.c.b16 %v4268, %v4264
  %v4653 = vpack.c.b16 %v4269, %v4265
  %v4654 = vpack.c.b16 %v4270, %v4266
  %v4655 = vpack.c.b16 %v4271, %v4267
  %v4656 = vpack.c.b16 %v4276, %v4272
  %v4657 = vpack.c.b16 %v4277, %v4273
  %v4658 = vpack.c.b16 %v4278, %v4274
  %v4659 = vpack.c.b16 %v4279, %v4275
  %v4660 = vpack.c.b16 %v4284, %v4280
  %v4661 = vpack.c.b16 %v4285, %v4281
  %v4662 = vpack.c.b16 %v4286, %v4282
  %v4663 = vpack.c.b16 %v4287, %v4283
  %v4664 = vpack.c.b16 %v4292, %v4288
  %v4665 = vpack.c.b16 %v4293, %v4289
  %v4666 = vpack.c.b16 %v4294, %v4290
  %v4667 = vpack.c.b16 %v4295, %v4291
  %v4668 = vpack.c.b16 %v4300, %v4296
  %v4669 = vpack.c.b16 %v4301, %v4297
  %v4670 = vpack.c.b16 %v4302, %v4298
  %v4671 = vpack.c.b16 %v4303, %v4299
  %v4672 = vpack.c.b16 %v4308, %v4304
  %v4673 = vpack.c.b16 %v4309, %v4305
  %v4674 = vpack.c.b16 %v4310, %v4306
  %v4675 = vpack.c.b16 %v4311, %v4307
  %v4676 = vpack.c.b16 %v4316, %v4312
  %v4677 = vpack.c.b16 %v4317, %v4313
  %v4678 = vpack.c.b16 %v4318, %v4314
  %v4679 = vpack.c.b16 %v4319, %v4315
  %v4680 = vpack.c.b16 %v4324, %v4320
  %v4681 = vpack.c.b16 %v4325, %v4321
  %v4682 = vpack.c.b16 %v4326, %v4322
  %v4683 = vpack.c.b16 %v4327, %v4323
  %v4684 = vpack.c.b16 %v4332, %v4328
  %v4685 = vpack.c.b16 %v4333, %v4329
  %v4686 = vpack.c.b16 %v4334, %v4330
  %v4687 = vpack.c.b16 %v4335, %v4331
  %v4688 = vpack.c.b16 %v4340, %v4336
  %v4689 = vpack.c.b16 %v4341, %v4337
  %v4690 = vpack.c.b16 %v4342, %v4338
  %v4691 = vpack.c.b16 %v4343, %v4339
  %v4692 = vpack.c.b16 %v4348, %v4344
  %v4693 = vpack.c.b16 %v4349, %v4345
  %v4694 = vpack.c.b16 %v4350, %v4346
  %v4695 = vpack.c.b16 %v4351, %v4347
  %v4696 = vpack.c.b16 %v4356, %v4352
  %v4697 = vpack.c.b16 %v4357, %v4353
  %v4698 = vpack.c.b16 %v4358, %v4354
  %v4699 = vpack.c.b16 %v4359, %v4355
  %v4700 = vpack.c.b16 %v4364, %v4360
  %v4701 = vpack.c.b16 %v4365, %v4361
  %v4702 = vpack.c.b16 %v4366, %v4362
  %v4703 = vpack.c.b16 %v4367, %v4363
  %v4704 = vpack.c.b16 %v4372, %v4368
  %v4705 = vpack.c.b16 %v4373, %v4369
  %v4706 = vpack.c.b16 %v4374, %v4370
  %v4707 = vpack.c.b16 %v4375, %v4371
  %v4708 = vpack.c.b16 %v4380, %v4376
  %v4709 = vpack.c.b16 %v4381, %v4377
  %v4710 = vpack.c.b16 %v4382, %v4378
  %v4711 = vpack.c.b16 %v4383, %v4379
  %v4712 = vpack.c.b16 %v4388, %v4384
  %v4713 = vpack.c.b16 %v4389, %v4385
  %v4714 = vpack.c.b16 %v4390, %v4386
  %v4715 = vpack.c.b16 %v4391, %v4387
  %v4716 = vpack.c.b16 %v4396, %v4392
  %v4717 = vpack.c.b16 %v4397, %v4393
  %v4718 = vpack.c.b16 %v4398, %v4394
  %v4719 = vpack.c.b16 %v4399, %v4395
  %v4720 = vpack.c.b16 %v4404, %v4400
  %v4721 = vpack.c.b16 %v4405, %v4401
  %v4722 = vpack.c.b16 %v4406, %v4402
  %v4723 = vpack.c.b16 %v4407, %v4403
  %v4724 = vpack.c.b16 %v4412, %v4408
  %v4725 = vpack.c.b16 %v4413, %v4409
  %v4726 = vpack.c.b16 %v4414, %v4410
  %v4727 = vpack.c.b16 %v4415, %v4411
  %v4728 = vpack.c.b16 %v4420, %v4416
  %v4729 = vpack.c.b16 %v4421, %v4417
  %v4730 = vpack.c.b16 %v4422, %v4418
  %v4731 = vpack.c.b16 %v4423, %v4419
  %v4732 = vpack.c.b16 %v4428, %v4424
  %v4733 = vpack.c.b16 %v4429, %v4425
  %v4734 = vpack.c.b16 %v4430, %v4426
  %v4735 = vpack.c.b16 %v4431, %v4427
  %v4736 = vpack.c.b16 %v4436, %v4432
  %v4737 = vpack.c.b16 %v4437, %v4433
  %v4738 = vpack.c.b16 %v4438, %v4434
  %v4739 = vpack.c.b16 %v4439, %v4435
  %v4740 = vpack.c.b16 %v4444, %v4440
  %v4741 = vpack.c.b16 %v4445, %v4441
  %v4742 = vpack.c.b16 %v4446, %v4442
  %v4743 = vpack.c.b16 %v4447, %v4443
  %v4744 = vpack.c.b16 %v4452, %v4448
  %v4745 = vpack.c.b16 %v4453, %v4449
  %v4746 = vpack.c.b16 %v4454, %v4450
  %v4747 = vpack.c.b16 %v4455, %v4451
  %v4748 = vpack.c.b16 %v4460, %v4456
  %v4749 = vpack.c.b16 %v4461, %v4457
  %v4750 = vpack.c.b16 %v4462, %v4458
  %v4751 = vpack.c.b16 %v4463, %v4459
  %v4752 = vpack.c.b16 %v4468, %v4464
  %v4753 = vpack.c.b16 %v4469, %v4465
  %v4754 = vpack.c.b16 %v4470, %v4466
  %v4755 = vpack.c.b16 %v4471, %v4467
  %v4756 = vpack.c.b16 %v4476, %v4472
  %v4757 = vpack.c.b16 %v4477, %v4473
  %v4758 = vpack.c.b16 %v4478, %v4474
  %v4759 = vpack.c.b16 %v4479, %v4475
  %v4760 = vpack.c.b16 %v4484, %v4480
  %v4761 = vpack.c.b16 %v4485, %v4481
  %v4762 = vpack.c.b16 %v4486, %v4482
  %v4763 = vpack.c.b16 %v4487, %v4483
  %v4764 = vpack.c.b16 %v4492, %v4488
  %v4765 = vpack.c.b16 %v4493, %v4489
  %v4766 = vpack.c.b16 %v4494, %v4490
  %v4767 = vpack.c.b16 %v4495, %v4491
  %v4768 = vpack.c.b16 %v4500, %v4496
  %v4769 = vpack.c.b16 %v4501, %v4497
  %v4770 = vpack.c.b16 %v4502, %v4498
  %v4771 = vpack.c.b16 %v4503, %v4499
  %v4772 = vpack.c.b16 %v4508, %v4504
  %v4773 = vpack.c.b16 %v4509, %v4505
  %v4774 = vpack.c.b16 %v4510, %v4506
  %v4775 = vpack.c.b16 %v4511, %v4507
  %v4776 = vpack.c.b16 %v4516, %v4512
  %v4777 = vpack.c.b16 %v4517, %v4513
  %v4778 = vpack.c.b16 %v4518, %v4514
  %v4779 = vpack.c.b16 %v4519, %v4515
  %v4780 = vpack.c.b16 %v4524, %v4520
  %v4781 = vpack.c.b16 %v4525, %v4521
  %v4782 = vpack.c.b16 %v4526, %v4522
  %v4783 = vpack.c.b16 %v4527, %v4523
  %5040 = vmatprep.subr.bf16.mxu0 %v4529
  %5041 = vmatpush1.bf16.msra.mxu0 %v4528
  %5042 = vmatprep.subr.bf16.mxu0 %v4533
  %5043 = vmatpush1.bf16.msra.mxu0 %v4532
  %5044 = vmatprep.subr.bf16.mxu0 %v4537
  %5045 = vmatpush1.bf16.msra.mxu0 %v4536
  %5046 = vmatprep.subr.bf16.mxu0 %v4541
  %5047 = vmatpush1.bf16.msra.mxu0 %v4540
  %5048 = vmatprep.subr.bf16.mxu0 %v4545
  %5049 = vmatpush1.bf16.msra.mxu0 %v4544
  %5050 = vmatprep.subr.bf16.mxu0 %v4549
  %5051 = vmatpush1.bf16.msra.mxu0 %v4548
  %5052 = vmatprep.subr.bf16.mxu0 %v4553
  %5053 = vmatpush1.bf16.msra.mxu0 %v4552
  %5054 = vmatprep.subr.bf16.mxu0 %v4557
  %5055 = vmatpush1.bf16.msra.mxu0 %v4556
  %5056 = vmatprep.subr.bf16.mxu0 %v4561
  %5057 = vmatpush1.bf16.msra.mxu0 %v4560
  %5058 = vmatprep.subr.bf16.mxu0 %v4565
  %5059 = vmatpush1.bf16.msra.mxu0 %v4564
  %5060 = vmatprep.subr.bf16.mxu0 %v4569
  %5061 = vmatpush1.bf16.msra.mxu0 %v4568
  %5062 = vmatprep.subr.bf16.mxu0 %v4573
  %5063 = vmatpush1.bf16.msra.mxu0 %v4572
  %5064 = vmatprep.subr.bf16.mxu0 %v4577
  %5065 = vmatpush1.bf16.msra.mxu0 %v4576
  %5066 = vmatprep.subr.bf16.mxu0 %v4581
  %5067 = vmatpush1.bf16.msra.mxu0 %v4580
  %5068 = vmatprep.subr.bf16.mxu0 %v4585
  %5069 = vmatpush1.bf16.msra.mxu0 %v4584
  %5070 = vmatprep.subr.bf16.mxu0 %v4589
  %5071 = vmatpush1.bf16.msra.mxu0 %v4588
  %5072 = vmatprep.mubr.bf16.mxu0 %v3475
  %5073 = vmatmul.mubr.bf16.gmra.mrb[0].mxu0 %v3474
  %v5074 = vpop.f32.mrb[0].mxu0
  %v5075 = vadd.f32 %v3743, %v5074
  %v5076 = vpop.f32.mrb[0].mxu0
  %v5077 = vadd.f32 %v3747, %v5076
  %v5078 = vpop.f32.mrb[0].mxu0
  %v5079 = vpop.f32.mrb[0].mxu0
  %5080 = vdwg.mxu0
  %5081 = vmatprep.subr.bf16.mxu0 %v4593
  %5082 = vmatpush1.bf16.msra.mxu0 %v4592
  %5083 = vmatprep.subr.bf16.mxu0 %v4597
  %5084 = vmatpush1.bf16.msra.mxu0 %v4596
  %5085 = vmatprep.subr.bf16.mxu0 %v4601
  %5086 = vmatpush1.bf16.msra.mxu0 %v4600
  %5087 = vmatprep.subr.bf16.mxu0 %v4605
  %5088 = vmatpush1.bf16.msra.mxu0 %v4604
  %5089 = vmatprep.subr.bf16.mxu0 %v4609
  %5090 = vmatpush1.bf16.msra.mxu0 %v4608
  %5091 = vmatprep.subr.bf16.mxu0 %v4613
  %5092 = vmatpush1.bf16.msra.mxu0 %v4612
  %5093 = vmatprep.subr.bf16.mxu0 %v4617
  %5094 = vmatpush1.bf16.msra.mxu0 %v4616
  %5095 = vmatprep.subr.bf16.mxu0 %v4621
  %5096 = vmatpush1.bf16.msra.mxu0 %v4620
  %5097 = vmatprep.subr.bf16.mxu0 %v4625
  %5098 = vmatpush1.bf16.msra.mxu0 %v4624
  %5099 = vmatprep.subr.bf16.mxu0 %v4629
  %5100 = vmatpush1.bf16.msra.mxu0 %v4628
  %5101 = vmatprep.subr.bf16.mxu0 %v4633
  %5102 = vmatpush1.bf16.msra.mxu0 %v4632
  %5103 = vmatprep.subr.bf16.mxu0 %v4637
  %5104 = vmatpush1.bf16.msra.mxu0 %v4636
  %5105 = vmatprep.subr.bf16.mxu0 %v4641
  %5106 = vmatpush1.bf16.msra.mxu0 %v4640
  %5107 = vmatprep.subr.bf16.mxu0 %v4645
  %5108 = vmatpush1.bf16.msra.mxu0 %v4644
  %5109 = vmatprep.subr.bf16.mxu0 %v4649
  %5110 = vmatpush1.bf16.msra.mxu0 %v4648
  %5111 = vmatprep.subr.bf16.mxu0 %v4653
  %5112 = vmatpush1.bf16.msra.mxu0 %v4652
  %5113 = vmatprep.mubr.bf16.mxu0 %v3477
  %5114 = vmatmul.mubr.bf16.gmra.mrb[0].mxu0 %v3476
  %v5115 = vpop.f32.mrb[0].mxu0
  %v5116 = vadd.f32 %v5075, %v5115
  %v5117 = vpop.f32.mrb[0].mxu0
  %v5118 = vadd.f32 %v5077, %v5117
  %v5119 = vpop.f32.mrb[0].mxu0
  %v5120 = vpop.f32.mrb[0].mxu0
  %5121 = vdwg.mxu0
  %5122 = vmatprep.subr.bf16.mxu0 %v4657
  %5123 = vmatpush1.bf16.msra.mxu0 %v4656
  %5124 = vmatprep.subr.bf16.mxu0 %v4661
  %5125 = vmatpush1.bf16.msra.mxu0 %v4660
  %5126 = vmatprep.subr.bf16.mxu0 %v4665
  %5127 = vmatpush1.bf16.msra.mxu0 %v4664
  %5128 = vmatprep.subr.bf16.mxu0 %v4669
  %5129 = vmatpush1.bf16.msra.mxu0 %v4668
  %5130 = vmatprep.subr.bf16.mxu0 %v4673
  %5131 = vmatpush1.bf16.msra.mxu0 %v4672
  %5132 = vmatprep.subr.bf16.mxu0 %v4677
  %5133 = vmatpush1.bf16.msra.mxu0 %v4676
  %5134 = vmatprep.subr.bf16.mxu0 %v4681
  %5135 = vmatpush1.bf16.msra.mxu0 %v4680
  %5136 = vmatprep.subr.bf16.mxu0 %v4685
  %5137 = vmatpush1.bf16.msra.mxu0 %v4684
  %5138 = vmatprep.subr.bf16.mxu0 %v4689
  %5139 = vmatpush1.bf16.msra.mxu0 %v4688
  %5140 = vmatprep.subr.bf16.mxu0 %v4693
  %5141 = vmatpush1.bf16.msra.mxu0 %v4692
  %5142 = vmatprep.subr.bf16.mxu0 %v4697
  %5143 = vmatpush1.bf16.msra.mxu0 %v4696
  %5144 = vmatprep.subr.bf16.mxu0 %v4701
  %5145 = vmatpush1.bf16.msra.mxu0 %v4700
  %5146 = vmatprep.subr.bf16.mxu0 %v4705
  %5147 = vmatpush1.bf16.msra.mxu0 %v4704
  %5148 = vmatprep.subr.bf16.mxu0 %v4709
  %5149 = vmatpush1.bf16.msra.mxu0 %v4708
  %5150 = vmatprep.subr.bf16.mxu0 %v4713
  %5151 = vmatpush1.bf16.msra.mxu0 %v4712
  %5152 = vmatprep.subr.bf16.mxu0 %v4717
  %5153 = vmatpush1.bf16.msra.mxu0 %v4716
  %5154 = vmatprep.mubr.bf16.mxu0 %v3479
  %5155 = vmatmul.mubr.bf16.gmra.mrb[0].mxu0 %v3478
  %v5156 = vpop.f32.mrb[0].mxu0
  %v5157 = vadd.f32 %v5116, %v5156
  %v5158 = vpop.f32.mrb[0].mxu0
  %v5159 = vadd.f32 %v5118, %v5158
  %v5160 = vpop.f32.mrb[0].mxu0
  %v5161 = vpop.f32.mrb[0].mxu0
  %5162 = vdwg.mxu0
  %5163 = vmatprep.subr.bf16.mxu0 %v4721
  %5164 = vmatpush1.bf16.msra.mxu0 %v4720
  %5165 = vmatprep.subr.bf16.mxu0 %v4725
  %5166 = vmatpush1.bf16.msra.mxu0 %v4724
  %5167 = vmatprep.subr.bf16.mxu0 %v4729
  %5168 = vmatpush1.bf16.msra.mxu0 %v4728
  %5169 = vmatprep.subr.bf16.mxu0 %v4733
  %5170 = vmatpush1.bf16.msra.mxu0 %v4732
  %5171 = vmatprep.subr.bf16.mxu0 %v4737
  %5172 = vmatpush1.bf16.msra.mxu0 %v4736
  %5173 = vmatprep.subr.bf16.mxu0 %v4741
  %5174 = vmatpush1.bf16.msra.mxu0 %v4740
  %5175 = vmatprep.subr.bf16.mxu0 %v4745
  %5176 = vmatpush1.bf16.msra.mxu0 %v4744
  %5177 = vmatprep.subr.bf16.mxu0 %v4749
  %5178 = vmatpush1.bf16.msra.mxu0 %v4748
  %5179 = vmatprep.subr.bf16.mxu0 %v4753
  %5180 = vmatpush1.bf16.msra.mxu0 %v4752
  %5181 = vmatprep.subr.bf16.mxu0 %v4757
  %5182 = vmatpush1.bf16.msra.mxu0 %v4756
  %5183 = vmatprep.subr.bf16.mxu0 %v4761
  %5184 = vmatpush1.bf16.msra.mxu0 %v4760
  %5185 = vmatprep.subr.bf16.mxu0 %v4765
  %5186 = vmatpush1.bf16.msra.mxu0 %v4764
  %5187 = vmatprep.subr.bf16.mxu0 %v4769
  %5188 = vmatpush1.bf16.msra.mxu0 %v4768
  %5189 = vmatprep.subr.bf16.mxu0 %v4773
  %5190 = vmatpush1.bf16.msra.mxu0 %v4772
  %5191 = vmatprep.subr.bf16.mxu0 %v4777
  %5192 = vmatpush1.bf16.msra.mxu0 %v4776
  %5193 = vmatprep.subr.bf16.mxu0 %v4781
  %5194 = vmatpush1.bf16.msra.mxu0 %v4780
  %5195 = vmatprep.mubr.bf16.mxu0 %v3481
  %5196 = vmatmul.mubr.bf16.gmra.mrb[0].mxu0 %v3480
  %v5197 = vpop.f32.mrb[0].mxu0
  %v5198 = vadd.f32 %v5157, %v5197
  %v5199 = vpop.f32.mrb[0].mxu0
  %v5200 = vadd.f32 %v5159, %v5199
  %v5201 = vpop.f32.mrb[0].mxu0
  %v5202 = vpop.f32.mrb[0].mxu0
  %5203 = vdwg.mxu0
  %5204 = vmatprep.subr.bf16.mxu0 %v4531
  %5205 = vmatpush1.bf16.msra.mxu0 %v4530
  %5206 = vmatprep.subr.bf16.mxu0 %v4535
  %5207 = vmatpush1.bf16.msra.mxu0 %v4534
  %5208 = vmatprep.subr.bf16.mxu0 %v4539
  %5209 = vmatpush1.bf16.msra.mxu0 %v4538
  %5210 = vmatprep.subr.bf16.mxu0 %v4543
  %5211 = vmatpush1.bf16.msra.mxu0 %v4542
  %5212 = vmatprep.subr.bf16.mxu0 %v4547
  %5213 = vmatpush1.bf16.msra.mxu0 %v4546
  %5214 = vmatprep.subr.bf16.mxu0 %v4551
  %5215 = vmatpush1.bf16.msra.mxu0 %v4550
  %5216 = vmatprep.subr.bf16.mxu0 %v4555
  %5217 = vmatpush1.bf16.msra.mxu0 %v4554
  %5218 = vmatprep.subr.bf16.mxu0 %v4559
  %5219 = vmatpush1.bf16.msra.mxu0 %v4558
  %5220 = vmatprep.subr.bf16.mxu0 %v4563
  %5221 = vmatpush1.bf16.msra.mxu0 %v4562
  %5222 = vmatprep.subr.bf16.mxu0 %v4567
  %5223 = vmatpush1.bf16.msra.mxu0 %v4566
  %5224 = vmatprep.subr.bf16.mxu0 %v4571
  %5225 = vmatpush1.bf16.msra.mxu0 %v4570
  %5226 = vmatprep.subr.bf16.mxu0 %v4575
  %5227 = vmatpush1.bf16.msra.mxu0 %v4574
  %5228 = vmatprep.subr.bf16.mxu0 %v4579
  %5229 = vmatpush1.bf16.msra.mxu0 %v4578
  %5230 = vmatprep.subr.bf16.mxu0 %v4583
  %5231 = vmatpush1.bf16.msra.mxu0 %v4582
  %5232 = vmatprep.subr.bf16.mxu0 %v4587
  %5233 = vmatpush1.bf16.msra.mxu0 %v4586
  %5234 = vmatprep.subr.bf16.mxu0 %v4591
  %5235 = vmatpush1.bf16.msra.mxu0 %v4590
  %5236 = vmatprep.mubr.bf16.mxu0 %v3475
  %5237 = vmatmul.mubr.bf16.gmra.mrb[0].mxu0 %v3474
  %v5238 = vpop.f32.mrb[0].mxu0
  %v5239 = vadd.f32 %v3751, %v5238
  %v5240 = vpop.f32.mrb[0].mxu0
  %v5241 = vadd.f32 %v3755, %v5240
  %v5242 = vpop.f32.mrb[0].mxu0
  %v5243 = vpop.f32.mrb[0].mxu0
  %5244 = vdwg.mxu0
  %5245 = vmatprep.subr.bf16.mxu0 %v4595
  %5246 = vmatpush1.bf16.msra.mxu0 %v4594
  %5247 = vmatprep.subr.bf16.mxu0 %v4599
  %5248 = vmatpush1.bf16.msra.mxu0 %v4598
  %5249 = vmatprep.subr.bf16.mxu0 %v4603
  %5250 = vmatpush1.bf16.msra.mxu0 %v4602
  %5251 = vmatprep.subr.bf16.mxu0 %v4607
  %5252 = vmatpush1.bf16.msra.mxu0 %v4606
  %5253 = vmatprep.subr.bf16.mxu0 %v4611
  %5254 = vmatpush1.bf16.msra.mxu0 %v4610
  %5255 = vmatprep.subr.bf16.mxu0 %v4615
  %5256 = vmatpush1.bf16.msra.mxu0 %v4614
  %5257 = vmatprep.subr.bf16.mxu0 %v4619
  %5258 = vmatpush1.bf16.msra.mxu0 %v4618
  %5259 = vmatprep.subr.bf16.mxu0 %v4623
  %5260 = vmatpush1.bf16.msra.mxu0 %v4622
  %5261 = vmatprep.subr.bf16.mxu0 %v4627
  %5262 = vmatpush1.bf16.msra.mxu0 %v4626
  %5263 = vmatprep.subr.bf16.mxu0 %v4631
  %5264 = vmatpush1.bf16.msra.mxu0 %v4630
  %5265 = vmatprep.subr.bf16.mxu0 %v4635
  %5266 = vmatpush1.bf16.msra.mxu0 %v4634
  %5267 = vmatprep.subr.bf16.mxu0 %v4639
  %5268 = vmatpush1.bf16.msra.mxu0 %v4638
  %5269 = vmatprep.subr.bf16.mxu0 %v4643
  %5270 = vmatpush1.bf16.msra.mxu0 %v4642
  %5271 = vmatprep.subr.bf16.mxu0 %v4647
  %5272 = vmatpush1.bf16.msra.mxu0 %v4646
  %5273 = vmatprep.subr.bf16.mxu0 %v4651
  %5274 = vmatpush1.bf16.msra.mxu0 %v4650
  %5275 = vmatprep.subr.bf16.mxu0 %v4655
  %5276 = vmatpush1.bf16.msra.mxu0 %v4654
  %5277 = vmatprep.mubr.bf16.mxu0 %v3477
  %5278 = vmatmul.mubr.bf16.gmra.mrb[0].mxu0 %v3476
  %v5279 = vpop.f32.mrb[0].mxu0
  %v5280 = vadd.f32 %v5239, %v5279
  %v5281 = vpop.f32.mrb[0].mxu0
  %v5282 = vadd.f32 %v5241, %v5281
  %v5283 = vpop.f32.mrb[0].mxu0
  %v5284 = vpop.f32.mrb[0].mxu0
  %5285 = vdwg.mxu0
  %5286 = vmatprep.subr.bf16.mxu0 %v4659
  %5287 = vmatpush1.bf16.msra.mxu0 %v4658
  %5288 = vmatprep.subr.bf16.mxu0 %v4663
  %5289 = vmatpush1.bf16.msra.mxu0 %v4662
  %5290 = vmatprep.subr.bf16.mxu0 %v4667
  %5291 = vmatpush1.bf16.msra.mxu0 %v4666
  %5292 = vmatprep.subr.bf16.mxu0 %v4671
  %5293 = vmatpush1.bf16.msra.mxu0 %v4670
  %5294 = vmatprep.subr.bf16.mxu0 %v4675
  %5295 = vmatpush1.bf16.msra.mxu0 %v4674
  %5296 = vmatprep.subr.bf16.mxu0 %v4679
  %5297 = vmatpush1.bf16.msra.mxu0 %v4678
  %5298 = vmatprep.subr.bf16.mxu0 %v4683
  %5299 = vmatpush1.bf16.msra.mxu0 %v4682
  %5300 = vmatprep.subr.bf16.mxu0 %v4687
  %5301 = vmatpush1.bf16.msra.mxu0 %v4686
  %5302 = vmatprep.subr.bf16.mxu0 %v4691
  %5303 = vmatpush1.bf16.msra.mxu0 %v4690
  %5304 = vmatprep.subr.bf16.mxu0 %v4695
  %5305 = vmatpush1.bf16.msra.mxu0 %v4694
  %5306 = vmatprep.subr.bf16.mxu0 %v4699
  %5307 = vmatpush1.bf16.msra.mxu0 %v4698
  %5308 = vmatprep.subr.bf16.mxu0 %v4703
  %5309 = vmatpush1.bf16.msra.mxu0 %v4702
  %5310 = vmatprep.subr.bf16.mxu0 %v4707
  %5311 = vmatpush1.bf16.msra.mxu0 %v4706
  %5312 = vmatprep.subr.bf16.mxu0 %v4711
  %5313 = vmatpush1.bf16.msra.mxu0 %v4710
  %5314 = vmatprep.subr.bf16.mxu0 %v4715
  %5315 = vmatpush1.bf16.msra.mxu0 %v4714
  %5316 = vmatprep.subr.bf16.mxu0 %v4719
  %5317 = vmatpush1.bf16.msra.mxu0 %v4718
  %5318 = vmatprep.mubr.bf16.mxu0 %v3479
  %5319 = vmatmul.mubr.bf16.gmra.mrb[0].mxu0 %v3478
  %v5320 = vpop.f32.mrb[0].mxu0
  %v5321 = vadd.f32 %v5280, %v5320
  %v5322 = vpop.f32.mrb[0].mxu0
  %v5323 = vadd.f32 %v5282, %v5322
  %v5324 = vpop.f32.mrb[0].mxu0
  %v5325 = vpop.f32.mrb[0].mxu0
  %5326 = vdwg.mxu0
  %5327 = vmatprep.subr.bf16.mxu0 %v4723
  %5328 = vmatpush1.bf16.msra.mxu0 %v4722
  %5329 = vmatprep.subr.bf16.mxu0 %v4727
  %5330 = vmatpush1.bf16.msra.mxu0 %v4726
  %5331 = vmatprep.subr.bf16.mxu0 %v4731
  %5332 = vmatpush1.bf16.msra.mxu0 %v4730
  %5333 = vmatprep.subr.bf16.mxu0 %v4735
  %5334 = vmatpush1.bf16.msra.mxu0 %v4734
  %5335 = vmatprep.subr.bf16.mxu0 %v4739
  %5336 = vmatpush1.bf16.msra.mxu0 %v4738
  %5337 = vmatprep.subr.bf16.mxu0 %v4743
  %5338 = vmatpush1.bf16.msra.mxu0 %v4742
  %5339 = vmatprep.subr.bf16.mxu0 %v4747
  %5340 = vmatpush1.bf16.msra.mxu0 %v4746
  %5341 = vmatprep.subr.bf16.mxu0 %v4751
  %5342 = vmatpush1.bf16.msra.mxu0 %v4750
  %5343 = vmatprep.subr.bf16.mxu0 %v4755
  %5344 = vmatpush1.bf16.msra.mxu0 %v4754
  %5345 = vmatprep.subr.bf16.mxu0 %v4759
  %5346 = vmatpush1.bf16.msra.mxu0 %v4758
  %5347 = vmatprep.subr.bf16.mxu0 %v4763
  %5348 = vmatpush1.bf16.msra.mxu0 %v4762
  %5349 = vmatprep.subr.bf16.mxu0 %v4767
  %5350 = vmatpush1.bf16.msra.mxu0 %v4766
  %5351 = vmatprep.subr.bf16.mxu0 %v4771
  %5352 = vmatpush1.bf16.msra.mxu0 %v4770
  %5353 = vmatprep.subr.bf16.mxu0 %v4775
  %5354 = vmatpush1.bf16.msra.mxu0 %v4774
  %5355 = vmatprep.subr.bf16.mxu0 %v4779
  %5356 = vmatpush1.bf16.msra.mxu0 %v4778
  %5357 = vmatprep.subr.bf16.mxu0 %v4783
  %5358 = vmatpush1.bf16.msra.mxu0 %v4782
  %5359 = vmatprep.mubr.bf16.mxu0 %v3481
  %5360 = vmatmul.mubr.bf16.gmra.mrb[0].mxu0 %v3480
  %v5361 = vpop.f32.mrb[0].mxu0
  %v5362 = vadd.f32 %v5321, %v5361
  %v5363 = vpop.f32.mrb[0].mxu0
  %v5364 = vadd.f32 %v5323, %v5363
  %v5365 = vpop.f32.mrb[0].mxu0
  %v5366 = vpop.f32.mrb[0].mxu0
  %5367 = vdwg.mxu0
  %vm5368 = vcmp.gt.f32.partialorder %v5198, 0.0
  %vm5369 = vcmp.gt.f32.partialorder %v5200, 0.0
  %vm5370 = vcmp.gt.f32.partialorder %v5362, 0.0
  %vm5371 = vcmp.gt.f32.partialorder %v5364, 0.0
  %v5372 = vmul.f32 %v5198, 0.01
  %v5373 = vmul.f32 %v5200, 0.01
  %v5374 = vmul.f32 %v5362, 0.01
  %v5375 = vmul.f32 %v5364, 0.01
  %v5376 = vsel %vm5368, %v5198, %v5372
  %v5377 = vsel %vm5369, %v5200, %v5373
  %v5378 = vsel %vm5370, %v5362, %v5374
  %v5379 = vsel %vm5371, %v5364, %v5375
  %v5380 = vpack.c.bf16 %v5376, %v5376
  %v5381 = vpack.c.bf16 %v5377, %v5377
  %v5382 = vpack.c.bf16 %v5378, %v5378
  %v5383 = vpack.c.bf16 %v5379, %v5379
  %v5384 = vld [vmem:[%s5] sm:$0xff]
  %v5385 = vld [vmem:[%s5 + $0x8] sm:$0xff]
  %v5386 = vld [vmem:[%s5 + $0x10] sm:$0xff]
  %v5387 = vld [vmem:[%s5 + $0x18] sm:$0xff]
  %v5388 = vld [vmem:[%s5 + $0x20] sm:$0xff]
  %v5389 = vld [vmem:[%s5 + $0x28] sm:$0xff]
  %v5390 = vld [vmem:[%s5 + $0x30] sm:$0xff]
  %v5391 = vld [vmem:[%s5 + $0x38] sm:$0xff]
  %v5392 = vld [vmem:[%s5 + $0x40] sm:$0xff]
  %v5393 = vld [vmem:[%s5 + $0x48] sm:$0xff]
  %v5394 = vld [vmem:[%s5 + $0x50] sm:$0xff]
  %v5395 = vld [vmem:[%s5 + $0x58] sm:$0xff]
  %v5396 = vld [vmem:[%s5 + $0x60] sm:$0xff]
  %v5397 = vld [vmem:[%s5 + $0x68] sm:$0xff]
  %v5398 = vld [vmem:[%s5 + $0x70] sm:$0xff]
  %v5399 = vld [vmem:[%s5 + $0x78] sm:$0xff]
  %v5400 = vld [vmem:[%s5 + $0x80] sm:$0xff]
  %v5401 = vld [vmem:[%s5 + $0x88] sm:$0xff]
  %v5402 = vld [vmem:[%s5 + $0x90] sm:$0xff]
  %v5403 = vld [vmem:[%s5 + $0x98] sm:$0xff]
  %v5404 = vld [vmem:[%s5 + $0xa0] sm:$0xff]
  %v5405 = vld [vmem:[%s5 + $0xa8] sm:$0xff]
  %v5406 = vld [vmem:[%s5 + $0xb0] sm:$0xff]
  %v5407 = vld [vmem:[%s5 + $0xb8] sm:$0xff]
  %v5408 = vld [vmem:[%s5 + $0xc0] sm:$0xff]
  %v5409 = vld [vmem:[%s5 + $0xc8] sm:$0xff]
  %v5410 = vld [vmem:[%s5 + $0xd0] sm:$0xff]
  %v5411 = vld [vmem:[%s5 + $0xd8] sm:$0xff]
  %v5412 = vld [vmem:[%s5 + $0xe0] sm:$0xff]
  %v5413 = vld [vmem:[%s5 + $0xe8] sm:$0xff]
  %v5414 = vld [vmem:[%s5 + $0xf0] sm:$0xff]
  %v5415 = vld [vmem:[%s5 + $0xf8] sm:$0xff]
  %v5416 = vld [vmem:[%s5 + $0x100] sm:$0xff]
  %v5417 = vld [vmem:[%s5 + $0x108] sm:$0xff]
  %v5418 = vld [vmem:[%s5 + $0x110] sm:$0xff]
  %v5419 = vld [vmem:[%s5 + $0x118] sm:$0xff]
  %v5420 = vld [vmem:[%s5 + $0x120] sm:$0xff]
  %v5421 = vld [vmem:[%s5 + $0x128] sm:$0xff]
  %v5422 = vld [vmem:[%s5 + $0x130] sm:$0xff]
  %v5423 = vld [vmem:[%s5 + $0x138] sm:$0xff]
  %v5424 = vld [vmem:[%s5 + $0x140] sm:$0xff]
  %v5425 = vld [vmem:[%s5 + $0x148] sm:$0xff]
  %v5426 = vld [vmem:[%s5 + $0x150] sm:$0xff]
  %v5427 = vld [vmem:[%s5 + $0x158] sm:$0xff]
  %v5428 = vld [vmem:[%s5 + $0x160] sm:$0xff]
  %v5429 = vld [vmem:[%s5 + $0x168] sm:$0xff]
  %v5430 = vld [vmem:[%s5 + $0x170] sm:$0xff]
  %v5431 = vld [vmem:[%s5 + $0x178] sm:$0xff]
  %v5432 = vld [vmem:[%s5 + $0x180] sm:$0xff]
  %v5433 = vld [vmem:[%s5 + $0x188] sm:$0xff]
  %v5434 = vld [vmem:[%s5 + $0x190] sm:$0xff]
  %v5435 = vld [vmem:[%s5 + $0x198] sm:$0xff]
  %v5436 = vld [vmem:[%s5 + $0x1a0] sm:$0xff]
  %v5437 = vld [vmem:[%s5 + $0x1a8] sm:$0xff]
  %v5438 = vld [vmem:[%s5 + $0x1b0] sm:$0xff]
  %v5439 = vld [vmem:[%s5 + $0x1b8] sm:$0xff]
  %v5440 = vld [vmem:[%s5 + $0x1c0] sm:$0xff]
  %v5441 = vld [vmem:[%s5 + $0x1c8] sm:$0xff]
  %v5442 = vld [vmem:[%s5 + $0x1d0] sm:$0xff]
  %v5443 = vld [vmem:[%s5 + $0x1d8] sm:$0xff]
  %v5444 = vld [vmem:[%s5 + $0x1e0] sm:$0xff]
  %v5445 = vld [vmem:[%s5 + $0x1e8] sm:$0xff]
  %v5446 = vld [vmem:[%s5 + $0x1f0] sm:$0xff]
  %v5447 = vld [vmem:[%s5 + $0x1f8] sm:$0xff]
  %v5448 = vld [vmem:[%s6] sm:$0x3]
  %v5450 = vlaneseq
  %v5451 = vshrl.u32 %v5450, 7
  %v5452 = vsub.s32 0, %v5451
  %v5453 = vrot.slane %v5448, %v5452
  %v5454 = vlaneseq
  %v5455 = vshrl.u32 %v5454, 7
  %v5456 = vsub.s32 1, %v5455
  %v5457 = vrot.slane %v5448, %v5456
  %v5524 = vunpack.c.l.b16 %v5384
  %v5525 = vunpack.c.h.b16 %v5384
  %v5526 = vunpack.c.l.b16 %v5385
  %v5527 = vunpack.c.h.b16 %v5385
  %v5528 = vunpack.c.l.b16 %v5386
  %v5529 = vunpack.c.h.b16 %v5386
  %v5530 = vunpack.c.l.b16 %v5387
  %v5531 = vunpack.c.h.b16 %v5387
  %v5532 = vunpack.c.l.b16 %v5388
  %v5533 = vunpack.c.h.b16 %v5388
  %v5534 = vunpack.c.l.b16 %v5389
  %v5535 = vunpack.c.h.b16 %v5389
  %v5536 = vunpack.c.l.b16 %v5390
  %v5537 = vunpack.c.h.b16 %v5390
  %v5538 = vunpack.c.l.b16 %v5391
  %v5539 = vunpack.c.h.b16 %v5391
  %v5540 = vunpack.c.l.b16 %v5392
  %v5541 = vunpack.c.h.b16 %v5392
  %v5542 = vunpack.c.l.b16 %v5393
  %v5543 = vunpack.c.h.b16 %v5393
  %v5544 = vunpack.c.l.b16 %v5394
  %v5545 = vunpack.c.h.b16 %v5394
  %v5546 = vunpack.c.l.b16 %v5395
  %v5547 = vunpack.c.h.b16 %v5395
  %v5548 = vunpack.c.l.b16 %v5396
  %v5549 = vunpack.c.h.b16 %v5396
  %v5550 = vunpack.c.l.b16 %v5397
  %v5551 = vunpack.c.h.b16 %v5397
  %v5552 = vunpack.c.l.b16 %v5398
  %v5553 = vunpack.c.h.b16 %v5398
  %v5554 = vunpack.c.l.b16 %v5399
  %v5555 = vunpack.c.h.b16 %v5399
  %v5556 = vunpack.c.l.b16 %v5400
  %v5557 = vunpack.c.h.b16 %v5400
  %v5558 = vunpack.c.l.b16 %v5401
  %v5559 = vunpack.c.h.b16 %v5401
  %v5560 = vunpack.c.l.b16 %v5402
  %v5561 = vunpack.c.h.b16 %v5402
  %v5562 = vunpack.c.l.b16 %v5403
  %v5563 = vunpack.c.h.b16 %v5403
  %v5564 = vunpack.c.l.b16 %v5404
  %v5565 = vunpack.c.h.b16 %v5404
  %v5566 = vunpack.c.l.b16 %v5405
  %v5567 = vunpack.c.h.b16 %v5405
  %v5568 = vunpack.c.l.b16 %v5406
  %v5569 = vunpack.c.h.b16 %v5406
  %v5570 = vunpack.c.l.b16 %v5407
  %v5571 = vunpack.c.h.b16 %v5407
  %v5572 = vunpack.c.l.b16 %v5408
  %v5573 = vunpack.c.h.b16 %v5408
  %v5574 = vunpack.c.l.b16 %v5409
  %v5575 = vunpack.c.h.b16 %v5409
  %v5576 = vunpack.c.l.b16 %v5410
  %v5577 = vunpack.c.h.b16 %v5410
  %v5578 = vunpack.c.l.b16 %v5411
  %v5579 = vunpack.c.h.b16 %v5411
  %v5580 = vunpack.c.l.b16 %v5412
  %v5581 = vunpack.c.h.b16 %v5412
  %v5582 = vunpack.c.l.b16 %v5413
  %v5583 = vunpack.c.h.b16 %v5413
  %v5584 = vunpack.c.l.b16 %v5414
  %v5585 = vunpack.c.h.b16 %v5414
  %v5586 = vunpack.c.l.b16 %v5415
  %v5587 = vunpack.c.h.b16 %v5415
  %v5588 = vunpack.c.l.b16 %v5416
  %v5589 = vunpack.c.h.b16 %v5416
  %v5590 = vunpack.c.l.b16 %v5417
  %v5591 = vunpack.c.h.b16 %v5417
  %v5592 = vunpack.c.l.b16 %v5418
  %v5593 = vunpack.c.h.b16 %v5418
  %v5594 = vunpack.c.l.b16 %v5419
  %v5595 = vunpack.c.h.b16 %v5419
  %v5596 = vunpack.c.l.b16 %v5420
  %v5597 = vunpack.c.h.b16 %v5420
  %v5598 = vunpack.c.l.b16 %v5421
  %v5599 = vunpack.c.h.b16 %v5421
  %v5600 = vunpack.c.l.b16 %v5422
  %v5601 = vunpack.c.h.b16 %v5422
  %v5602 = vunpack.c.l.b16 %v5423
  %v5603 = vunpack.c.h.b16 %v5423
  %v5604 = vunpack.c.l.b16 %v5424
  %v5605 = vunpack.c.h.b16 %v5424
  %v5606 = vunpack.c.l.b16 %v5425
  %v5607 = vunpack.c.h.b16 %v5425
  %v5608 = vunpack.c.l.b16 %v5426
  %v5609 = vunpack.c.h.b16 %v5426
  %v5610 = vunpack.c.l.b16 %v5427
  %v5611 = vunpack.c.h.b16 %v5427
  %v5612 = vunpack.c.l.b16 %v5428
  %v5613 = vunpack.c.h.b16 %v5428
  %v5614 = vunpack.c.l.b16 %v5429
  %v5615 = vunpack.c.h.b16 %v5429
  %v5616 = vunpack.c.l.b16 %v5430
  %v5617 = vunpack.c.h.b16 %v5430
  %v5618 = vunpack.c.l.b16 %v5431
  %v5619 = vunpack.c.h.b16 %v5431
  %v5620 = vunpack.c.l.b16 %v5432
  %v5621 = vunpack.c.h.b16 %v5432
  %v5622 = vunpack.c.l.b16 %v5433
  %v5623 = vunpack.c.h.b16 %v5433
  %v5624 = vunpack.c.l.b16 %v5434
  %v5625 = vunpack.c.h.b16 %v5434
  %v5626 = vunpack.c.l.b16 %v5435
  %v5627 = vunpack.c.h.b16 %v5435
  %v5628 = vunpack.c.l.b16 %v5436
  %v5629 = vunpack.c.h.b16 %v5436
  %v5630 = vunpack.c.l.b16 %v5437
  %v5631 = vunpack.c.h.b16 %v5437
  %v5632 = vunpack.c.l.b16 %v5438
  %v5633 = vunpack.c.h.b16 %v5438
  %v5634 = vunpack.c.l.b16 %v5439
  %v5635 = vunpack.c.h.b16 %v5439
  %v5636 = vunpack.c.l.b16 %v5440
  %v5637 = vunpack.c.h.b16 %v5440
  %v5638 = vunpack.c.l.b16 %v5441
  %v5639 = vunpack.c.h.b16 %v5441
  %v5640 = vunpack.c.l.b16 %v5442
  %v5641 = vunpack.c.h.b16 %v5442
  %v5642 = vunpack.c.l.b16 %v5443
  %v5643 = vunpack.c.h.b16 %v5443
  %v5644 = vunpack.c.l.b16 %v5444
  %v5645 = vunpack.c.h.b16 %v5444
  %v5646 = vunpack.c.l.b16 %v5445
  %v5647 = vunpack.c.h.b16 %v5445
  %v5648 = vunpack.c.l.b16 %v5446
  %v5649 = vunpack.c.h.b16 %v5446
  %v5650 = vunpack.c.l.b16 %v5447
  %v5651 = vunpack.c.h.b16 %v5447
  %v5652 = vpack.c.b16 %v5526, %v5524
  %v5653 = vpack.c.b16 %v5527, %v5525
  %v5654 = vpack.c.b16 %v5530, %v5528
  %v5655 = vpack.c.b16 %v5531, %v5529
  %v5656 = vpack.c.b16 %v5534, %v5532
  %v5657 = vpack.c.b16 %v5535, %v5533
  %v5658 = vpack.c.b16 %v5538, %v5536
  %v5659 = vpack.c.b16 %v5539, %v5537
  %v5660 = vpack.c.b16 %v5542, %v5540
  %v5661 = vpack.c.b16 %v5543, %v5541
  %v5662 = vpack.c.b16 %v5546, %v5544
  %v5663 = vpack.c.b16 %v5547, %v5545
  %v5664 = vpack.c.b16 %v5550, %v5548
  %v5665 = vpack.c.b16 %v5551, %v5549
  %v5666 = vpack.c.b16 %v5554, %v5552
  %v5667 = vpack.c.b16 %v5555, %v5553
  %v5668 = vpack.c.b16 %v5558, %v5556
  %v5669 = vpack.c.b16 %v5559, %v5557
  %v5670 = vpack.c.b16 %v5562, %v5560
  %v5671 = vpack.c.b16 %v5563, %v5561
  %v5672 = vpack.c.b16 %v5566, %v5564
  %v5673 = vpack.c.b16 %v5567, %v5565
  %v5674 = vpack.c.b16 %v5570, %v5568
  %v5675 = vpack.c.b16 %v5571, %v5569
  %v5676 = vpack.c.b16 %v5574, %v5572
  %v5677 = vpack.c.b16 %v5575, %v5573
  %v5678 = vpack.c.b16 %v5578, %v5576
  %v5679 = vpack.c.b16 %v5579, %v5577
  %v5680 = vpack.c.b16 %v5582, %v5580
  %v5681 = vpack.c.b16 %v5583, %v5581
  %v5682 = vpack.c.b16 %v5586, %v5584
  %v5683 = vpack.c.b16 %v5587, %v5585
  %v5684 = vpack.c.b16 %v5590, %v5588
  %v5685 = vpack.c.b16 %v5591, %v5589
  %v5686 = vpack.c.b16 %v5594, %v5592
  %v5687 = vpack.c.b16 %v5595, %v5593
  %v5688 = vpack.c.b16 %v5598, %v5596
  %v5689 = vpack.c.b16 %v5599, %v5597
  %v5690 = vpack.c.b16 %v5602, %v5600
  %v5691 = vpack.c.b16 %v5603, %v5601
  %v5692 = vpack.c.b16 %v5606, %v5604
  %v5693 = vpack.c.b16 %v5607, %v5605
  %v5694 = vpack.c.b16 %v5610, %v5608
  %v5695 = vpack.c.b16 %v5611, %v5609
  %v5696 = vpack.c.b16 %v5614, %v5612
  %v5697 = vpack.c.b16 %v5615, %v5613
  %v5698 = vpack.c.b16 %v5618, %v5616
  %v5699 = vpack.c.b16 %v5619, %v5617
  %v5700 = vpack.c.b16 %v5622, %v5620
  %v5701 = vpack.c.b16 %v5623, %v5621
  %v5702 = vpack.c.b16 %v5626, %v5624
  %v5703 = vpack.c.b16 %v5627, %v5625
  %v5704 = vpack.c.b16 %v5630, %v5628
  %v5705 = vpack.c.b16 %v5631, %v5629
  %v5706 = vpack.c.b16 %v5634, %v5632
  %v5707 = vpack.c.b16 %v5635, %v5633
  %v5708 = vpack.c.b16 %v5638, %v5636
  %v5709 = vpack.c.b16 %v5639, %v5637
  %v5710 = vpack.c.b16 %v5642, %v5640
  %v5711 = vpack.c.b16 %v5643, %v5641
  %v5712 = vpack.c.b16 %v5646, %v5644
  %v5713 = vpack.c.b16 %v5647, %v5645
  %v5714 = vpack.c.b16 %v5650, %v5648
  %v5715 = vpack.c.b16 %v5651, %v5649
  %5780 = vmatprep.subr.bf16.mxu0 %v5653
  %5781 = vmatpush1.bf16.msra.mxu0 %v5652
  %5782 = vmatprep.subr.bf16.mxu0 %v5655
  %5783 = vmatpush1.bf16.msra.mxu0 %v5654
  %5784 = vmatprep.subr.bf16.mxu0 %v5657
  %5785 = vmatpush1.bf16.msra.mxu0 %v5656
  %5786 = vmatprep.subr.bf16.mxu0 %v5659
  %5787 = vmatpush1.bf16.msra.mxu0 %v5658
  %5788 = vmatprep.subr.bf16.mxu0 %v5661
  %5789 = vmatpush1.bf16.msra.mxu0 %v5660
  %5790 = vmatprep.subr.bf16.mxu0 %v5663
  %5791 = vmatpush1.bf16.msra.mxu0 %v5662
  %5792 = vmatprep.subr.bf16.mxu0 %v5665
  %5793 = vmatpush1.bf16.msra.mxu0 %v5664
  %5794 = vmatprep.subr.bf16.mxu0 %v5667
  %5795 = vmatpush1.bf16.msra.mxu0 %v5666
  %5796 = vmatprep.subr.bf16.mxu0 %v5669
  %5797 = vmatpush1.bf16.msra.mxu0 %v5668
  %5798 = vmatprep.subr.bf16.mxu0 %v5671
  %5799 = vmatpush1.bf16.msra.mxu0 %v5670
  %5800 = vmatprep.subr.bf16.mxu0 %v5673
  %5801 = vmatpush1.bf16.msra.mxu0 %v5672
  %5802 = vmatprep.subr.bf16.mxu0 %v5675
  %5803 = vmatpush1.bf16.msra.mxu0 %v5674
  %5804 = vmatprep.subr.bf16.mxu0 %v5677
  %5805 = vmatpush1.bf16.msra.mxu0 %v5676
  %5806 = vmatprep.subr.bf16.mxu0 %v5679
  %5807 = vmatpush1.bf16.msra.mxu0 %v5678
  %5808 = vmatprep.subr.bf16.mxu0 %v5681
  %5809 = vmatpush1.bf16.msra.mxu0 %v5680
  %5810 = vmatprep.subr.bf16.mxu0 %v5683
  %5811 = vmatpush1.bf16.msra.mxu0 %v5682
  %5812 = vmatprep.mubr.bf16.mxu0 %v5381
  %5813 = vmatmul.mubr.bf16.gmra.mrb[0].mxu0 %v5380
  %v5814 = vpop.f32.mrb[0].mxu0
  %v5815 = vadd.f32 %v5453, %v5814
  %v5816 = vpop.f32.mrb[0].mxu0
  %v5817 = vadd.f32 %v5457, %v5816
  %v5818 = vpop.f32.mrb[0].mxu0
  %v5819 = vpop.f32.mrb[0].mxu0
  %5820 = vdwg.mxu0
  %5821 = vmatprep.subr.bf16.mxu0 %v5685
  %5822 = vmatpush1.bf16.msra.mxu0 %v5684
  %5823 = vmatprep.subr.bf16.mxu0 %v5687
  %5824 = vmatpush1.bf16.msra.mxu0 %v5686
  %5825 = vmatprep.subr.bf16.mxu0 %v5689
  %5826 = vmatpush1.bf16.msra.mxu0 %v5688
  %5827 = vmatprep.subr.bf16.mxu0 %v5691
  %5828 = vmatpush1.bf16.msra.mxu0 %v5690
  %5829 = vmatprep.subr.bf16.mxu0 %v5693
  %5830 = vmatpush1.bf16.msra.mxu0 %v5692
  %5831 = vmatprep.subr.bf16.mxu0 %v5695
  %5832 = vmatpush1.bf16.msra.mxu0 %v5694
  %5833 = vmatprep.subr.bf16.mxu0 %v5697
  %5834 = vmatpush1.bf16.msra.mxu0 %v5696
  %5835 = vmatprep.subr.bf16.mxu0 %v5699
  %5836 = vmatpush1.bf16.msra.mxu0 %v5698
  %5837 = vmatprep.subr.bf16.mxu0 %v5701
  %5838 = vmatpush1.bf16.msra.mxu0 %v5700
  %5839 = vmatprep.subr.bf16.mxu0 %v5703
  %5840 = vmatpush1.bf16.msra.mxu0 %v5702
  %5841 = vmatprep.subr.bf16.mxu0 %v5705
  %5842 = vmatpush1.bf16.msra.mxu0 %v5704
  %5843 = vmatprep.subr.bf16.mxu0 %v5707
  %5844 = vmatpush1.bf16.msra.mxu0 %v5706
  %5845 = vmatprep.subr.bf16.mxu0 %v5709
  %5846 = vmatpush1.bf16.msra.mxu0 %v5708
  %5847 = vmatprep.subr.bf16.mxu0 %v5711
  %5848 = vmatpush1.bf16.msra.mxu0 %v5710
  %5849 = vmatprep.subr.bf16.mxu0 %v5713
  %5850 = vmatpush1.bf16.msra.mxu0 %v5712
  %5851 = vmatprep.subr.bf16.mxu0 %v5715
  %5852 = vmatpush1.bf16.msra.mxu0 %v5714
  %5853 = vmatprep.mubr.bf16.mxu0 %v5383
  %5854 = vmatmul.mubr.bf16.gmra.mrb[0].mxu0 %v5382
  %v5855 = vpop.f32.mrb[0].mxu0
  %v5856 = vadd.f32 %v5815, %v5855
  %v5857 = vpop.f32.mrb[0].mxu0
  %v5858 = vadd.f32 %v5817, %v5857
  %v5859 = vpop.f32.mrb[0].mxu0
  %v5860 = vpop.f32.mrb[0].mxu0
  %5861 = vdwg.mxu0
  %vm5862 = vcmp.gt.f32.partialorder %v5856, 0.0
  %vm5863 = vcmp.gt.f32.partialorder %v5858, 0.0
  %v5864 = vmul.f32 %v5856, 0.01
  %v5865 = vmul.f32 %v5858, 0.01
  %v5866 = vsel %vm5862, %v5856, %v5864
  %v5867 = vsel %vm5863, %v5858, %v5865
  %v5868 = vld [vmem:[%s7] sm:$0x3]
  %v5869 = vunpack.c.l.bf16 %v5868
  %v5871 = vlaneseq
  %v5872 = vshrl.u32 %v5871, 7
  %v5873 = vsub.s32 0, %v5872
  %v5874 = vrot.slane %v5869, %v5873
  %v5875 = vlaneseq
  %v5876 = vshrl.u32 %v5875, 7
  %v5877 = vsub.s32 2, %v5876
  %v5878 = vrot.slane %v5869, %v5877
  %v5881 = vlaneseq
  %v5882 = vshrl.u32 %v5881, 7
  %v5883 = vsub.s32 0, %v5882
  %v5884 = vrot.slane %v5874, %v5883
  %v5885 = vlaneseq
  %v5886 = vshrl.u32 %v5885, 7
  %v5887 = vsub.s32 0, %v5886
  %v5888 = vrot.slane %v5878, %v5887
  %v5889 = vmul.f32 %v5866, %v5884
  %v5890 = vmul.f32 %v5867, %v5888
  %v5891 = vadd.f32 %v5889, %v5890
  %5892 = vadd.xlane.f32.xlu0 %v5891
  %v5893 = vpop.xlane.xlu0 %5892
  %v5894 = vld [vmem:[#allocation2] sm:$0x1]
  %v5896 = vlaneseq
  %v5897 = vshrl.u32 %v5896, 7
  %v5898 = vsub.s32 0, %v5897
  %v5899 = vrot.slane %v5894, %v5898
  %v5901 = vadd.f32 %v5893, %v5899
  %v5902 = vsub.f32 0.0, %v5901
  %v5903 = vmul.f32 %v5902, 1.442695
  %v5904 = vpow.pop %v5903
  %v5905 = vadd.f32 %v5904, 1.0
  %v5906 = vrcp.pop %v5905
  %v5907 = vmul.f32 1.0, %v5906
  %vm5908 = vcmask 7168
  %5909 = vst.msk [vmem:[%s9] sm:$0xff] %vm5908, %v5907
  // Predicated region
  $region38: #{discriminator_forward.1} parent=0 // pred_check
    _
  $region39: #{discriminator_forward.1} parent=0 // pred_check_branch
    %5911 = sbr.rel (0) target = $region41
  $region40: #{discriminator_forward.1} parent=0 // pred_region
    _
  $region41: #{discriminator_forward.1} parent=0 // pred_fallthru
    _
  // Predicated region
  $region42: #{discriminator_forward.1} parent=0 // pred_check
    _
  $region43: #{discriminator_forward.1} parent=0 // pred_check_branch
    %5913 = sbr.rel (0) target = $region45
  $region44: #{discriminator_forward.1} parent=0 // pred_region
    _
  $region45: #{discriminator_forward.1} parent=0 // pred_fallthru
    _

</llo_original>
